<compile_context>
chip_gen: v7x
topology: tpu7x:2x2x1
jax: 0.10.0
libtpu: 0.0.40
codegen_flags: <defaults>
</compile_context>

<pallas_src>
import jax
import jax.numpy as jnp
from jax.experimental import pallas as pl
from jax.experimental.pallas import tpu as pltpu

_SLOPE = 0.2
_H1, _H2, _H3 = 256, 128, 64
_OUT_PAD = 128        # final layer padded to 128 MXU output lanes
_MIN_TILE = 256       # multiple of 256 (v6e/v7x MXU rows); also multiple of v5e's 128
_SMALL_BATCH = 256    # <= one minimal tile -> pure-JAX fast path


def _leaky_relu(x, slope=_SLOPE):
    return jnp.where(x > 0, x, slope * x)


def _mlp_kernel(x_ref,
                w1_ref, b1_ref,
                w2_ref, b2_ref,
                w3_ref, b3_ref,
                w4_ref, b4_ref,
                o_ref):
    # x: (TB, D) f32 from HBM; bf16 cast happens on the VPU (filler under MXU).
    x = x_ref[...].astype(jnp.bfloat16)

    h = jnp.dot(x, w1_ref[...], preferred_element_type=jnp.float32) + b1_ref[...]
    h = _leaky_relu(h).astype(jnp.bfloat16)

    h = jnp.dot(h, w2_ref[...], preferred_element_type=jnp.float32) + b2_ref[...]
    h = _leaky_relu(h).astype(jnp.bfloat16)

    h = jnp.dot(h, w3_ref[...], preferred_element_type=jnp.float32) + b3_ref[...]
    h = _leaky_relu(h).astype(jnp.bfloat16)

    # Final layer: w4 zero-padded (64,1)->(64,128) so the MXU emits a clean
    # (TB, 128) tile; only column 0 holds the real logit.
    out = jnp.dot(h, w4_ref[...], preferred_element_type=jnp.float32) + b4_ref[...]

    # Pack logits into lanes: XLU-transpose (TB,128)->(128,TB), keep row 0 as a
    # lane-dense (1, TB) row -> 4 bytes of HBM writeback per batch row.
    o_ref[0] = out.T[0:1, :]


def _round_up(x, m):
    return -(-x // m) * m


def emo_mapping_discriminator(latent, params, *, tile_b=1024,
                              allow_jax_fast_path=True):
    """latent: (B, latent_dim) float32.
    params: {'w1'..'w4': (in,out) weights, 'b1'..'b4': (1,out) biases}.
    Returns (B, 1) float32 logits (matches the PyTorch module's forward)."""
    B, D = latent.shape
    latent = latent.astype(jnp.float32)

    # Tiny batches: a single tile has nothing to pipeline; a fused XLA MLP is
    # as fast, avoids launch/DMA-prime latency and leaves no v7x core idle.
    if allow_jax_fast_path and B <= _SMALL_BATCH:
        return reference_forward(latent, params).astype(jnp.float32)

    # Batch tile selection: large batches use tile_b (multiple of 256); medium
    # batches are split into >=2 tiles so "parallel" can use both v7x cores.
    tile_b = max(_MIN_TILE, _round_up(tile_b, _MIN_TILE))
    b_ceil = _round_up(B, _MIN_TILE)
    if b_ceil >= 2 * tile_b:
        tb = tile_b
    else:
        tb = max(_MIN_TILE, _round_up(b_ceil // 2, _MIN_TILE))
    num_tiles = pl.cdiv(B, tb)      # ragged last tile handled by Pallas (no pre-pad)
    grid = (num_tiles,)

    # bf16 weights (MXU operands, VMEM-resident); f32 biases (added to the f32
    # accumulator -- v5e's VPU has no bf16 path).  Weight casts are ~100 KiB.
    w1 = params["w1"].astype(jnp.bfloat16)
    w2 = params["w2"].astype(jnp.bfloat16)
    w3 = params["w3"].astype(jnp.bfloat16)
    b1 = params["b1"].astype(jnp.float32)
    b2 = params["b2"].astype(jnp.float32)
    b3 = params["b3"].astype(jnp.float32)
    w4 = jnp.pad(params["w4"].astype(jnp.bfloat16),
                 ((0, 0), (0, _OUT_PAD - params["w4"].shape[1])))
    b4 = jnp.pad(params["b4"].astype(jnp.float32),
                 ((0, 0), (0, _OUT_PAD - params["b4"].shape[1])))

    args = (latent, w1, b1, w2, b2, w3, b3, w4, b4)

    # Full-array blocks with a constant index_map stay resident in VMEM across
    # every grid step (no weight re-DMA).
    def resident(a):
        return pl.BlockSpec(a.shape, lambda i: (0, 0))

    in_specs = [pl.BlockSpec((tb, D), lambda i: (i, 0))]
    in_specs += [resident(a) for a in args[1:]]
    # Packed, lane-dense output: one (1, tb) f32 row of logits per grid step.
    out_specs = pl.BlockSpec((1, 1, tb), lambda i: (i, 0, 0))

    n_rows = num_tiles * tb
    flops = 2 * n_rows * (D * _H1 + _H1 * _H2 + _H2 * _H3 + _H3 * _OUT_PAD)
    bytes_accessed = (B * D * 4                                       # f32 input read
                      + sum(int(a.size) * a.dtype.itemsize for a in args[1:])
                      + n_rows * 4)                                   # packed f32 logits
    cost = pl.CostEstimate(flops=flops, transcendentals=0,
                           bytes_accessed=bytes_accessed)

    out = pl.pallas_call(
        _mlp_kernel,
        out_shape=jax.ShapeDtypeStruct((num_tiles, 1, tb), jnp.float32),
        grid=grid,
        in_specs=in_specs,
        out_specs=out_specs,
        compiler_params=pltpu.CompilerParams(
            dimension_semantics=("parallel",)),   # megacore sharding on v7x
        cost_estimate=cost,
    )(*args)

    # (num_tiles, 1, tb) -> (num_tiles*tb, 1); rows past B come from the ragged
    # last tile's out-of-bounds reads (garbage) and are sliced off here.
    return out.reshape(num_tiles * tb, 1)[:B]


def init_params(key, latent_dim):
    """PyTorch-Linear-style init, uniform(-1/sqrt(in), 1/sqrt(in)).
    Weights stored as (in_dim, out_dim) = PyTorch weight.T; biases (1, out)."""
    dims = [latent_dim, _H1, _H2, _H3, 1]
    params = {}
    for i in range(4):
        fan_in, fan_out = dims[i], dims[i + 1]
        key, kw, kb = jax.random.split(key, 3)
        bound = 1.0 / (fan_in ** 0.5)
        params[f"w{i+1}"] = jax.random.uniform(
            kw, (fan_in, fan_out), jnp.float32, -bound, bound)
        params[f"b{i+1}"] = jax.random.uniform(
            kb, (1, fan_out), jnp.float32, -bound, bound)
    return params


def reference_forward(latent, params):
    """Pure-JAX f32 reference matching the PyTorch module."""
    h = latent
    for i in range(1, 4):
        h = h @ params[f"w{i}"] + params[f"b{i}"]
        h = jnp.where(h > 0, h, _SLOPE * h)
    return h @ params["w4"] + params["b4"]


if __name__ == "__main__":
    key = jax.random.PRNGKey(0)
    latent_dim = 32

    kp, kx = jax.random.split(key)
    params = init_params(kp, latent_dim)

    # Multi-tile Pallas path with a ragged last tile (640 rows -> tb=512, 2 tiles).
    batch = 640
    latent = jax.random.normal(kx, (batch, latent_dim), jnp.float32)
    out = jax.block_until_ready(emo_mapping_discriminator(latent, params))
    ref = reference_forward(latent, params)
    assert out.shape == (batch, 1), out.shape
    assert jnp.allclose(out, ref, atol=3e-2, rtol=3e-2)

    # Ragged medium batch (300 rows -> tb=256, 2 tiles, 2nd tile mostly OOB reads).
    batch2 = 300
    latent2 = jax.random.normal(jax.random.fold_in(kx, 1),
                                (batch2, latent_dim), jnp.float32)
    out2 = jax.block_until_ready(emo_mapping_discriminator(latent2, params))
    ref2 = reference_forward(latent2, params)
    assert out2.shape == (batch2, 1), out2.shape
    assert jnp.allclose(out2, ref2, atol=3e-2, rtol=3e-2)

    # Tiny batch -> pure-JAX fast path (no kernel launch).
    batch3 = 8
    latent3 = jax.random.normal(jax.random.fold_in(kx, 2),
                                (batch3, latent_dim), jnp.float32)
    out3 = jax.block_until_ready(emo_mapping_discriminator(latent3, params))
    ref3 = reference_forward(latent3, params)
    assert out3.shape == (batch3, 1), out3.shape
    assert jnp.allclose(out3, ref3, atol=3e-2, rtol=3e-2)

    print("KERNEL_OK")
</pallas_src>

<mosaic_0001>
module attributes {stable_mosaic.version = 11 : i64} {
  func.func @_mlp_kernel(%arg0: i32, %arg1: memref<512x32xf32, #tpu.memory_space<vmem>>, %arg2: memref<32x256xbf16, #tpu.memory_space<vmem>>, %arg3: memref<1x256xf32, #tpu.memory_space<vmem>>, %arg4: memref<256x128xbf16, #tpu.memory_space<vmem>>, %arg5: memref<1x128xf32, #tpu.memory_space<vmem>>, %arg6: memref<128x64xbf16, #tpu.memory_space<vmem>>, %arg7: memref<1x64xf32, #tpu.memory_space<vmem>>, %arg8: memref<64x128xbf16, #tpu.memory_space<vmem>>, %arg9: memref<1x128xf32, #tpu.memory_space<vmem>>, %arg10: memref<1x1x512xf32, #tpu.memory_space<vmem>>) attributes {dimension_semantics = [#tpu.dimension_semantics<parallel>], iteration_bounds = array<i64: 2>, scalar_prefetch = 0 : i64, scratch_operands = 0 : i64, tpu.core_type = #tpu.core_type<tc>, window_params = [{transform_indices = @transform_0, window_bounds = array<i64: 512, 32>}, {pipeline_mode = #tpu.pipeline_mode<synchronous>, transform_indices = @transform_1, window_bounds = array<i64: 32, 256>}, {pipeline_mode = #tpu.pipeline_mode<synchronous>, transform_indices = @transform_2, window_bounds = array<i64: 1, 256>}, {pipeline_mode = #tpu.pipeline_mode<synchronous>, transform_indices = @transform_3, window_bounds = array<i64: 256, 128>}, {pipeline_mode = #tpu.pipeline_mode<synchronous>, transform_indices = @transform_4, window_bounds = array<i64: 1, 128>}, {pipeline_mode = #tpu.pipeline_mode<synchronous>, transform_indices = @transform_5, window_bounds = array<i64: 128, 64>}, {pipeline_mode = #tpu.pipeline_mode<synchronous>, transform_indices = @transform_6, window_bounds = array<i64: 1, 64>}, {pipeline_mode = #tpu.pipeline_mode<synchronous>, transform_indices = @transform_7, window_bounds = array<i64: 64, 128>}, {pipeline_mode = #tpu.pipeline_mode<synchronous>, transform_indices = @transform_8, window_bounds = array<i64: 1, 128>}, {transform_indices = @transform_9, window_bounds = array<i64: 1, 1, 512>}]} {
    %c0 = arith.constant 0 : index
    %c0_0 = arith.constant 0 : index
    %0 = vector.load %arg1[%c0, %c0_0] : memref<512x32xf32, #tpu.memory_space<vmem>>, vector<512x32xf32>
    %1 = arith.truncf %0 : vector<512x32xf32> to vector<512x32xbf16>
    %c0_1 = arith.constant 0 : index
    %c0_2 = arith.constant 0 : index
    %2 = vector.load %arg2[%c0_1, %c0_2] : memref<32x256xbf16, #tpu.memory_space<vmem>>, vector<32x256xbf16>
    %cst = arith.constant dense<0.000000e+00> : vector<512x256xf32>
    %3 = tpu.matmul %1, %2, %cst {dimension_numbers = #tpu.dot_dimension_numbers<[1], [0], [0], [1], [0, 0, 1, 1], [], []>} : vector<512x32xbf16>, vector<32x256xbf16>, vector<512x256xf32> -> vector<512x256xf32>
    %c0_3 = arith.constant 0 : index
    %c0_4 = arith.constant 0 : index
    %4 = vector.load %arg3[%c0_3, %c0_4] : memref<1x256xf32, #tpu.memory_space<vmem>>, vector<1x256xf32>
    %5 = vector.broadcast %4 : vector<1x256xf32> to vector<512x256xf32>
    %6 = arith.addf %3, %5 : vector<512x256xf32>
    %cst_5 = arith.constant 0.000000e+00 : f32
    %7 = vector.broadcast %cst_5 : f32 to vector<512x256xf32>
    %8 = arith.cmpf ogt, %6, %7 : vector<512x256xf32>
    %cst_6 = arith.constant 2.000000e-01 : f32
    %9 = vector.broadcast %cst_6 : f32 to vector<512x256xf32>
    %10 = arith.mulf %9, %6 : vector<512x256xf32>
    %11 = arith.select %8, %6, %10 : vector<512x256xi1>, vector<512x256xf32>
    %12 = arith.truncf %11 : vector<512x256xf32> to vector<512x256xbf16>
    %c0_7 = arith.constant 0 : index
    %c0_8 = arith.constant 0 : index
    %13 = vector.load %arg4[%c0_7, %c0_8] : memref<256x128xbf16, #tpu.memory_space<vmem>>, vector<256x128xbf16>
    %cst_9 = arith.constant dense<0.000000e+00> : vector<512x128xf32>
    %14 = tpu.matmul %12, %13, %cst_9 {dimension_numbers = #tpu.dot_dimension_numbers<[1], [0], [0], [1], [0, 0, 1, 1], [], []>} : vector<512x256xbf16>, vector<256x128xbf16>, vector<512x128xf32> -> vector<512x128xf32>
    %c0_10 = arith.constant 0 : index
    %c0_11 = arith.constant 0 : index
    %15 = vector.load %arg5[%c0_10, %c0_11] : memref<1x128xf32, #tpu.memory_space<vmem>>, vector<1x128xf32>
    %16 = vector.broadcast %15 : vector<1x128xf32> to vector<512x128xf32>
    %17 = arith.addf %14, %16 : vector<512x128xf32>
    %cst_12 = arith.constant 0.000000e+00 : f32
    %18 = vector.broadcast %cst_12 : f32 to vector<512x128xf32>
    %19 = arith.cmpf ogt, %17, %18 : vector<512x128xf32>
    %cst_13 = arith.constant 2.000000e-01 : f32
    %20 = vector.broadcast %cst_13 : f32 to vector<512x128xf32>
    %21 = arith.mulf %20, %17 : vector<512x128xf32>
    %22 = arith.select %19, %17, %21 : vector<512x128xi1>, vector<512x128xf32>
    %23 = arith.truncf %22 : vector<512x128xf32> to vector<512x128xbf16>
    %c0_14 = arith.constant 0 : index
    %c0_15 = arith.constant 0 : index
    %24 = vector.load %arg6[%c0_14, %c0_15] : memref<128x64xbf16, #tpu.memory_space<vmem>>, vector<128x64xbf16>
    %cst_16 = arith.constant dense<0.000000e+00> : vector<512x64xf32>
    %25 = tpu.matmul %23, %24, %cst_16 {dimension_numbers = #tpu.dot_dimension_numbers<[1], [0], [0], [1], [0, 0, 1, 1], [], []>} : vector<512x128xbf16>, vector<128x64xbf16>, vector<512x64xf32> -> vector<512x64xf32>
    %c0_17 = arith.constant 0 : index
    %c0_18 = arith.constant 0 : index
    %26 = vector.load %arg7[%c0_17, %c0_18] : memref<1x64xf32, #tpu.memory_space<vmem>>, vector<1x64xf32>
    %27 = vector.broadcast %26 : vector<1x64xf32> to vector<512x64xf32>
    %28 = arith.addf %25, %27 : vector<512x64xf32>
    %cst_19 = arith.constant 0.000000e+00 : f32
    %29 = vector.broadcast %cst_19 : f32 to vector<512x64xf32>
    %30 = arith.cmpf ogt, %28, %29 : vector<512x64xf32>
    %cst_20 = arith.constant 2.000000e-01 : f32
    %31 = vector.broadcast %cst_20 : f32 to vector<512x64xf32>
    %32 = arith.mulf %31, %28 : vector<512x64xf32>
    %33 = arith.select %30, %28, %32 : vector<512x64xi1>, vector<512x64xf32>
    %34 = arith.truncf %33 : vector<512x64xf32> to vector<512x64xbf16>
    %c0_21 = arith.constant 0 : index
    %c0_22 = arith.constant 0 : index
    %35 = vector.load %arg8[%c0_21, %c0_22] : memref<64x128xbf16, #tpu.memory_space<vmem>>, vector<64x128xbf16>
    %cst_23 = arith.constant dense<0.000000e+00> : vector<512x128xf32>
    %36 = tpu.matmul %34, %35, %cst_23 {dimension_numbers = #tpu.dot_dimension_numbers<[1], [0], [0], [1], [0, 0, 1, 1], [], []>} : vector<512x64xbf16>, vector<64x128xbf16>, vector<512x128xf32> -> vector<512x128xf32>
    %c0_24 = arith.constant 0 : index
    %c0_25 = arith.constant 0 : index
    %37 = vector.load %arg9[%c0_24, %c0_25] : memref<1x128xf32, #tpu.memory_space<vmem>>, vector<1x128xf32>
    %38 = vector.broadcast %37 : vector<1x128xf32> to vector<512x128xf32>
    %39 = arith.addf %36, %38 : vector<512x128xf32>
    %40 = tpu.transpose %39, [1, 0] : vector<512x128xf32> -> vector<128x512xf32>
    %41 = vector.extract_strided_slice %40 {offsets = [0, 0], sizes = [1, 512], strides = [1, 1]} : vector<128x512xf32> to vector<1x512xf32>
    %c0_26 = arith.constant 0 : index
    %c0_27 = arith.constant 0 : index
    %c0_28 = arith.constant 0 : index
    %42 = vector.load %arg10[%c0_26, %c0_27, %c0_28] : memref<1x1x512xf32, #tpu.memory_space<vmem>>, vector<1x1x512xf32>
    %43 = vector.shape_cast %42 : vector<1x1x512xf32> to vector<1x512xf32>
    %44 = vector.shape_cast %41 : vector<1x512xf32> to vector<1x1x512xf32>
    tpu.vector_store %arg10[%c0_26, %c0_27, %c0_28], %44 {strides = array<i32>} : memref<1x1x512xf32, #tpu.memory_space<vmem>>, vector<1x1x512xf32>,
    return
  }
  func.func @transform_0(%arg0: i32) -> (i32, i32) {
    %c0_i32 = arith.constant 0 : i32
    %c0_i32_0 = arith.constant 0 : i32
    return %arg0, %c0_i32 : i32, i32
  }
  func.func @transform_1(%arg0: i32) -> (i32, i32) {
    %c0_i32 = arith.constant 0 : i32
    %c0_i32_0 = arith.constant 0 : i32
    %c0_i32_1 = arith.constant 0 : i32
    return %c0_i32, %c0_i32_0 : i32, i32
  }
  func.func @transform_2(%arg0: i32) -> (i32, i32) {
    %c0_i32 = arith.constant 0 : i32
    %c0_i32_0 = arith.constant 0 : i32
    %c0_i32_1 = arith.constant 0 : i32
    return %c0_i32, %c0_i32_0 : i32, i32
  }
  func.func @transform_3(%arg0: i32) -> (i32, i32) {
    %c0_i32 = arith.constant 0 : i32
    %c0_i32_0 = arith.constant 0 : i32
    %c0_i32_1 = arith.constant 0 : i32
    return %c0_i32, %c0_i32_0 : i32, i32
  }
  func.func @transform_4(%arg0: i32) -> (i32, i32) {
    %c0_i32 = arith.constant 0 : i32
    %c0_i32_0 = arith.constant 0 : i32
    %c0_i32_1 = arith.constant 0 : i32
    return %c0_i32, %c0_i32_0 : i32, i32
  }
  func.func @transform_5(%arg0: i32) -> (i32, i32) {
    %c0_i32 = arith.constant 0 : i32
    %c0_i32_0 = arith.constant 0 : i32
    %c0_i32_1 = arith.constant 0 : i32
    return %c0_i32, %c0_i32_0 : i32, i32
  }
  func.func @transform_6(%arg0: i32) -> (i32, i32) {
    %c0_i32 = arith.constant 0 : i32
    %c0_i32_0 = arith.constant 0 : i32
    %c0_i32_1 = arith.constant 0 : i32
    return %c0_i32, %c0_i32_0 : i32, i32
  }
  func.func @transform_7(%arg0: i32) -> (i32, i32) {
    %c0_i32 = arith.constant 0 : i32
    %c0_i32_0 = arith.constant 0 : i32
    %c0_i32_1 = arith.constant 0 : i32
    return %c0_i32, %c0_i32_0 : i32, i32
  }
  func.func @transform_8(%arg0: i32) -> (i32, i32) {
    %c0_i32 = arith.constant 0 : i32
    %c0_i32_0 = arith.constant 0 : i32
    %c0_i32_1 = arith.constant 0 : i32
    return %c0_i32, %c0_i32_0 : i32, i32
  }
  func.func @transform_9(%arg0: i32) -> (i32, i32, i32) {
    %c0_i32 = arith.constant 0 : i32
    %c0_i32_0 = arith.constant 0 : i32
    %c0_i32_1 = arith.constant 0 : i32
    return %arg0, %c0_i32, %c0_i32_0 : i32, i32, i32
  }
}

</mosaic_0001>

<llo_original>
// kernel: tpu_custom_call.1
$region0: #{tpu_custom_call.1}
  #allocation0 [shape = 'u32[]', space=smem, size = 0x4, offset = 0x4, fixed_abs, tag = 'smem constant byte address 0x4 - core index']
  #allocation1 [shape = 'u32[144,128]{1,0:T(1,128)}', space=vmem, size = 0x12000, scoped, tag = 'internal scratch']
  %s0 = inlined_call_operand.vmem [shape: f32[640,32], index: 0, kind: input, shape index: {}]
  %s1 = inlined_call_operand.vmem [shape: bf16[32,256], index: 1, kind: input, shape index: {}]
  %s2 = inlined_call_operand.vmem [shape: f32[1,256], index: 2, kind: input, shape index: {}]
  %s3 = inlined_call_operand.vmem [shape: bf16[256,128], index: 3, kind: input, shape index: {}]
  %s4 = inlined_call_operand.vmem [shape: f32[1,128], index: 4, kind: input, shape index: {}]
  %s5 = inlined_call_operand.vmem [shape: bf16[128,64], index: 5, kind: input, shape index: {}]
  %s6 = inlined_call_operand.vmem [shape: f32[1,64], index: 6, kind: input, shape index: {}]
  %s7 = inlined_call_operand.vmem [shape: bf16[64,128], index: 7, kind: input, shape index: {}]
  %s8 = inlined_call_operand.vmem [shape: f32[1,128], index: 8, kind: input, shape index: {}]
  %s9 = inlined_call_operand.hbm [shape: f32[2,1,512], index: 9, kind: output, shape index: {}]
  %s10 = sld [smem:[#allocation0]]
  $region69: #{tpu_custom_call.1} parent=0
    _
  %s12 = ssub.s32 1, %s10
  %s13 = scalar_select 0, %s12, %s10
  $region1: #{tpu_custom_call.1} parent=0
    #allocation2 [shape = 'u8[4096]{0}', space=vmem, size = 0x1000, scoped, tag = 'output window, operand 0']
    #allocation3 [shape = 's32[2]{0}', space=sflag, size = 0x8, scoped, tag = 'scoped memory for tpu_custom_call.1']
    %14 = vsyncpa [#allocation3], 0
    %s15 = scalar_lea.sflag [#allocation3], 1
    %16 = vsyncpa %s15, 0
    loop: start=0, step=1, limit=4
    $region2: #{tpu_custom_call.1} parent=1 // loop_pre_header
      _
    $region3: #{tpu_custom_call.1} parent=1 // loop_header
      %s18 = sphi 0, %s22
      %p19 = scmp.ge.s32.totalorder %s18, 4
      %s28 = sphi 0, %s30
      %s31 = sphi 0, %s28
      %s32 = sphi 0, %s31
      %s48 = sphi 0, %s32
      %s52 = sphi 0, %s52
      %s54 = sphi 0, %s52
      %s55 = sphi 0, %s54
      %s69 = sphi 0, %s55
      %s73 = sphi 0, %s73
      %s75 = sphi 0, %s73
      %s76 = sphi 0, %s75
      %s90 = sphi 0, %s76
      %s94 = sphi 0, %s94
      %s96 = sphi 0, %s94
      %s97 = sphi 0, %s96
      %s111 = sphi 0, %s97
      %s115 = sphi 0, %s115
      %s117 = sphi 0, %s115
      %s118 = sphi 0, %s117
      %s132 = sphi 0, %s118
      %s136 = sphi 0, %s136
      %s138 = sphi 0, %s136
      %s139 = sphi 0, %s138
      %s153 = sphi 0, %s139
      %s157 = sphi 0, %s157
      %s159 = sphi 0, %s157
      %s160 = sphi 0, %s159
      %s174 = sphi 0, %s160
      %s178 = sphi 0, %s178
      %s180 = sphi 0, %s178
      %s181 = sphi 0, %s180
      %s195 = sphi 0, %s181
      %s199 = sphi 0, %s199
      %s201 = sphi 0, %s199
      %s202 = sphi 0, %s201
      %s216 = sphi 0, %s202
      %s222 = sphi 0, %s224
      %s225 = sphi 0, %s222
      %s226 = sphi 0, %s225
      %s242 = sphi 0, %s226
    $region4: #{tpu_custom_call.1} parent=1 // loop_header_branch
      %21 = sbr.rel (%p19) target = $region8
    $region5: #{tpu_custom_call.1} parent=1 // loop_body
      %s23 = ssub.s32 %s18, 1
      %s24 = ssub.s32 %s18, 2
      %s25 = sadd.s32 %s18, 1
      %s26 = ssub.s32 %s18, %s25
      %p27 = scmp.eq.s32.totalorder %s26, 0
      %s29 = sadd.s32 %s28, 1
      %s30 = scalar_select %p27, %s28, %s29
      %p33 = pneg %p27
      %p34 = scmp.eq.s32.totalorder %s18, 1
      %p35 = por %p33, %p34
      %p36 = scmp.ne.s32.totalorder %s28, %s31
      %p37 = scmp.eq.s32.totalorder %s18, 0
      %p38 = por %p36, %p37
      %p39 = scmp.ne.s32.totalorder %s28, %s31
      %p40 = scmp.eq.s32.totalorder %s23, 1
      %p41 = por %p39, %p40
      %p42 = scmp.ne.s32.totalorder %s31, %s32
      %p43 = scmp.eq.s32.totalorder %s23, 0
      %p44 = por %p42, %p43
      %p45 = scmp.ne.s32.totalorder %s31, %s32
      %p46 = scmp.eq.s32.totalorder %s24, 1
      %p47 = por %p45, %p46
      %p49 = scmp.ne.s32.totalorder %s32, %s48
      %p50 = scmp.eq.s32.totalorder %s24, 0
      %p51 = por %p49, %p50
      %s53 = sadd.s32 %s52, 1
      %p56 = scmp.eq.s32.totalorder %s18, 1
      %p57 = scmp.ne.s32.totalorder %s52, %s54
      %p58 = scmp.eq.s32.totalorder %s18, 0
      %p59 = por %p57, %p58
      %p60 = scmp.ne.s32.totalorder %s52, %s54
      %p61 = scmp.eq.s32.totalorder %s23, 1
      %p62 = por %p60, %p61
      %p63 = scmp.ne.s32.totalorder %s54, %s55
      %p64 = scmp.eq.s32.totalorder %s23, 0
      %p65 = por %p63, %p64
      %p66 = scmp.ne.s32.totalorder %s54, %s55
      %p67 = scmp.eq.s32.totalorder %s24, 1
      %p68 = por %p66, %p67
      %p70 = scmp.ne.s32.totalorder %s55, %s69
      %p71 = scmp.eq.s32.totalorder %s24, 0
      %p72 = por %p70, %p71
      %s74 = sadd.s32 %s73, 1
      %p77 = scmp.eq.s32.totalorder %s18, 1
      %p78 = scmp.ne.s32.totalorder %s73, %s75
      %p79 = scmp.eq.s32.totalorder %s18, 0
      %p80 = por %p78, %p79
      %p81 = scmp.ne.s32.totalorder %s73, %s75
      %p82 = scmp.eq.s32.totalorder %s23, 1
      %p83 = por %p81, %p82
      %p84 = scmp.ne.s32.totalorder %s75, %s76
      %p85 = scmp.eq.s32.totalorder %s23, 0
      %p86 = por %p84, %p85
      %p87 = scmp.ne.s32.totalorder %s75, %s76
      %p88 = scmp.eq.s32.totalorder %s24, 1
      %p89 = por %p87, %p88
      %p91 = scmp.ne.s32.totalorder %s76, %s90
      %p92 = scmp.eq.s32.totalorder %s24, 0
      %p93 = por %p91, %p92
      %s95 = sadd.s32 %s94, 1
      %p98 = scmp.eq.s32.totalorder %s18, 1
      %p99 = scmp.ne.s32.totalorder %s94, %s96
      %p100 = scmp.eq.s32.totalorder %s18, 0
      %p101 = por %p99, %p100
      %p102 = scmp.ne.s32.totalorder %s94, %s96
      %p103 = scmp.eq.s32.totalorder %s23, 1
      %p104 = por %p102, %p103
      %p105 = scmp.ne.s32.totalorder %s96, %s97
      %p106 = scmp.eq.s32.totalorder %s23, 0
      %p107 = por %p105, %p106
      %p108 = scmp.ne.s32.totalorder %s96, %s97
      %p109 = scmp.eq.s32.totalorder %s24, 1
      %p110 = por %p108, %p109
      %p112 = scmp.ne.s32.totalorder %s97, %s111
      %p113 = scmp.eq.s32.totalorder %s24, 0
      %p114 = por %p112, %p113
      %s116 = sadd.s32 %s115, 1
      %p119 = scmp.eq.s32.totalorder %s18, 1
      %p120 = scmp.ne.s32.totalorder %s115, %s117
      %p121 = scmp.eq.s32.totalorder %s18, 0
      %p122 = por %p120, %p121
      %p123 = scmp.ne.s32.totalorder %s115, %s117
      %p124 = scmp.eq.s32.totalorder %s23, 1
      %p125 = por %p123, %p124
      %p126 = scmp.ne.s32.totalorder %s117, %s118
      %p127 = scmp.eq.s32.totalorder %s23, 0
      %p128 = por %p126, %p127
      %p129 = scmp.ne.s32.totalorder %s117, %s118
      %p130 = scmp.eq.s32.totalorder %s24, 1
      %p131 = por %p129, %p130
      %p133 = scmp.ne.s32.totalorder %s118, %s132
      %p134 = scmp.eq.s32.totalorder %s24, 0
      %p135 = por %p133, %p134
      %s137 = sadd.s32 %s136, 1
      %p140 = scmp.eq.s32.totalorder %s18, 1
      %p141 = scmp.ne.s32.totalorder %s136, %s138
      %p142 = scmp.eq.s32.totalorder %s18, 0
      %p143 = por %p141, %p142
      %p144 = scmp.ne.s32.totalorder %s136, %s138
      %p145 = scmp.eq.s32.totalorder %s23, 1
      %p146 = por %p144, %p145
      %p147 = scmp.ne.s32.totalorder %s138, %s139
      %p148 = scmp.eq.s32.totalorder %s23, 0
      %p149 = por %p147, %p148
      %p150 = scmp.ne.s32.totalorder %s138, %s139
      %p151 = scmp.eq.s32.totalorder %s24, 1
      %p152 = por %p150, %p151
      %p154 = scmp.ne.s32.totalorder %s139, %s153
      %p155 = scmp.eq.s32.totalorder %s24, 0
      %p156 = por %p154, %p155
      %s158 = sadd.s32 %s157, 1
      %p161 = scmp.eq.s32.totalorder %s18, 1
      %p162 = scmp.ne.s32.totalorder %s157, %s159
      %p163 = scmp.eq.s32.totalorder %s18, 0
      %p164 = por %p162, %p163
      %p165 = scmp.ne.s32.totalorder %s157, %s159
      %p166 = scmp.eq.s32.totalorder %s23, 1
      %p167 = por %p165, %p166
      %p168 = scmp.ne.s32.totalorder %s159, %s160
      %p169 = scmp.eq.s32.totalorder %s23, 0
      %p170 = por %p168, %p169
      %p171 = scmp.ne.s32.totalorder %s159, %s160
      %p172 = scmp.eq.s32.totalorder %s24, 1
      %p173 = por %p171, %p172
      %p175 = scmp.ne.s32.totalorder %s160, %s174
      %p176 = scmp.eq.s32.totalorder %s24, 0
      %p177 = por %p175, %p176
      %s179 = sadd.s32 %s178, 1
      %p182 = scmp.eq.s32.totalorder %s18, 1
      %p183 = scmp.ne.s32.totalorder %s178, %s180
      %p184 = scmp.eq.s32.totalorder %s18, 0
      %p185 = por %p183, %p184
      %p186 = scmp.ne.s32.totalorder %s178, %s180
      %p187 = scmp.eq.s32.totalorder %s23, 1
      %p188 = por %p186, %p187
      %p189 = scmp.ne.s32.totalorder %s180, %s181
      %p190 = scmp.eq.s32.totalorder %s23, 0
      %p191 = por %p189, %p190
      %p192 = scmp.ne.s32.totalorder %s180, %s181
      %p193 = scmp.eq.s32.totalorder %s24, 1
      %p194 = por %p192, %p193
      %p196 = scmp.ne.s32.totalorder %s181, %s195
      %p197 = scmp.eq.s32.totalorder %s24, 0
      %p198 = por %p196, %p197
      %s200 = sadd.s32 %s199, 1
      %p203 = scmp.eq.s32.totalorder %s18, 1
      %p204 = scmp.ne.s32.totalorder %s199, %s201
      %p205 = scmp.eq.s32.totalorder %s18, 0
      %p206 = por %p204, %p205
      %p207 = scmp.ne.s32.totalorder %s199, %s201
      %p208 = scmp.eq.s32.totalorder %s23, 1
      %p209 = por %p207, %p208
      %p210 = scmp.ne.s32.totalorder %s201, %s202
      %p211 = scmp.eq.s32.totalorder %s23, 0
      %p212 = por %p210, %p211
      %p213 = scmp.ne.s32.totalorder %s201, %s202
      %p214 = scmp.eq.s32.totalorder %s24, 1
      %p215 = por %p213, %p214
      %p217 = scmp.ne.s32.totalorder %s202, %s216
      %p218 = scmp.eq.s32.totalorder %s24, 0
      %p219 = por %p217, %p218
      %s220 = ssub.s32 %s18, %s25
      %p221 = scmp.eq.s32.totalorder %s220, 0
      %s223 = sadd.s32 %s222, 1
      %s224 = scalar_select %p221, %s222, %s223
      %p227 = pneg %p221
      %p228 = scmp.eq.s32.totalorder %s18, 1
      %p229 = por %p227, %p228
      %p230 = scmp.ne.s32.totalorder %s222, %s225
      %p231 = scmp.eq.s32.totalorder %s18, 0
      %p232 = por %p230, %p231
      %p233 = scmp.ne.s32.totalorder %s222, %s225
      %p234 = scmp.eq.s32.totalorder %s23, 1
      %p235 = por %p233, %p234
      %p236 = scmp.ne.s32.totalorder %s225, %s226
      %p237 = scmp.eq.s32.totalorder %s23, 0
      %p238 = por %p236, %p237
      %p239 = scmp.ne.s32.totalorder %s225, %s226
      %p240 = scmp.eq.s32.totalorder %s24, 1
      %p241 = por %p239, %p240
      %p243 = scmp.ne.s32.totalorder %s226, %s242
      %p244 = scmp.eq.s32.totalorder %s24, 0
      %p245 = por %p243, %p244
      %p246 = scmp.le.s32.totalorder 1, %s18
      %p247 = scmp.lt.s32.totalorder %s18, 3
      %p248 = pnand %p246, %p247
      %p249 = pneg %p248
      // Predicated region
      $region9: #{tpu_custom_call.1} parent=5 // pred_check
        _
      $region10: #{tpu_custom_call.1} parent=5 // pred_check_branch
        %251 = sbr.rel (%p248) target = $region12
      $region11: #{tpu_custom_call.1} parent=5 // pred_region
        %s252 = ssub.s32 %s18, 1
        // Predicated region
        $region13: #{tpu_custom_call.1} parent=11 // pred_check
          %p253 = pneg %p65
        $region14: #{tpu_custom_call.1} parent=11 // pred_check_branch
          %255 = sbr.rel (%p253) target = $region16
        $region15: #{tpu_custom_call.1} parent=11 // pred_region
          _
        $region16: #{tpu_custom_call.1} parent=11 // pred_fallthru
          _
        // Predicated region
        $region17: #{tpu_custom_call.1} parent=11 // pred_check
          %p256 = pneg %p86
        $region18: #{tpu_custom_call.1} parent=11 // pred_check_branch
          %258 = sbr.rel (%p256) target = $region20
        $region19: #{tpu_custom_call.1} parent=11 // pred_region
          _
        $region20: #{tpu_custom_call.1} parent=11 // pred_fallthru
          _
        // Predicated region
        $region21: #{tpu_custom_call.1} parent=11 // pred_check
          %p259 = pneg %p107
        $region22: #{tpu_custom_call.1} parent=11 // pred_check_branch
          %261 = sbr.rel (%p259) target = $region24
        $region23: #{tpu_custom_call.1} parent=11 // pred_region
          _
        $region24: #{tpu_custom_call.1} parent=11 // pred_fallthru
          _
        // Predicated region
        $region25: #{tpu_custom_call.1} parent=11 // pred_check
          %p262 = pneg %p128
        $region26: #{tpu_custom_call.1} parent=11 // pred_check_branch
          %264 = sbr.rel (%p262) target = $region28
        $region27: #{tpu_custom_call.1} parent=11 // pred_region
          _
        $region28: #{tpu_custom_call.1} parent=11 // pred_fallthru
          _
        // Predicated region
        $region29: #{tpu_custom_call.1} parent=11 // pred_check
          %p265 = pneg %p149
        $region30: #{tpu_custom_call.1} parent=11 // pred_check_branch
          %267 = sbr.rel (%p265) target = $region32
        $region31: #{tpu_custom_call.1} parent=11 // pred_region
          _
        $region32: #{tpu_custom_call.1} parent=11 // pred_fallthru
          _
        // Predicated region
        $region33: #{tpu_custom_call.1} parent=11 // pred_check
          %p268 = pneg %p170
        $region34: #{tpu_custom_call.1} parent=11 // pred_check_branch
          %270 = sbr.rel (%p268) target = $region36
        $region35: #{tpu_custom_call.1} parent=11 // pred_region
          _
        $region36: #{tpu_custom_call.1} parent=11 // pred_fallthru
          _
        // Predicated region
        $region37: #{tpu_custom_call.1} parent=11 // pred_check
          %p271 = pneg %p191
        $region38: #{tpu_custom_call.1} parent=11 // pred_check_branch
          %273 = sbr.rel (%p271) target = $region40
        $region39: #{tpu_custom_call.1} parent=11 // pred_region
          _
        $region40: #{tpu_custom_call.1} parent=11 // pred_fallthru
          _
        // Predicated region
        $region41: #{tpu_custom_call.1} parent=11 // pred_check
          %p274 = pneg %p212
        $region42: #{tpu_custom_call.1} parent=11 // pred_check_branch
          %276 = sbr.rel (%p274) target = $region44
        $region43: #{tpu_custom_call.1} parent=11 // pred_region
          _
        $region44: #{tpu_custom_call.1} parent=11 // pred_fallthru
          _
      $region12: #{tpu_custom_call.1} parent=5 // pred_fallthru
        _
      %p277 = scmp.lt.s32.totalorder %s18, 2
      // Predicated region
      $region45: #{tpu_custom_call.1} parent=5 // pred_check
        %p278 = pneg %p277
      $region46: #{tpu_custom_call.1} parent=5 // pred_check_branch
        %280 = sbr.rel (%p278) target = $region48
      $region47: #{tpu_custom_call.1} parent=5 // pred_region
        // Predicated region
        $region49: #{tpu_custom_call.1} parent=47 // pred_check
          %p281 = pneg %p38
        $region50: #{tpu_custom_call.1} parent=47 // pred_check_branch
          %283 = sbr.rel (%p281) target = $region52
        $region51: #{tpu_custom_call.1} parent=47 // pred_region
          %s284 = smul.u32 64, %s18
          %s285 = ssub.s32 80, %s284
          %p286 = scmp.lt.s32.totalorder %s285, 64
          %s287 = scalar_select %p286, %s285, 64
          %s288 = smul.u32 128, %s287
          %p289 = scmp.lt.s32.totalorder %s284, 79
          %s290 = scalar_select %p289, %s284, 79
          %s291 = smul.addr %s290, 8
          %s292 = scalar_lea.vmem %s0, %s291
          %s293 = smul.u32 64, %s18
          %s294 = ssub.s32 80, %s293
          %p295 = scmp.lt.s32.totalorder %s294, 64
          %s296 = scalar_select %p295, %s294, 64
          %s297 = smul.u32 128, %s296
        $region52: #{tpu_custom_call.1} parent=47 // pred_fallthru
          _
      $region48: #{tpu_custom_call.1} parent=5 // pred_fallthru
        _
      %p298 = scmp.le.s32.totalorder 1, %s18
      %p299 = scmp.lt.s32.totalorder %s18, 3
      %p300 = pnand %p298, %p299
      %p301 = pneg %p300
      // Predicated region
      $region53: #{tpu_custom_call.1} parent=5 // pred_check
        _
      $region54: #{tpu_custom_call.1} parent=5 // pred_check_branch
        %303 = sbr.rel (%p300) target = $region56
      $region55: #{tpu_custom_call.1} parent=5 // pred_region
        %s304 = ssub.s32 %s18, 1
        %s305 = smul.u32 64, %s23
        %s306 = ssub.s32 80, %s305
        %p307 = scmp.lt.s32.totalorder %s306, 64
        %s308 = scalar_select %p307, %s306, 64
        %s309 = smul.u32 128, %s308
        %p310 = scmp.lt.s32.totalorder %s305, 79
        %s311 = scalar_select %p310, %s305, 79
        %s312 = smul.addr %s311, 8
        %s313 = scalar_lea.vmem %s0, %s312
        %p314 = pneg %p44
        %p315 = pneg %p41
        %p316 = pneg %p65
        %p317 = pneg %p62
        %p318 = pneg %p86
        %p319 = pneg %p83
        %p320 = pneg %p107
        %p321 = pneg %p104
        %p322 = pneg %p128
        %p323 = pneg %p125
        %p324 = pneg %p149
        %p325 = pneg %p146
        %p326 = pneg %p170
        %p327 = pneg %p167
        %p328 = pneg %p191
        %p329 = pneg %p188
        %p330 = pneg %p212
        %p331 = pneg %p209
        %p332 = pneg %p238
        %p333 = pneg %p235
        %s334 = sand.u32 %s225, 1
        %s335 = scalar_lea.sflag [#allocation3], %s334
        %s336 = sand.u32 %s225, 1
        %s337 = smul.addr %s336, 4
        %s338 = scalar_lea.vmem [#allocation2], %s337
        %s339 = smul.u32 64, %s23
        %s340 = ssub.s32 80, %s339
        %p341 = scmp.lt.s32.totalorder %s340, 64
        %s342 = scalar_select %p341, %s340, 64
        %s343 = smul.u32 128, %s342
        %p344 = scmp.lt.s32.totalorder %s339, 79
        %s345 = scalar_select %p344, %s339, 79
        %s346 = smul.addr %s345, 8
        %s347 = scalar_lea.vmem %s0, %s346
        %s348 = smul.u32 64, %s23
        %s349 = ssub.s32 80, %s348
        %p350 = scmp.lt.s32.totalorder %s349, 64
        %s351 = scalar_select %p350, %s349, 64
        %s352 = smul.u32 128, %s351
        %v354 = vld [vmem:[%s347] sm:$0xff]
        %v355 = vld [vmem:[%s347 + $0x8] sm:$0xff]
        %v356 = vld [vmem:[%s347 + $0x10] sm:$0xff]
        %v357 = vld [vmem:[%s347 + $0x18] sm:$0xff]
        %v358 = vld [vmem:[%s347 + $0x20] sm:$0xff]
        %v359 = vld [vmem:[%s347 + $0x28] sm:$0xff]
        %v360 = vld [vmem:[%s347 + $0x30] sm:$0xff]
        %v361 = vld [vmem:[%s347 + $0x38] sm:$0xff]
        %v362 = vld [vmem:[%s347 + $0x40] sm:$0xff]
        %v363 = vld [vmem:[%s347 + $0x48] sm:$0xff]
        %v364 = vld [vmem:[%s347 + $0x50] sm:$0xff]
        %v365 = vld [vmem:[%s347 + $0x58] sm:$0xff]
        %v366 = vld [vmem:[%s347 + $0x60] sm:$0xff]
        %v367 = vld [vmem:[%s347 + $0x68] sm:$0xff]
        %v368 = vld [vmem:[%s347 + $0x70] sm:$0xff]
        %v369 = vld [vmem:[%s347 + $0x78] sm:$0xff]
        %v370 = vld [vmem:[%s347 + $0x80] sm:$0xff]
        %v371 = vld [vmem:[%s347 + $0x88] sm:$0xff]
        %v372 = vld [vmem:[%s347 + $0x90] sm:$0xff]
        %v373 = vld [vmem:[%s347 + $0x98] sm:$0xff]
        %v374 = vld [vmem:[%s347 + $0xa0] sm:$0xff]
        %v375 = vld [vmem:[%s347 + $0xa8] sm:$0xff]
        %v376 = vld [vmem:[%s347 + $0xb0] sm:$0xff]
        %v377 = vld [vmem:[%s347 + $0xb8] sm:$0xff]
        %v378 = vld [vmem:[%s347 + $0xc0] sm:$0xff]
        %v379 = vld [vmem:[%s347 + $0xc8] sm:$0xff]
        %v380 = vld [vmem:[%s347 + $0xd0] sm:$0xff]
        %v381 = vld [vmem:[%s347 + $0xd8] sm:$0xff]
        %v382 = vld [vmem:[%s347 + $0xe0] sm:$0xff]
        %v383 = vld [vmem:[%s347 + $0xe8] sm:$0xff]
        %v384 = vld [vmem:[%s347 + $0xf0] sm:$0xff]
        %v385 = vld [vmem:[%s347 + $0xf8] sm:$0xff]
        %v386 = vld [vmem:[%s347 + $0x100] sm:$0xff]
        %v387 = vld [vmem:[%s347 + $0x108] sm:$0xff]
        %v388 = vld [vmem:[%s347 + $0x110] sm:$0xff]
        %v389 = vld [vmem:[%s347 + $0x118] sm:$0xff]
        %v390 = vld [vmem:[%s347 + $0x120] sm:$0xff]
        %v391 = vld [vmem:[%s347 + $0x128] sm:$0xff]
        %v392 = vld [vmem:[%s347 + $0x130] sm:$0xff]
        %v393 = vld [vmem:[%s347 + $0x138] sm:$0xff]
        %v394 = vld [vmem:[%s347 + $0x140] sm:$0xff]
        %v395 = vld [vmem:[%s347 + $0x148] sm:$0xff]
        %v396 = vld [vmem:[%s347 + $0x150] sm:$0xff]
        %v397 = vld [vmem:[%s347 + $0x158] sm:$0xff]
        %v398 = vld [vmem:[%s347 + $0x160] sm:$0xff]
        %v399 = vld [vmem:[%s347 + $0x168] sm:$0xff]
        %v400 = vld [vmem:[%s347 + $0x170] sm:$0xff]
        %v401 = vld [vmem:[%s347 + $0x178] sm:$0xff]
        %v402 = vld [vmem:[%s347 + $0x180] sm:$0xff]
        %v403 = vld [vmem:[%s347 + $0x188] sm:$0xff]
        %v404 = vld [vmem:[%s347 + $0x190] sm:$0xff]
        %v405 = vld [vmem:[%s347 + $0x198] sm:$0xff]
        %v406 = vld [vmem:[%s347 + $0x1a0] sm:$0xff]
        %v407 = vld [vmem:[%s347 + $0x1a8] sm:$0xff]
        %v408 = vld [vmem:[%s347 + $0x1b0] sm:$0xff]
        %v409 = vld [vmem:[%s347 + $0x1b8] sm:$0xff]
        %v410 = vld [vmem:[%s347 + $0x1c0] sm:$0xff]
        %v411 = vld [vmem:[%s347 + $0x1c8] sm:$0xff]
        %v412 = vld [vmem:[%s347 + $0x1d0] sm:$0xff]
        %v413 = vld [vmem:[%s347 + $0x1d8] sm:$0xff]
        %v414 = vld [vmem:[%s347 + $0x1e0] sm:$0xff]
        %v415 = vld [vmem:[%s347 + $0x1e8] sm:$0xff]
        %v416 = vld [vmem:[%s347 + $0x1f0] sm:$0xff]
        %v417 = vld [vmem:[%s347 + $0x1f8] sm:$0xff]
        %v418 = vpack.c.bf16 %v355, %v354
        %v419 = vpack.c.bf16 %v357, %v356
        %v420 = vpack.c.bf16 %v359, %v358
        %v421 = vpack.c.bf16 %v361, %v360
        %v422 = vpack.c.bf16 %v363, %v362
        %v423 = vpack.c.bf16 %v365, %v364
        %v424 = vpack.c.bf16 %v367, %v366
        %v425 = vpack.c.bf16 %v369, %v368
        %v426 = vpack.c.bf16 %v371, %v370
        %v427 = vpack.c.bf16 %v373, %v372
        %v428 = vpack.c.bf16 %v375, %v374
        %v429 = vpack.c.bf16 %v377, %v376
        %v430 = vpack.c.bf16 %v379, %v378
        %v431 = vpack.c.bf16 %v381, %v380
        %v432 = vpack.c.bf16 %v383, %v382
        %v433 = vpack.c.bf16 %v385, %v384
        %v434 = vpack.c.bf16 %v387, %v386
        %v435 = vpack.c.bf16 %v389, %v388
        %v436 = vpack.c.bf16 %v391, %v390
        %v437 = vpack.c.bf16 %v393, %v392
        %v438 = vpack.c.bf16 %v395, %v394
        %v439 = vpack.c.bf16 %v397, %v396
        %v440 = vpack.c.bf16 %v399, %v398
        %v441 = vpack.c.bf16 %v401, %v400
        %v442 = vpack.c.bf16 %v403, %v402
        %v443 = vpack.c.bf16 %v405, %v404
        %v444 = vpack.c.bf16 %v407, %v406
        %v445 = vpack.c.bf16 %v409, %v408
        %v446 = vpack.c.bf16 %v411, %v410
        %v447 = vpack.c.bf16 %v413, %v412
        %v448 = vpack.c.bf16 %v415, %v414
        %v449 = vpack.c.bf16 %v417, %v416
        %v450 = vld [vmem:[%s1] sm:$0xff]
        %v451 = vld [vmem:[%s1 + $0x8] sm:$0xff]
        %v452 = vld [vmem:[%s1 + $0x10] sm:$0xff]
        %v453 = vld [vmem:[%s1 + $0x18] sm:$0xff]
        %v454 = vld [vmem:[%s2] sm:$0x3]
        %v456 = vlaneseq
        %v457 = vshrl.u32 %v456, 7
        %v458 = vsub.s32 0, %v457
        %v459 = vrot.slane %v454, %v458
        %v460 = vlaneseq
        %v461 = vshrl.u32 %v460, 7
        %v462 = vsub.s32 1, %v461
        %v463 = vrot.slane %v454, %v462
        %v470 = vunpack.c.l.b16 %v450
        %v471 = vunpack.c.h.b16 %v450
        %v472 = vunpack.c.l.b16 %v451
        %v473 = vunpack.c.h.b16 %v451
        %v474 = vunpack.c.l.b16 %v452
        %v475 = vunpack.c.h.b16 %v452
        %v476 = vunpack.c.l.b16 %v453
        %v477 = vunpack.c.h.b16 %v453
        %v478 = vpack.c.b16 %v472, %v470
        %v479 = vpack.c.b16 %v473, %v471
        %v480 = vpack.c.b16 %v476, %v474
        %v481 = vpack.c.b16 %v477, %v475
        %vm486 = vcmask 261120
        %v488 = vsel %vm486, %v418, 0
        %v491 = vsel %vm486, %v419, 0
        %v494 = vsel %vm486, %v420, 0
        %v497 = vsel %vm486, %v421, 0
        %v500 = vsel %vm486, %v422, 0
        %v503 = vsel %vm486, %v423, 0
        %v506 = vsel %vm486, %v424, 0
        %v509 = vsel %vm486, %v425, 0
        %v512 = vsel %vm486, %v426, 0
        %v515 = vsel %vm486, %v427, 0
        %v518 = vsel %vm486, %v428, 0
        %v521 = vsel %vm486, %v429, 0
        %v524 = vsel %vm486, %v430, 0
        %v527 = vsel %vm486, %v431, 0
        %v530 = vsel %vm486, %v432, 0
        %v533 = vsel %vm486, %v433, 0
        %v536 = vsel %vm486, %v434, 0
        %v539 = vsel %vm486, %v435, 0
        %v542 = vsel %vm486, %v436, 0
        %v545 = vsel %vm486, %v437, 0
        %v548 = vsel %vm486, %v438, 0
        %v551 = vsel %vm486, %v439, 0
        %v554 = vsel %vm486, %v440, 0
        %v557 = vsel %vm486, %v441, 0
        %v560 = vsel %vm486, %v442, 0
        %v563 = vsel %vm486, %v443, 0
        %v566 = vsel %vm486, %v444, 0
        %v569 = vsel %vm486, %v445, 0
        %v572 = vsel %vm486, %v446, 0
        %v575 = vsel %vm486, %v447, 0
        %v578 = vsel %vm486, %v448, 0
        %v581 = vsel %vm486, %v449, 0
        %583 = vmatprep.subr.bf16.mxu0 %v479
        %584 = vmatpush1.bf16.msra.mxu0 %v478
        %585 = vmatprep.subr.bf16.mxu0 %v481
        %586 = vmatpush1.bf16.msra.mxu0 %v480
        %587 = vmatprep.subr.bf16.mxu0 0
        %588 = vmatpush1.bf16.msra.mxu0 0
        %589 = vmatprep.subr.bf16.mxu0 0
        %590 = vmatpush1.bf16.msra.mxu0 0
        %591 = vmatprep.subr.bf16.mxu0 0
        %592 = vmatpush1.bf16.msra.mxu0 0
        %593 = vmatprep.subr.bf16.mxu0 0
        %594 = vmatpush1.bf16.msra.mxu0 0
        %595 = vmatprep.subr.bf16.mxu0 0
        %596 = vmatpush1.bf16.msra.mxu0 0
        %597 = vmatprep.subr.bf16.mxu0 0
        %598 = vmatpush1.bf16.msra.mxu0 0
        %599 = vmatprep.subr.bf16.mxu0 0
        %600 = vmatpush1.bf16.msra.mxu0 0
        %601 = vmatprep.subr.bf16.mxu0 0
        %602 = vmatpush1.bf16.msra.mxu0 0
        %603 = vmatprep.subr.bf16.mxu0 0
        %604 = vmatpush1.bf16.msra.mxu0 0
        %605 = vmatprep.subr.bf16.mxu0 0
        %606 = vmatpush1.bf16.msra.mxu0 0
        %607 = vmatprep.subr.bf16.mxu0 0
        %608 = vmatpush1.bf16.msra.mxu0 0
        %609 = vmatprep.subr.bf16.mxu0 0
        %610 = vmatpush1.bf16.msra.mxu0 0
        %611 = vmatprep.subr.bf16.mxu0 0
        %612 = vmatpush1.bf16.msra.mxu0 0
        %613 = vmatprep.subr.bf16.mxu0 0
        %614 = vmatpush1.bf16.msra.mxu0 0
        %615 = vmatprep.mubr.bf16.mxu0 0
        %616 = vmatmul.mubr.bf16.gmra.mrb[0].mxu0 %v488
        %v617 = vpop.f32.mrb[0].mxu0
        %v618 = vadd.f32 %v459, %v617
        %v619 = vpop.f32.mrb[0].mxu0
        %v620 = vadd.f32 %v463, %v619
        %v621 = vpop.f32.mrb[0].mxu0
        %v622 = vadd.f32 %v459, %v621
        %v623 = vpop.f32.mrb[0].mxu0
        %v624 = vadd.f32 %v463, %v623
        %625 = vmatprep.mubr.bf16.mxu0 0
        %626 = vmatmul.mubr.bf16.gmra.mrb[0].mxu0 %v491
        %v627 = vpop.f32.mrb[0].mxu0
        %v628 = vadd.f32 %v459, %v627
        %v629 = vpop.f32.mrb[0].mxu0
        %v630 = vadd.f32 %v463, %v629
        %v631 = vpop.f32.mrb[0].mxu0
        %v632 = vadd.f32 %v459, %v631
        %v633 = vpop.f32.mrb[0].mxu0
        %v634 = vadd.f32 %v463, %v633
        %635 = vmatprep.mubr.bf16.mxu0 0
        %636 = vmatmul.mubr.bf16.gmra.mrb[0].mxu0 %v494
        %v637 = vpop.f32.mrb[0].mxu0
        %v638 = vadd.f32 %v459, %v637
        %v639 = vpop.f32.mrb[0].mxu0
        %v640 = vadd.f32 %v463, %v639
        %v641 = vpop.f32.mrb[0].mxu0
        %v642 = vadd.f32 %v459, %v641
        %v643 = vpop.f32.mrb[0].mxu0
        %v644 = vadd.f32 %v463, %v643
        %645 = vmatprep.mubr.bf16.mxu0 0
        %646 = vmatmul.mubr.bf16.gmra.mrb[0].mxu0 %v497
        %v647 = vpop.f32.mrb[0].mxu0
        %v648 = vadd.f32 %v459, %v647
        %v649 = vpop.f32.mrb[0].mxu0
        %v650 = vadd.f32 %v463, %v649
        %v651 = vpop.f32.mrb[0].mxu0
        %v652 = vadd.f32 %v459, %v651
        %v653 = vpop.f32.mrb[0].mxu0
        %v654 = vadd.f32 %v463, %v653
        %655 = vmatprep.mubr.bf16.mxu0 0
        %656 = vmatmul.mubr.bf16.gmra.mrb[0].mxu0 %v500
        %v657 = vpop.f32.mrb[0].mxu0
        %v658 = vadd.f32 %v459, %v657
        %v659 = vpop.f32.mrb[0].mxu0
        %v660 = vadd.f32 %v463, %v659
        %v661 = vpop.f32.mrb[0].mxu0
        %v662 = vadd.f32 %v459, %v661
        %v663 = vpop.f32.mrb[0].mxu0
        %v664 = vadd.f32 %v463, %v663
        %665 = vmatprep.mubr.bf16.mxu0 0
        %666 = vmatmul.mubr.bf16.gmra.mrb[0].mxu0 %v503
        %v667 = vpop.f32.mrb[0].mxu0
        %v668 = vadd.f32 %v459, %v667
        %v669 = vpop.f32.mrb[0].mxu0
        %v670 = vadd.f32 %v463, %v669
        %v671 = vpop.f32.mrb[0].mxu0
        %v672 = vadd.f32 %v459, %v671
        %v673 = vpop.f32.mrb[0].mxu0
        %v674 = vadd.f32 %v463, %v673
        %675 = vmatprep.mubr.bf16.mxu0 0
        %676 = vmatmul.mubr.bf16.gmra.mrb[0].mxu0 %v506
        %v677 = vpop.f32.mrb[0].mxu0
        %v678 = vadd.f32 %v459, %v677
        %v679 = vpop.f32.mrb[0].mxu0
        %v680 = vadd.f32 %v463, %v679
        %v681 = vpop.f32.mrb[0].mxu0
        %v682 = vadd.f32 %v459, %v681
        %v683 = vpop.f32.mrb[0].mxu0
        %v684 = vadd.f32 %v463, %v683
        %685 = vmatprep.mubr.bf16.mxu0 0
        %686 = vmatmul.mubr.bf16.gmra.mrb[0].mxu0 %v509
        %v687 = vpop.f32.mrb[0].mxu0
        %v688 = vadd.f32 %v459, %v687
        %v689 = vpop.f32.mrb[0].mxu0
        %v690 = vadd.f32 %v463, %v689
        %v691 = vpop.f32.mrb[0].mxu0
        %v692 = vadd.f32 %v459, %v691
        %v693 = vpop.f32.mrb[0].mxu0
        %v694 = vadd.f32 %v463, %v693
        %695 = vmatprep.mubr.bf16.mxu0 0
        %696 = vmatmul.mubr.bf16.gmra.mrb[0].mxu0 %v512
        %v697 = vpop.f32.mrb[0].mxu0
        %v698 = vadd.f32 %v459, %v697
        %v699 = vpop.f32.mrb[0].mxu0
        %v700 = vadd.f32 %v463, %v699
        %v701 = vpop.f32.mrb[0].mxu0
        %v702 = vadd.f32 %v459, %v701
        %v703 = vpop.f32.mrb[0].mxu0
        %v704 = vadd.f32 %v463, %v703
        %705 = vmatprep.mubr.bf16.mxu0 0
        %706 = vmatmul.mubr.bf16.gmra.mrb[0].mxu0 %v515
        %v707 = vpop.f32.mrb[0].mxu0
        %v708 = vadd.f32 %v459, %v707
        %v709 = vpop.f32.mrb[0].mxu0
        %v710 = vadd.f32 %v463, %v709
        %v711 = vpop.f32.mrb[0].mxu0
        %v712 = vadd.f32 %v459, %v711
        %v713 = vpop.f32.mrb[0].mxu0
        %v714 = vadd.f32 %v463, %v713
        %715 = vmatprep.mubr.bf16.mxu0 0
        %716 = vmatmul.mubr.bf16.gmra.mrb[0].mxu0 %v518
        %v717 = vpop.f32.mrb[0].mxu0
        %v718 = vadd.f32 %v459, %v717
        %v719 = vpop.f32.mrb[0].mxu0
        %v720 = vadd.f32 %v463, %v719
        %v721 = vpop.f32.mrb[0].mxu0
        %v722 = vadd.f32 %v459, %v721
        %v723 = vpop.f32.mrb[0].mxu0
        %v724 = vadd.f32 %v463, %v723
        %725 = vmatprep.mubr.bf16.mxu0 0
        %726 = vmatmul.mubr.bf16.gmra.mrb[0].mxu0 %v521
        %v727 = vpop.f32.mrb[0].mxu0
        %v728 = vadd.f32 %v459, %v727
        %v729 = vpop.f32.mrb[0].mxu0
        %v730 = vadd.f32 %v463, %v729
        %v731 = vpop.f32.mrb[0].mxu0
        %v732 = vadd.f32 %v459, %v731
        %v733 = vpop.f32.mrb[0].mxu0
        %v734 = vadd.f32 %v463, %v733
        %735 = vmatprep.mubr.bf16.mxu0 0
        %736 = vmatmul.mubr.bf16.gmra.mrb[0].mxu0 %v524
        %v737 = vpop.f32.mrb[0].mxu0
        %v738 = vadd.f32 %v459, %v737
        %v739 = vpop.f32.mrb[0].mxu0
        %v740 = vadd.f32 %v463, %v739
        %v741 = vpop.f32.mrb[0].mxu0
        %v742 = vadd.f32 %v459, %v741
        %v743 = vpop.f32.mrb[0].mxu0
        %v744 = vadd.f32 %v463, %v743
        %745 = vmatprep.mubr.bf16.mxu0 0
        %746 = vmatmul.mubr.bf16.gmra.mrb[0].mxu0 %v527
        %v747 = vpop.f32.mrb[0].mxu0
        %v748 = vadd.f32 %v459, %v747
        %v749 = vpop.f32.mrb[0].mxu0
        %v750 = vadd.f32 %v463, %v749
        %v751 = vpop.f32.mrb[0].mxu0
        %v752 = vadd.f32 %v459, %v751
        %v753 = vpop.f32.mrb[0].mxu0
        %v754 = vadd.f32 %v463, %v753
        %755 = vmatprep.mubr.bf16.mxu0 0
        %756 = vmatmul.mubr.bf16.gmra.mrb[0].mxu0 %v530
        %v757 = vpop.f32.mrb[0].mxu0
        %v758 = vadd.f32 %v459, %v757
        %v759 = vpop.f32.mrb[0].mxu0
        %v760 = vadd.f32 %v463, %v759
        %v761 = vpop.f32.mrb[0].mxu0
        %v762 = vadd.f32 %v459, %v761
        %v763 = vpop.f32.mrb[0].mxu0
        %v764 = vadd.f32 %v463, %v763
        %765 = vmatprep.mubr.bf16.mxu0 0
        %766 = vmatmul.mubr.bf16.gmra.mrb[0].mxu0 %v533
        %v767 = vpop.f32.mrb[0].mxu0
        %v768 = vadd.f32 %v459, %v767
        %v769 = vpop.f32.mrb[0].mxu0
        %v770 = vadd.f32 %v463, %v769
        %v771 = vpop.f32.mrb[0].mxu0
        %v772 = vadd.f32 %v459, %v771
        %v773 = vpop.f32.mrb[0].mxu0
        %v774 = vadd.f32 %v463, %v773
        %775 = vmatprep.mubr.bf16.mxu0 0
        %776 = vmatmul.mubr.bf16.gmra.mrb[0].mxu0 %v536
        %v777 = vpop.f32.mrb[0].mxu0
        %v778 = vadd.f32 %v459, %v777
        %v779 = vpop.f32.mrb[0].mxu0
        %v780 = vadd.f32 %v463, %v779
        %v781 = vpop.f32.mrb[0].mxu0
        %v782 = vadd.f32 %v459, %v781
        %v783 = vpop.f32.mrb[0].mxu0
        %v784 = vadd.f32 %v463, %v783
        %785 = vmatprep.mubr.bf16.mxu0 0
        %786 = vmatmul.mubr.bf16.gmra.mrb[0].mxu0 %v539
        %v787 = vpop.f32.mrb[0].mxu0
        %v788 = vadd.f32 %v459, %v787
        %v789 = vpop.f32.mrb[0].mxu0
        %v790 = vadd.f32 %v463, %v789
        %v791 = vpop.f32.mrb[0].mxu0
        %v792 = vadd.f32 %v459, %v791
        %v793 = vpop.f32.mrb[0].mxu0
        %v794 = vadd.f32 %v463, %v793
        %795 = vmatprep.mubr.bf16.mxu0 0
        %796 = vmatmul.mubr.bf16.gmra.mrb[0].mxu0 %v542
        %v797 = vpop.f32.mrb[0].mxu0
        %v798 = vadd.f32 %v459, %v797
        %v799 = vpop.f32.mrb[0].mxu0
        %v800 = vadd.f32 %v463, %v799
        %v801 = vpop.f32.mrb[0].mxu0
        %v802 = vadd.f32 %v459, %v801
        %v803 = vpop.f32.mrb[0].mxu0
        %v804 = vadd.f32 %v463, %v803
        %805 = vmatprep.mubr.bf16.mxu0 0
        %806 = vmatmul.mubr.bf16.gmra.mrb[0].mxu0 %v545
        %v807 = vpop.f32.mrb[0].mxu0
        %v808 = vadd.f32 %v459, %v807
        %v809 = vpop.f32.mrb[0].mxu0
        %v810 = vadd.f32 %v463, %v809
        %v811 = vpop.f32.mrb[0].mxu0
        %v812 = vadd.f32 %v459, %v811
        %v813 = vpop.f32.mrb[0].mxu0
        %v814 = vadd.f32 %v463, %v813
        %815 = vmatprep.mubr.bf16.mxu0 0
        %816 = vmatmul.mubr.bf16.gmra.mrb[0].mxu0 %v548
        %v817 = vpop.f32.mrb[0].mxu0
        %v818 = vadd.f32 %v459, %v817
        %v819 = vpop.f32.mrb[0].mxu0
        %v820 = vadd.f32 %v463, %v819
        %v821 = vpop.f32.mrb[0].mxu0
        %v822 = vadd.f32 %v459, %v821
        %v823 = vpop.f32.mrb[0].mxu0
        %v824 = vadd.f32 %v463, %v823
        %825 = vmatprep.mubr.bf16.mxu0 0
        %826 = vmatmul.mubr.bf16.gmra.mrb[0].mxu0 %v551
        %v827 = vpop.f32.mrb[0].mxu0
        %v828 = vadd.f32 %v459, %v827
        %v829 = vpop.f32.mrb[0].mxu0
        %v830 = vadd.f32 %v463, %v829
        %v831 = vpop.f32.mrb[0].mxu0
        %v832 = vadd.f32 %v459, %v831
        %v833 = vpop.f32.mrb[0].mxu0
        %v834 = vadd.f32 %v463, %v833
        %835 = vmatprep.mubr.bf16.mxu0 0
        %836 = vmatmul.mubr.bf16.gmra.mrb[0].mxu0 %v554
        %v837 = vpop.f32.mrb[0].mxu0
        %v838 = vadd.f32 %v459, %v837
        %v839 = vpop.f32.mrb[0].mxu0
        %v840 = vadd.f32 %v463, %v839
        %v841 = vpop.f32.mrb[0].mxu0
        %v842 = vadd.f32 %v459, %v841
        %v843 = vpop.f32.mrb[0].mxu0
        %v844 = vadd.f32 %v463, %v843
        %845 = vmatprep.mubr.bf16.mxu0 0
        %846 = vmatmul.mubr.bf16.gmra.mrb[0].mxu0 %v557
        %v847 = vpop.f32.mrb[0].mxu0
        %v848 = vadd.f32 %v459, %v847
        %v849 = vpop.f32.mrb[0].mxu0
        %v850 = vadd.f32 %v463, %v849
        %v851 = vpop.f32.mrb[0].mxu0
        %v852 = vadd.f32 %v459, %v851
        %v853 = vpop.f32.mrb[0].mxu0
        %v854 = vadd.f32 %v463, %v853
        %855 = vmatprep.mubr.bf16.mxu0 0
        %856 = vmatmul.mubr.bf16.gmra.mrb[0].mxu0 %v560
        %v857 = vpop.f32.mrb[0].mxu0
        %v858 = vadd.f32 %v459, %v857
        %v859 = vpop.f32.mrb[0].mxu0
        %v860 = vadd.f32 %v463, %v859
        %v861 = vpop.f32.mrb[0].mxu0
        %v862 = vadd.f32 %v459, %v861
        %v863 = vpop.f32.mrb[0].mxu0
        %v864 = vadd.f32 %v463, %v863
        %865 = vmatprep.mubr.bf16.mxu0 0
        %866 = vmatmul.mubr.bf16.gmra.mrb[0].mxu0 %v563
        %v867 = vpop.f32.mrb[0].mxu0
        %v868 = vadd.f32 %v459, %v867
        %v869 = vpop.f32.mrb[0].mxu0
        %v870 = vadd.f32 %v463, %v869
        %v871 = vpop.f32.mrb[0].mxu0
        %v872 = vadd.f32 %v459, %v871
        %v873 = vpop.f32.mrb[0].mxu0
        %v874 = vadd.f32 %v463, %v873
        %875 = vmatprep.mubr.bf16.mxu0 0
        %876 = vmatmul.mubr.bf16.gmra.mrb[0].mxu0 %v566
        %v877 = vpop.f32.mrb[0].mxu0
        %v878 = vadd.f32 %v459, %v877
        %v879 = vpop.f32.mrb[0].mxu0
        %v880 = vadd.f32 %v463, %v879
        %v881 = vpop.f32.mrb[0].mxu0
        %v882 = vadd.f32 %v459, %v881
        %v883 = vpop.f32.mrb[0].mxu0
        %v884 = vadd.f32 %v463, %v883
        %885 = vmatprep.mubr.bf16.mxu0 0
        %886 = vmatmul.mubr.bf16.gmra.mrb[0].mxu0 %v569
        %v887 = vpop.f32.mrb[0].mxu0
        %v888 = vadd.f32 %v459, %v887
        %v889 = vpop.f32.mrb[0].mxu0
        %v890 = vadd.f32 %v463, %v889
        %v891 = vpop.f32.mrb[0].mxu0
        %v892 = vadd.f32 %v459, %v891
        %v893 = vpop.f32.mrb[0].mxu0
        %v894 = vadd.f32 %v463, %v893
        %895 = vmatprep.mubr.bf16.mxu0 0
        %896 = vmatmul.mubr.bf16.gmra.mrb[0].mxu0 %v572
        %v897 = vpop.f32.mrb[0].mxu0
        %v898 = vadd.f32 %v459, %v897
        %v899 = vpop.f32.mrb[0].mxu0
        %v900 = vadd.f32 %v463, %v899
        %v901 = vpop.f32.mrb[0].mxu0
        %v902 = vadd.f32 %v459, %v901
        %v903 = vpop.f32.mrb[0].mxu0
        %v904 = vadd.f32 %v463, %v903
        %905 = vmatprep.mubr.bf16.mxu0 0
        %906 = vmatmul.mubr.bf16.gmra.mrb[0].mxu0 %v575
        %v907 = vpop.f32.mrb[0].mxu0
        %v908 = vadd.f32 %v459, %v907
        %v909 = vpop.f32.mrb[0].mxu0
        %v910 = vadd.f32 %v463, %v909
        %v911 = vpop.f32.mrb[0].mxu0
        %v912 = vadd.f32 %v459, %v911
        %v913 = vpop.f32.mrb[0].mxu0
        %v914 = vadd.f32 %v463, %v913
        %915 = vmatprep.mubr.bf16.mxu0 0
        %916 = vmatmul.mubr.bf16.gmra.mrb[0].mxu0 %v578
        %v917 = vpop.f32.mrb[0].mxu0
        %v918 = vadd.f32 %v459, %v917
        %v919 = vpop.f32.mrb[0].mxu0
        %v920 = vadd.f32 %v463, %v919
        %v921 = vpop.f32.mrb[0].mxu0
        %v922 = vadd.f32 %v459, %v921
        %v923 = vpop.f32.mrb[0].mxu0
        %v924 = vadd.f32 %v463, %v923
        %925 = vmatprep.mubr.bf16.mxu0 0
        %926 = vmatmul.mubr.bf16.gmra.mrb[0].mxu0 %v581
        %v927 = vpop.f32.mrb[0].mxu0
        %v928 = vadd.f32 %v459, %v927
        %v929 = vpop.f32.mrb[0].mxu0
        %v930 = vadd.f32 %v463, %v929
        %v931 = vpop.f32.mrb[0].mxu0
        %v932 = vadd.f32 %v459, %v931
        %v933 = vpop.f32.mrb[0].mxu0
        %v934 = vadd.f32 %v463, %v933
        %935 = vdwg.mxu0
        %vm936 = vcmp.gt.f32.partialorder %v618, 0.0
        %vm937 = vcmp.gt.f32.partialorder %v620, 0.0
        %vm938 = vcmp.gt.f32.partialorder %v622, 0.0
        %vm939 = vcmp.gt.f32.partialorder %v624, 0.0
        %vm940 = vcmp.gt.f32.partialorder %v628, 0.0
        %vm941 = vcmp.gt.f32.partialorder %v630, 0.0
        %vm942 = vcmp.gt.f32.partialorder %v632, 0.0
        %vm943 = vcmp.gt.f32.partialorder %v634, 0.0
        %vm944 = vcmp.gt.f32.partialorder %v638, 0.0
        %vm945 = vcmp.gt.f32.partialorder %v640, 0.0
        %vm946 = vcmp.gt.f32.partialorder %v642, 0.0
        %vm947 = vcmp.gt.f32.partialorder %v644, 0.0
        %vm948 = vcmp.gt.f32.partialorder %v648, 0.0
        %vm949 = vcmp.gt.f32.partialorder %v650, 0.0
        %vm950 = vcmp.gt.f32.partialorder %v652, 0.0
        %vm951 = vcmp.gt.f32.partialorder %v654, 0.0
        %vm952 = vcmp.gt.f32.partialorder %v658, 0.0
        %vm953 = vcmp.gt.f32.partialorder %v660, 0.0
        %vm954 = vcmp.gt.f32.partialorder %v662, 0.0
        %vm955 = vcmp.gt.f32.partialorder %v664, 0.0
        %vm956 = vcmp.gt.f32.partialorder %v668, 0.0
        %vm957 = vcmp.gt.f32.partialorder %v670, 0.0
        %vm958 = vcmp.gt.f32.partialorder %v672, 0.0
        %vm959 = vcmp.gt.f32.partialorder %v674, 0.0
        %vm960 = vcmp.gt.f32.partialorder %v678, 0.0
        %vm961 = vcmp.gt.f32.partialorder %v680, 0.0
        %vm962 = vcmp.gt.f32.partialorder %v682, 0.0
        %vm963 = vcmp.gt.f32.partialorder %v684, 0.0
        %vm964 = vcmp.gt.f32.partialorder %v688, 0.0
        %vm965 = vcmp.gt.f32.partialorder %v690, 0.0
        %vm966 = vcmp.gt.f32.partialorder %v692, 0.0
        %vm967 = vcmp.gt.f32.partialorder %v694, 0.0
        %vm968 = vcmp.gt.f32.partialorder %v698, 0.0
        %vm969 = vcmp.gt.f32.partialorder %v700, 0.0
        %vm970 = vcmp.gt.f32.partialorder %v702, 0.0
        %vm971 = vcmp.gt.f32.partialorder %v704, 0.0
        %vm972 = vcmp.gt.f32.partialorder %v708, 0.0
        %vm973 = vcmp.gt.f32.partialorder %v710, 0.0
        %vm974 = vcmp.gt.f32.partialorder %v712, 0.0
        %vm975 = vcmp.gt.f32.partialorder %v714, 0.0
        %vm976 = vcmp.gt.f32.partialorder %v718, 0.0
        %vm977 = vcmp.gt.f32.partialorder %v720, 0.0
        %vm978 = vcmp.gt.f32.partialorder %v722, 0.0
        %vm979 = vcmp.gt.f32.partialorder %v724, 0.0
        %vm980 = vcmp.gt.f32.partialorder %v728, 0.0
        %vm981 = vcmp.gt.f32.partialorder %v730, 0.0
        %vm982 = vcmp.gt.f32.partialorder %v732, 0.0
        %vm983 = vcmp.gt.f32.partialorder %v734, 0.0
        %vm984 = vcmp.gt.f32.partialorder %v738, 0.0
        %vm985 = vcmp.gt.f32.partialorder %v740, 0.0
        %vm986 = vcmp.gt.f32.partialorder %v742, 0.0
        %vm987 = vcmp.gt.f32.partialorder %v744, 0.0
        %vm988 = vcmp.gt.f32.partialorder %v748, 0.0
        %vm989 = vcmp.gt.f32.partialorder %v750, 0.0
        %vm990 = vcmp.gt.f32.partialorder %v752, 0.0
        %vm991 = vcmp.gt.f32.partialorder %v754, 0.0
        %vm992 = vcmp.gt.f32.partialorder %v758, 0.0
        %vm993 = vcmp.gt.f32.partialorder %v760, 0.0
        %vm994 = vcmp.gt.f32.partialorder %v762, 0.0
        %vm995 = vcmp.gt.f32.partialorder %v764, 0.0
        %vm996 = vcmp.gt.f32.partialorder %v768, 0.0
        %vm997 = vcmp.gt.f32.partialorder %v770, 0.0
        %vm998 = vcmp.gt.f32.partialorder %v772, 0.0
        %vm999 = vcmp.gt.f32.partialorder %v774, 0.0
        %vm1000 = vcmp.gt.f32.partialorder %v778, 0.0
        %vm1001 = vcmp.gt.f32.partialorder %v780, 0.0
        %vm1002 = vcmp.gt.f32.partialorder %v782, 0.0
        %vm1003 = vcmp.gt.f32.partialorder %v784, 0.0
        %vm1004 = vcmp.gt.f32.partialorder %v788, 0.0
        %vm1005 = vcmp.gt.f32.partialorder %v790, 0.0
        %vm1006 = vcmp.gt.f32.partialorder %v792, 0.0
        %vm1007 = vcmp.gt.f32.partialorder %v794, 0.0
        %vm1008 = vcmp.gt.f32.partialorder %v798, 0.0
        %vm1009 = vcmp.gt.f32.partialorder %v800, 0.0
        %vm1010 = vcmp.gt.f32.partialorder %v802, 0.0
        %vm1011 = vcmp.gt.f32.partialorder %v804, 0.0
        %vm1012 = vcmp.gt.f32.partialorder %v808, 0.0
        %vm1013 = vcmp.gt.f32.partialorder %v810, 0.0
        %vm1014 = vcmp.gt.f32.partialorder %v812, 0.0
        %vm1015 = vcmp.gt.f32.partialorder %v814, 0.0
        %vm1016 = vcmp.gt.f32.partialorder %v818, 0.0
        %vm1017 = vcmp.gt.f32.partialorder %v820, 0.0
        %vm1018 = vcmp.gt.f32.partialorder %v822, 0.0
        %vm1019 = vcmp.gt.f32.partialorder %v824, 0.0
        %vm1020 = vcmp.gt.f32.partialorder %v828, 0.0
        %vm1021 = vcmp.gt.f32.partialorder %v830, 0.0
        %vm1022 = vcmp.gt.f32.partialorder %v832, 0.0
        %vm1023 = vcmp.gt.f32.partialorder %v834, 0.0
        %vm1024 = vcmp.gt.f32.partialorder %v838, 0.0
        %vm1025 = vcmp.gt.f32.partialorder %v840, 0.0
        %vm1026 = vcmp.gt.f32.partialorder %v842, 0.0
        %vm1027 = vcmp.gt.f32.partialorder %v844, 0.0
        %vm1028 = vcmp.gt.f32.partialorder %v848, 0.0
        %vm1029 = vcmp.gt.f32.partialorder %v850, 0.0
        %vm1030 = vcmp.gt.f32.partialorder %v852, 0.0
        %vm1031 = vcmp.gt.f32.partialorder %v854, 0.0
        %vm1032 = vcmp.gt.f32.partialorder %v858, 0.0
        %vm1033 = vcmp.gt.f32.partialorder %v860, 0.0
        %vm1034 = vcmp.gt.f32.partialorder %v862, 0.0
        %vm1035 = vcmp.gt.f32.partialorder %v864, 0.0
        %vm1036 = vcmp.gt.f32.partialorder %v868, 0.0
        %vm1037 = vcmp.gt.f32.partialorder %v870, 0.0
        %vm1038 = vcmp.gt.f32.partialorder %v872, 0.0
        %vm1039 = vcmp.gt.f32.partialorder %v874, 0.0
        %vm1040 = vcmp.gt.f32.partialorder %v878, 0.0
        %vm1041 = vcmp.gt.f32.partialorder %v880, 0.0
        %vm1042 = vcmp.gt.f32.partialorder %v882, 0.0
        %vm1043 = vcmp.gt.f32.partialorder %v884, 0.0
        %vm1044 = vcmp.gt.f32.partialorder %v888, 0.0
        %vm1045 = vcmp.gt.f32.partialorder %v890, 0.0
        %vm1046 = vcmp.gt.f32.partialorder %v892, 0.0
        %vm1047 = vcmp.gt.f32.partialorder %v894, 0.0
        %vm1048 = vcmp.gt.f32.partialorder %v898, 0.0
        %vm1049 = vcmp.gt.f32.partialorder %v900, 0.0
        %vm1050 = vcmp.gt.f32.partialorder %v902, 0.0
        %vm1051 = vcmp.gt.f32.partialorder %v904, 0.0
        %vm1052 = vcmp.gt.f32.partialorder %v908, 0.0
        %vm1053 = vcmp.gt.f32.partialorder %v910, 0.0
        %vm1054 = vcmp.gt.f32.partialorder %v912, 0.0
        %vm1055 = vcmp.gt.f32.partialorder %v914, 0.0
        %vm1056 = vcmp.gt.f32.partialorder %v918, 0.0
        %vm1057 = vcmp.gt.f32.partialorder %v920, 0.0
        %vm1058 = vcmp.gt.f32.partialorder %v922, 0.0
        %vm1059 = vcmp.gt.f32.partialorder %v924, 0.0
        %vm1060 = vcmp.gt.f32.partialorder %v928, 0.0
        %vm1061 = vcmp.gt.f32.partialorder %v930, 0.0
        %vm1062 = vcmp.gt.f32.partialorder %v932, 0.0
        %vm1063 = vcmp.gt.f32.partialorder %v934, 0.0
        %v1064 = vmul.f32 %v618, 0.2
        %v1065 = vmul.f32 %v620, 0.2
        %v1066 = vmul.f32 %v622, 0.2
        %v1067 = vmul.f32 %v624, 0.2
        %v1068 = vmul.f32 %v628, 0.2
        %v1069 = vmul.f32 %v630, 0.2
        %v1070 = vmul.f32 %v632, 0.2
        %v1071 = vmul.f32 %v634, 0.2
        %v1072 = vmul.f32 %v638, 0.2
        %v1073 = vmul.f32 %v640, 0.2
        %v1074 = vmul.f32 %v642, 0.2
        %v1075 = vmul.f32 %v644, 0.2
        %v1076 = vmul.f32 %v648, 0.2
        %v1077 = vmul.f32 %v650, 0.2
        %v1078 = vmul.f32 %v652, 0.2
        %v1079 = vmul.f32 %v654, 0.2
        %v1080 = vmul.f32 %v658, 0.2
        %v1081 = vmul.f32 %v660, 0.2
        %v1082 = vmul.f32 %v662, 0.2
        %v1083 = vmul.f32 %v664, 0.2
        %v1084 = vmul.f32 %v668, 0.2
        %v1085 = vmul.f32 %v670, 0.2
        %v1086 = vmul.f32 %v672, 0.2
        %v1087 = vmul.f32 %v674, 0.2
        %v1088 = vmul.f32 %v678, 0.2
        %v1089 = vmul.f32 %v680, 0.2
        %v1090 = vmul.f32 %v682, 0.2
        %v1091 = vmul.f32 %v684, 0.2
        %v1092 = vmul.f32 %v688, 0.2
        %v1093 = vmul.f32 %v690, 0.2
        %v1094 = vmul.f32 %v692, 0.2
        %v1095 = vmul.f32 %v694, 0.2
        %v1096 = vmul.f32 %v698, 0.2
        %v1097 = vmul.f32 %v700, 0.2
        %v1098 = vmul.f32 %v702, 0.2
        %v1099 = vmul.f32 %v704, 0.2
        %v1100 = vmul.f32 %v708, 0.2
        %v1101 = vmul.f32 %v710, 0.2
        %v1102 = vmul.f32 %v712, 0.2
        %v1103 = vmul.f32 %v714, 0.2
        %v1104 = vmul.f32 %v718, 0.2
        %v1105 = vmul.f32 %v720, 0.2
        %v1106 = vmul.f32 %v722, 0.2
        %v1107 = vmul.f32 %v724, 0.2
        %v1108 = vmul.f32 %v728, 0.2
        %v1109 = vmul.f32 %v730, 0.2
        %v1110 = vmul.f32 %v732, 0.2
        %v1111 = vmul.f32 %v734, 0.2
        %v1112 = vmul.f32 %v738, 0.2
        %v1113 = vmul.f32 %v740, 0.2
        %v1114 = vmul.f32 %v742, 0.2
        %v1115 = vmul.f32 %v744, 0.2
        %v1116 = vmul.f32 %v748, 0.2
        %v1117 = vmul.f32 %v750, 0.2
        %v1118 = vmul.f32 %v752, 0.2
        %v1119 = vmul.f32 %v754, 0.2
        %v1120 = vmul.f32 %v758, 0.2
        %v1121 = vmul.f32 %v760, 0.2
        %v1122 = vmul.f32 %v762, 0.2
        %v1123 = vmul.f32 %v764, 0.2
        %v1124 = vmul.f32 %v768, 0.2
        %v1125 = vmul.f32 %v770, 0.2
        %v1126 = vmul.f32 %v772, 0.2
        %v1127 = vmul.f32 %v774, 0.2
        %v1128 = vmul.f32 %v778, 0.2
        %v1129 = vmul.f32 %v780, 0.2
        %v1130 = vmul.f32 %v782, 0.2
        %v1131 = vmul.f32 %v784, 0.2
        %v1132 = vmul.f32 %v788, 0.2
        %v1133 = vmul.f32 %v790, 0.2
        %v1134 = vmul.f32 %v792, 0.2
        %v1135 = vmul.f32 %v794, 0.2
        %v1136 = vmul.f32 %v798, 0.2
        %v1137 = vmul.f32 %v800, 0.2
        %v1138 = vmul.f32 %v802, 0.2
        %v1139 = vmul.f32 %v804, 0.2
        %v1140 = vmul.f32 %v808, 0.2
        %v1141 = vmul.f32 %v810, 0.2
        %v1142 = vmul.f32 %v812, 0.2
        %v1143 = vmul.f32 %v814, 0.2
        %v1144 = vmul.f32 %v818, 0.2
        %v1145 = vmul.f32 %v820, 0.2
        %v1146 = vmul.f32 %v822, 0.2
        %v1147 = vmul.f32 %v824, 0.2
        %v1148 = vmul.f32 %v828, 0.2
        %v1149 = vmul.f32 %v830, 0.2
        %v1150 = vmul.f32 %v832, 0.2
        %v1151 = vmul.f32 %v834, 0.2
        %v1152 = vmul.f32 %v838, 0.2
        %v1153 = vmul.f32 %v840, 0.2
        %v1154 = vmul.f32 %v842, 0.2
        %v1155 = vmul.f32 %v844, 0.2
        %v1156 = vmul.f32 %v848, 0.2
        %v1157 = vmul.f32 %v850, 0.2
        %v1158 = vmul.f32 %v852, 0.2
        %v1159 = vmul.f32 %v854, 0.2
        %v1160 = vmul.f32 %v858, 0.2
        %v1161 = vmul.f32 %v860, 0.2
        %v1162 = vmul.f32 %v862, 0.2
        %v1163 = vmul.f32 %v864, 0.2
        %v1164 = vmul.f32 %v868, 0.2
        %v1165 = vmul.f32 %v870, 0.2
        %v1166 = vmul.f32 %v872, 0.2
        %v1167 = vmul.f32 %v874, 0.2
        %v1168 = vmul.f32 %v878, 0.2
        %v1169 = vmul.f32 %v880, 0.2
        %v1170 = vmul.f32 %v882, 0.2
        %v1171 = vmul.f32 %v884, 0.2
        %v1172 = vmul.f32 %v888, 0.2
        %v1173 = vmul.f32 %v890, 0.2
        %v1174 = vmul.f32 %v892, 0.2
        %v1175 = vmul.f32 %v894, 0.2
        %v1176 = vmul.f32 %v898, 0.2
        %v1177 = vmul.f32 %v900, 0.2
        %v1178 = vmul.f32 %v902, 0.2
        %v1179 = vmul.f32 %v904, 0.2
        %v1180 = vmul.f32 %v908, 0.2
        %v1181 = vmul.f32 %v910, 0.2
        %v1182 = vmul.f32 %v912, 0.2
        %v1183 = vmul.f32 %v914, 0.2
        %v1184 = vmul.f32 %v918, 0.2
        %v1185 = vmul.f32 %v920, 0.2
        %v1186 = vmul.f32 %v922, 0.2
        %v1187 = vmul.f32 %v924, 0.2
        %v1188 = vmul.f32 %v928, 0.2
        %v1189 = vmul.f32 %v930, 0.2
        %v1190 = vmul.f32 %v932, 0.2
        %v1191 = vmul.f32 %v934, 0.2
        %v1192 = vsel %vm936, %v618, %v1064
        %v1193 = vsel %vm937, %v620, %v1065
        %v1194 = vsel %vm938, %v622, %v1066
        %v1195 = vsel %vm939, %v624, %v1067
        %v1196 = vsel %vm940, %v628, %v1068
        %v1197 = vsel %vm941, %v630, %v1069
        %v1198 = vsel %vm942, %v632, %v1070
        %v1199 = vsel %vm943, %v634, %v1071
        %v1200 = vsel %vm944, %v638, %v1072
        %v1201 = vsel %vm945, %v640, %v1073
        %v1202 = vsel %vm946, %v642, %v1074
        %v1203 = vsel %vm947, %v644, %v1075
        %v1204 = vsel %vm948, %v648, %v1076
        %v1205 = vsel %vm949, %v650, %v1077
        %v1206 = vsel %vm950, %v652, %v1078
        %v1207 = vsel %vm951, %v654, %v1079
        %v1208 = vsel %vm952, %v658, %v1080
        %v1209 = vsel %vm953, %v660, %v1081
        %v1210 = vsel %vm954, %v662, %v1082
        %v1211 = vsel %vm955, %v664, %v1083
        %v1212 = vsel %vm956, %v668, %v1084
        %v1213 = vsel %vm957, %v670, %v1085
        %v1214 = vsel %vm958, %v672, %v1086
        %v1215 = vsel %vm959, %v674, %v1087
        %v1216 = vsel %vm960, %v678, %v1088
        %v1217 = vsel %vm961, %v680, %v1089
        %v1218 = vsel %vm962, %v682, %v1090
        %v1219 = vsel %vm963, %v684, %v1091
        %v1220 = vsel %vm964, %v688, %v1092
        %v1221 = vsel %vm965, %v690, %v1093
        %v1222 = vsel %vm966, %v692, %v1094
        %v1223 = vsel %vm967, %v694, %v1095
        %v1224 = vsel %vm968, %v698, %v1096
        %v1225 = vsel %vm969, %v700, %v1097
        %v1226 = vsel %vm970, %v702, %v1098
        %v1227 = vsel %vm971, %v704, %v1099
        %v1228 = vsel %vm972, %v708, %v1100
        %v1229 = vsel %vm973, %v710, %v1101
        %v1230 = vsel %vm974, %v712, %v1102
        %v1231 = vsel %vm975, %v714, %v1103
        %v1232 = vsel %vm976, %v718, %v1104
        %v1233 = vsel %vm977, %v720, %v1105
        %v1234 = vsel %vm978, %v722, %v1106
        %v1235 = vsel %vm979, %v724, %v1107
        %v1236 = vsel %vm980, %v728, %v1108
        %v1237 = vsel %vm981, %v730, %v1109
        %v1238 = vsel %vm982, %v732, %v1110
        %v1239 = vsel %vm983, %v734, %v1111
        %v1240 = vsel %vm984, %v738, %v1112
        %v1241 = vsel %vm985, %v740, %v1113
        %v1242 = vsel %vm986, %v742, %v1114
        %v1243 = vsel %vm987, %v744, %v1115
        %v1244 = vsel %vm988, %v748, %v1116
        %v1245 = vsel %vm989, %v750, %v1117
        %v1246 = vsel %vm990, %v752, %v1118
        %v1247 = vsel %vm991, %v754, %v1119
        %v1248 = vsel %vm992, %v758, %v1120
        %v1249 = vsel %vm993, %v760, %v1121
        %v1250 = vsel %vm994, %v762, %v1122
        %v1251 = vsel %vm995, %v764, %v1123
        %v1252 = vsel %vm996, %v768, %v1124
        %v1253 = vsel %vm997, %v770, %v1125
        %v1254 = vsel %vm998, %v772, %v1126
        %v1255 = vsel %vm999, %v774, %v1127
        %v1256 = vsel %vm1000, %v778, %v1128
        %v1257 = vsel %vm1001, %v780, %v1129
        %v1258 = vsel %vm1002, %v782, %v1130
        %v1259 = vsel %vm1003, %v784, %v1131
        %v1260 = vsel %vm1004, %v788, %v1132
        %v1261 = vsel %vm1005, %v790, %v1133
        %v1262 = vsel %vm1006, %v792, %v1134
        %v1263 = vsel %vm1007, %v794, %v1135
        %v1264 = vsel %vm1008, %v798, %v1136
        %v1265 = vsel %vm1009, %v800, %v1137
        %v1266 = vsel %vm1010, %v802, %v1138
        %v1267 = vsel %vm1011, %v804, %v1139
        %v1268 = vsel %vm1012, %v808, %v1140
        %v1269 = vsel %vm1013, %v810, %v1141
        %v1270 = vsel %vm1014, %v812, %v1142
        %v1271 = vsel %vm1015, %v814, %v1143
        %v1272 = vsel %vm1016, %v818, %v1144
        %v1273 = vsel %vm1017, %v820, %v1145
        %v1274 = vsel %vm1018, %v822, %v1146
        %v1275 = vsel %vm1019, %v824, %v1147
        %v1276 = vsel %vm1020, %v828, %v1148
        %v1277 = vsel %vm1021, %v830, %v1149
        %v1278 = vsel %vm1022, %v832, %v1150
        %v1279 = vsel %vm1023, %v834, %v1151
        %v1280 = vsel %vm1024, %v838, %v1152
        %v1281 = vsel %vm1025, %v840, %v1153
        %v1282 = vsel %vm1026, %v842, %v1154
        %v1283 = vsel %vm1027, %v844, %v1155
        %v1284 = vsel %vm1028, %v848, %v1156
        %v1285 = vsel %vm1029, %v850, %v1157
        %v1286 = vsel %vm1030, %v852, %v1158
        %v1287 = vsel %vm1031, %v854, %v1159
        %v1288 = vsel %vm1032, %v858, %v1160
        %v1289 = vsel %vm1033, %v860, %v1161
        %v1290 = vsel %vm1034, %v862, %v1162
        %v1291 = vsel %vm1035, %v864, %v1163
        %v1292 = vsel %vm1036, %v868, %v1164
        %v1293 = vsel %vm1037, %v870, %v1165
        %v1294 = vsel %vm1038, %v872, %v1166
        %v1295 = vsel %vm1039, %v874, %v1167
        %v1296 = vsel %vm1040, %v878, %v1168
        %v1297 = vsel %vm1041, %v880, %v1169
        %v1298 = vsel %vm1042, %v882, %v1170
        %v1299 = vsel %vm1043, %v884, %v1171
        %v1300 = vsel %vm1044, %v888, %v1172
        %v1301 = vsel %vm1045, %v890, %v1173
        %v1302 = vsel %vm1046, %v892, %v1174
        %v1303 = vsel %vm1047, %v894, %v1175
        %v1304 = vsel %vm1048, %v898, %v1176
        %v1305 = vsel %vm1049, %v900, %v1177
        %v1306 = vsel %vm1050, %v902, %v1178
        %v1307 = vsel %vm1051, %v904, %v1179
        %v1308 = vsel %vm1052, %v908, %v1180
        %v1309 = vsel %vm1053, %v910, %v1181
        %v1310 = vsel %vm1054, %v912, %v1182
        %v1311 = vsel %vm1055, %v914, %v1183
        %v1312 = vsel %vm1056, %v918, %v1184
        %v1313 = vsel %vm1057, %v920, %v1185
        %v1314 = vsel %vm1058, %v922, %v1186
        %v1315 = vsel %vm1059, %v924, %v1187
        %v1316 = vsel %vm1060, %v928, %v1188
        %v1317 = vsel %vm1061, %v930, %v1189
        %v1318 = vsel %vm1062, %v932, %v1190
        %v1319 = vsel %vm1063, %v934, %v1191
        %v1320 = vpack.c.bf16 %v1194, %v1192
        %v1321 = vpack.c.bf16 %v1195, %v1193
        %v1322 = vpack.c.bf16 %v1198, %v1196
        %v1323 = vpack.c.bf16 %v1199, %v1197
        %v1324 = vpack.c.bf16 %v1202, %v1200
        %v1325 = vpack.c.bf16 %v1203, %v1201
        %v1326 = vpack.c.bf16 %v1206, %v1204
        %v1327 = vpack.c.bf16 %v1207, %v1205
        %v1328 = vpack.c.bf16 %v1210, %v1208
        %v1329 = vpack.c.bf16 %v1211, %v1209
        %v1330 = vpack.c.bf16 %v1214, %v1212
        %v1331 = vpack.c.bf16 %v1215, %v1213
        %v1332 = vpack.c.bf16 %v1218, %v1216
        %v1333 = vpack.c.bf16 %v1219, %v1217
        %v1334 = vpack.c.bf16 %v1222, %v1220
        %v1335 = vpack.c.bf16 %v1223, %v1221
        %v1336 = vpack.c.bf16 %v1226, %v1224
        %v1337 = vpack.c.bf16 %v1227, %v1225
        %v1338 = vpack.c.bf16 %v1230, %v1228
        %v1339 = vpack.c.bf16 %v1231, %v1229
        %v1340 = vpack.c.bf16 %v1234, %v1232
        %v1341 = vpack.c.bf16 %v1235, %v1233
        %v1342 = vpack.c.bf16 %v1238, %v1236
        %v1343 = vpack.c.bf16 %v1239, %v1237
        %v1344 = vpack.c.bf16 %v1242, %v1240
        %v1345 = vpack.c.bf16 %v1243, %v1241
        %v1346 = vpack.c.bf16 %v1246, %v1244
        %v1347 = vpack.c.bf16 %v1247, %v1245
        %v1348 = vpack.c.bf16 %v1250, %v1248
        %v1349 = vpack.c.bf16 %v1251, %v1249
        %v1350 = vpack.c.bf16 %v1254, %v1252
        %v1351 = vpack.c.bf16 %v1255, %v1253
        %v1352 = vpack.c.bf16 %v1258, %v1256
        %v1353 = vpack.c.bf16 %v1259, %v1257
        %v1354 = vpack.c.bf16 %v1262, %v1260
        %v1355 = vpack.c.bf16 %v1263, %v1261
        %v1356 = vpack.c.bf16 %v1266, %v1264
        %v1357 = vpack.c.bf16 %v1267, %v1265
        %v1358 = vpack.c.bf16 %v1270, %v1268
        %v1359 = vpack.c.bf16 %v1271, %v1269
        %v1360 = vpack.c.bf16 %v1274, %v1272
        %v1361 = vpack.c.bf16 %v1275, %v1273
        %v1362 = vpack.c.bf16 %v1278, %v1276
        %v1363 = vpack.c.bf16 %v1279, %v1277
        %v1364 = vpack.c.bf16 %v1282, %v1280
        %v1365 = vpack.c.bf16 %v1283, %v1281
        %v1366 = vpack.c.bf16 %v1286, %v1284
        %v1367 = vpack.c.bf16 %v1287, %v1285
        %v1368 = vpack.c.bf16 %v1290, %v1288
        %v1369 = vpack.c.bf16 %v1291, %v1289
        %v1370 = vpack.c.bf16 %v1294, %v1292
        %v1371 = vpack.c.bf16 %v1295, %v1293
        %v1372 = vpack.c.bf16 %v1298, %v1296
        %v1373 = vpack.c.bf16 %v1299, %v1297
        %v1374 = vpack.c.bf16 %v1302, %v1300
        %v1375 = vpack.c.bf16 %v1303, %v1301
        %v1376 = vpack.c.bf16 %v1306, %v1304
        %v1377 = vpack.c.bf16 %v1307, %v1305
        %v1378 = vpack.c.bf16 %v1310, %v1308
        %v1379 = vpack.c.bf16 %v1311, %v1309
        %v1380 = vpack.c.bf16 %v1314, %v1312
        %v1381 = vpack.c.bf16 %v1315, %v1313
        %v1382 = vpack.c.bf16 %v1318, %v1316
        %v1383 = vpack.c.bf16 %v1319, %v1317
        %v1384 = vld [vmem:[%s3] sm:$0xf]
        %v1385 = vld [vmem:[%s3 + $0x4] sm:$0xf]
        %v1386 = vld [vmem:[%s3 + $0x8] sm:$0xf]
        %v1387 = vld [vmem:[%s3 + $0xc] sm:$0xf]
        %v1388 = vld [vmem:[%s3 + $0x10] sm:$0xf]
        %v1389 = vld [vmem:[%s3 + $0x14] sm:$0xf]
        %v1390 = vld [vmem:[%s3 + $0x18] sm:$0xf]
        %v1391 = vld [vmem:[%s3 + $0x1c] sm:$0xf]
        %v1392 = vld [vmem:[%s3 + $0x20] sm:$0xf]
        %v1393 = vld [vmem:[%s3 + $0x24] sm:$0xf]
        %v1394 = vld [vmem:[%s3 + $0x28] sm:$0xf]
        %v1395 = vld [vmem:[%s3 + $0x2c] sm:$0xf]
        %v1396 = vld [vmem:[%s3 + $0x30] sm:$0xf]
        %v1397 = vld [vmem:[%s3 + $0x34] sm:$0xf]
        %v1398 = vld [vmem:[%s3 + $0x38] sm:$0xf]
        %v1399 = vld [vmem:[%s3 + $0x3c] sm:$0xf]
        %v1400 = vld [vmem:[%s3 + $0x40] sm:$0xf]
        %v1401 = vld [vmem:[%s3 + $0x44] sm:$0xf]
        %v1402 = vld [vmem:[%s3 + $0x48] sm:$0xf]
        %v1403 = vld [vmem:[%s3 + $0x4c] sm:$0xf]
        %v1404 = vld [vmem:[%s3 + $0x50] sm:$0xf]
        %v1405 = vld [vmem:[%s3 + $0x54] sm:$0xf]
        %v1406 = vld [vmem:[%s3 + $0x58] sm:$0xf]
        %v1407 = vld [vmem:[%s3 + $0x5c] sm:$0xf]
        %v1408 = vld [vmem:[%s3 + $0x60] sm:$0xf]
        %v1409 = vld [vmem:[%s3 + $0x64] sm:$0xf]
        %v1410 = vld [vmem:[%s3 + $0x68] sm:$0xf]
        %v1411 = vld [vmem:[%s3 + $0x6c] sm:$0xf]
        %v1412 = vld [vmem:[%s3 + $0x70] sm:$0xf]
        %v1413 = vld [vmem:[%s3 + $0x74] sm:$0xf]
        %v1414 = vld [vmem:[%s3 + $0x78] sm:$0xf]
        %v1415 = vld [vmem:[%s3 + $0x7c] sm:$0xf]
        %v1416 = vld [vmem:[%s4] sm:$0x1]
        %v1418 = vlaneseq
        %v1419 = vshrl.u32 %v1418, 7
        %v1420 = vsub.s32 0, %v1419
        %v1421 = vrot.slane %v1416, %v1420
        %v1455 = vunpack.c.l.b16 %v1384
        %v1456 = vunpack.c.l.b16 %v1385
        %v1457 = vunpack.c.l.b16 %v1386
        %v1458 = vunpack.c.l.b16 %v1387
        %v1459 = vunpack.c.l.b16 %v1388
        %v1460 = vunpack.c.l.b16 %v1389
        %v1461 = vunpack.c.l.b16 %v1390
        %v1462 = vunpack.c.l.b16 %v1391
        %v1463 = vunpack.c.l.b16 %v1392
        %v1464 = vunpack.c.l.b16 %v1393
        %v1465 = vunpack.c.l.b16 %v1394
        %v1466 = vunpack.c.l.b16 %v1395
        %v1467 = vunpack.c.l.b16 %v1396
        %v1468 = vunpack.c.l.b16 %v1397
        %v1469 = vunpack.c.l.b16 %v1398
        %v1470 = vunpack.c.l.b16 %v1399
        %v1471 = vunpack.c.l.b16 %v1400
        %v1472 = vunpack.c.l.b16 %v1401
        %v1473 = vunpack.c.l.b16 %v1402
        %v1474 = vunpack.c.l.b16 %v1403
        %v1475 = vunpack.c.l.b16 %v1404
        %v1476 = vunpack.c.l.b16 %v1405
        %v1477 = vunpack.c.l.b16 %v1406
        %v1478 = vunpack.c.l.b16 %v1407
        %v1479 = vunpack.c.l.b16 %v1408
        %v1480 = vunpack.c.l.b16 %v1409
        %v1481 = vunpack.c.l.b16 %v1410
        %v1482 = vunpack.c.l.b16 %v1411
        %v1483 = vunpack.c.l.b16 %v1412
        %v1484 = vunpack.c.l.b16 %v1413
        %v1485 = vunpack.c.l.b16 %v1414
        %v1486 = vunpack.c.l.b16 %v1415
        %v1487 = vpack.c.b16 %v1456, %v1455
        %v1488 = vpack.c.b16 %v1458, %v1457
        %v1489 = vpack.c.b16 %v1460, %v1459
        %v1490 = vpack.c.b16 %v1462, %v1461
        %v1491 = vpack.c.b16 %v1464, %v1463
        %v1492 = vpack.c.b16 %v1466, %v1465
        %v1493 = vpack.c.b16 %v1468, %v1467
        %v1494 = vpack.c.b16 %v1470, %v1469
        %v1495 = vpack.c.b16 %v1472, %v1471
        %v1496 = vpack.c.b16 %v1474, %v1473
        %v1497 = vpack.c.b16 %v1476, %v1475
        %v1498 = vpack.c.b16 %v1478, %v1477
        %v1499 = vpack.c.b16 %v1480, %v1479
        %v1500 = vpack.c.b16 %v1482, %v1481
        %v1501 = vpack.c.b16 %v1484, %v1483
        %v1502 = vpack.c.b16 %v1486, %v1485
        %1519 = vmatprep.subr.bf16.mxu0 0
        %1520 = vmatpush1.bf16.msra.mxu0 %v1487
        %1521 = vmatprep.subr.bf16.mxu0 0
        %1522 = vmatpush1.bf16.msra.mxu0 %v1488
        %1523 = vmatprep.subr.bf16.mxu0 0
        %1524 = vmatpush1.bf16.msra.mxu0 %v1489
        %1525 = vmatprep.subr.bf16.mxu0 0
        %1526 = vmatpush1.bf16.msra.mxu0 %v1490
        %1527 = vmatprep.subr.bf16.mxu0 0
        %1528 = vmatpush1.bf16.msra.mxu0 %v1491
        %1529 = vmatprep.subr.bf16.mxu0 0
        %1530 = vmatpush1.bf16.msra.mxu0 %v1492
        %1531 = vmatprep.subr.bf16.mxu0 0
        %1532 = vmatpush1.bf16.msra.mxu0 %v1493
        %1533 = vmatprep.subr.bf16.mxu0 0
        %1534 = vmatpush1.bf16.msra.mxu0 %v1494
        %1535 = vmatprep.subr.bf16.mxu0 0
        %1536 = vmatpush1.bf16.msra.mxu0 %v1495
        %1537 = vmatprep.subr.bf16.mxu0 0
        %1538 = vmatpush1.bf16.msra.mxu0 %v1496
        %1539 = vmatprep.subr.bf16.mxu0 0
        %1540 = vmatpush1.bf16.msra.mxu0 %v1497
        %1541 = vmatprep.subr.bf16.mxu0 0
        %1542 = vmatpush1.bf16.msra.mxu0 %v1498
        %1543 = vmatprep.subr.bf16.mxu0 0
        %1544 = vmatpush1.bf16.msra.mxu0 %v1499
        %1545 = vmatprep.subr.bf16.mxu0 0
        %1546 = vmatpush1.bf16.msra.mxu0 %v1500
        %1547 = vmatprep.subr.bf16.mxu0 0
        %1548 = vmatpush1.bf16.msra.mxu0 %v1501
        %1549 = vmatprep.subr.bf16.mxu0 0
        %1550 = vmatpush1.bf16.msra.mxu0 %v1502
        %1551 = vmatprep.mubr.bf16.mxu0 %v1321
        %1552 = vmatmul.mubr.bf16.gmra.mrb[0].mxu0 %v1320
        %v1553 = vpop.f32.mrb[0].mxu0
        %v1554 = vadd.f32 %v1421, %v1553
        %v1555 = vpop.f32.mrb[0].mxu0
        %v1556 = vpop.f32.mrb[0].mxu0
        %v1557 = vadd.f32 %v1421, %v1556
        %v1558 = vpop.f32.mrb[0].mxu0
        %1559 = vmatprep.mubr.bf16.mxu0 %v1323
        %1560 = vmatmul.mubr.bf16.gmra.mrb[0].mxu0 %v1322
        %v1561 = vpop.f32.mrb[0].mxu0
        %v1562 = vadd.f32 %v1421, %v1561
        %v1563 = vpop.f32.mrb[0].mxu0
        %v1564 = vpop.f32.mrb[0].mxu0
        %v1565 = vadd.f32 %v1421, %v1564
        %v1566 = vpop.f32.mrb[0].mxu0
        %1567 = vmatprep.mubr.bf16.mxu0 %v1325
        %1568 = vmatmul.mubr.bf16.gmra.mrb[0].mxu0 %v1324
        %v1569 = vpop.f32.mrb[0].mxu0
        %v1570 = vadd.f32 %v1421, %v1569
        %v1571 = vpop.f32.mrb[0].mxu0
        %v1572 = vpop.f32.mrb[0].mxu0
        %v1573 = vadd.f32 %v1421, %v1572
        %v1574 = vpop.f32.mrb[0].mxu0
        %1575 = vmatprep.mubr.bf16.mxu0 %v1327
        %1576 = vmatmul.mubr.bf16.gmra.mrb[0].mxu0 %v1326
        %v1577 = vpop.f32.mrb[0].mxu0
        %v1578 = vadd.f32 %v1421, %v1577
        %v1579 = vpop.f32.mrb[0].mxu0
        %v1580 = vpop.f32.mrb[0].mxu0
        %v1581 = vadd.f32 %v1421, %v1580
        %v1582 = vpop.f32.mrb[0].mxu0
        %1583 = vmatprep.mubr.bf16.mxu0 %v1329
        %1584 = vmatmul.mubr.bf16.gmra.mrb[0].mxu0 %v1328
        %v1585 = vpop.f32.mrb[0].mxu0
        %v1586 = vadd.f32 %v1421, %v1585
        %v1587 = vpop.f32.mrb[0].mxu0
        %v1588 = vpop.f32.mrb[0].mxu0
        %v1589 = vadd.f32 %v1421, %v1588
        %v1590 = vpop.f32.mrb[0].mxu0
        %1591 = vmatprep.mubr.bf16.mxu0 %v1331
        %1592 = vmatmul.mubr.bf16.gmra.mrb[0].mxu0 %v1330
        %v1593 = vpop.f32.mrb[0].mxu0
        %v1594 = vadd.f32 %v1421, %v1593
        %v1595 = vpop.f32.mrb[0].mxu0
        %v1596 = vpop.f32.mrb[0].mxu0
        %v1597 = vadd.f32 %v1421, %v1596
        %v1598 = vpop.f32.mrb[0].mxu0
        %1599 = vmatprep.mubr.bf16.mxu0 %v1333
        %1600 = vmatmul.mubr.bf16.gmra.mrb[0].mxu0 %v1332
        %v1601 = vpop.f32.mrb[0].mxu0
        %v1602 = vadd.f32 %v1421, %v1601
        %v1603 = vpop.f32.mrb[0].mxu0
        %v1604 = vpop.f32.mrb[0].mxu0
        %v1605 = vadd.f32 %v1421, %v1604
        %v1606 = vpop.f32.mrb[0].mxu0
        %1607 = vmatprep.mubr.bf16.mxu0 %v1335
        %1608 = vmatmul.mubr.bf16.gmra.mrb[0].mxu0 %v1334
        %v1609 = vpop.f32.mrb[0].mxu0
        %v1610 = vadd.f32 %v1421, %v1609
        %v1611 = vpop.f32.mrb[0].mxu0
        %v1612 = vpop.f32.mrb[0].mxu0
        %v1613 = vadd.f32 %v1421, %v1612
        %v1614 = vpop.f32.mrb[0].mxu0
        %1615 = vmatprep.mubr.bf16.mxu0 %v1337
        %1616 = vmatmul.mubr.bf16.gmra.mrb[0].mxu0 %v1336
        %v1617 = vpop.f32.mrb[0].mxu0
        %v1618 = vadd.f32 %v1421, %v1617
        %v1619 = vpop.f32.mrb[0].mxu0
        %v1620 = vpop.f32.mrb[0].mxu0
        %v1621 = vadd.f32 %v1421, %v1620
        %v1622 = vpop.f32.mrb[0].mxu0
        %1623 = vmatprep.mubr.bf16.mxu0 %v1339
        %1624 = vmatmul.mubr.bf16.gmra.mrb[0].mxu0 %v1338
        %v1625 = vpop.f32.mrb[0].mxu0
        %v1626 = vadd.f32 %v1421, %v1625
        %v1627 = vpop.f32.mrb[0].mxu0
        %v1628 = vpop.f32.mrb[0].mxu0
        %v1629 = vadd.f32 %v1421, %v1628
        %v1630 = vpop.f32.mrb[0].mxu0
        %1631 = vmatprep.mubr.bf16.mxu0 %v1341
        %1632 = vmatmul.mubr.bf16.gmra.mrb[0].mxu0 %v1340
        %v1633 = vpop.f32.mrb[0].mxu0
        %v1634 = vadd.f32 %v1421, %v1633
        %v1635 = vpop.f32.mrb[0].mxu0
        %v1636 = vpop.f32.mrb[0].mxu0
        %v1637 = vadd.f32 %v1421, %v1636
        %v1638 = vpop.f32.mrb[0].mxu0
        %1639 = vmatprep.mubr.bf16.mxu0 %v1343
        %1640 = vmatmul.mubr.bf16.gmra.mrb[0].mxu0 %v1342
        %v1641 = vpop.f32.mrb[0].mxu0
        %v1642 = vadd.f32 %v1421, %v1641
        %v1643 = vpop.f32.mrb[0].mxu0
        %v1644 = vpop.f32.mrb[0].mxu0
        %v1645 = vadd.f32 %v1421, %v1644
        %v1646 = vpop.f32.mrb[0].mxu0
        %1647 = vmatprep.mubr.bf16.mxu0 %v1345
        %1648 = vmatmul.mubr.bf16.gmra.mrb[0].mxu0 %v1344
        %v1649 = vpop.f32.mrb[0].mxu0
        %v1650 = vadd.f32 %v1421, %v1649
        %v1651 = vpop.f32.mrb[0].mxu0
        %v1652 = vpop.f32.mrb[0].mxu0
        %v1653 = vadd.f32 %v1421, %v1652
        %v1654 = vpop.f32.mrb[0].mxu0
        %1655 = vmatprep.mubr.bf16.mxu0 %v1347
        %1656 = vmatmul.mubr.bf16.gmra.mrb[0].mxu0 %v1346
        %v1657 = vpop.f32.mrb[0].mxu0
        %v1658 = vadd.f32 %v1421, %v1657
        %v1659 = vpop.f32.mrb[0].mxu0
        %v1660 = vpop.f32.mrb[0].mxu0
        %v1661 = vadd.f32 %v1421, %v1660
        %v1662 = vpop.f32.mrb[0].mxu0
        %1663 = vmatprep.mubr.bf16.mxu0 %v1349
        %1664 = vmatmul.mubr.bf16.gmra.mrb[0].mxu0 %v1348
        %v1665 = vpop.f32.mrb[0].mxu0
        %v1666 = vadd.f32 %v1421, %v1665
        %v1667 = vpop.f32.mrb[0].mxu0
        %v1668 = vpop.f32.mrb[0].mxu0
        %v1669 = vadd.f32 %v1421, %v1668
        %v1670 = vpop.f32.mrb[0].mxu0
        %1671 = vmatprep.mubr.bf16.mxu0 %v1351
        %1672 = vmatmul.mubr.bf16.gmra.mrb[0].mxu0 %v1350
        %v1673 = vpop.f32.mrb[0].mxu0
        %v1674 = vadd.f32 %v1421, %v1673
        %v1675 = vpop.f32.mrb[0].mxu0
        %v1676 = vpop.f32.mrb[0].mxu0
        %v1677 = vadd.f32 %v1421, %v1676
        %v1678 = vpop.f32.mrb[0].mxu0
        %1679 = vmatprep.mubr.bf16.mxu0 %v1353
        %1680 = vmatmul.mubr.bf16.gmra.mrb[0].mxu0 %v1352
        %v1681 = vpop.f32.mrb[0].mxu0
        %v1682 = vadd.f32 %v1421, %v1681
        %v1683 = vpop.f32.mrb[0].mxu0
        %v1684 = vpop.f32.mrb[0].mxu0
        %v1685 = vadd.f32 %v1421, %v1684
        %v1686 = vpop.f32.mrb[0].mxu0
        %1687 = vmatprep.mubr.bf16.mxu0 %v1355
        %1688 = vmatmul.mubr.bf16.gmra.mrb[0].mxu0 %v1354
        %v1689 = vpop.f32.mrb[0].mxu0
        %v1690 = vadd.f32 %v1421, %v1689
        %v1691 = vpop.f32.mrb[0].mxu0
        %v1692 = vpop.f32.mrb[0].mxu0
        %v1693 = vadd.f32 %v1421, %v1692
        %v1694 = vpop.f32.mrb[0].mxu0
        %1695 = vmatprep.mubr.bf16.mxu0 %v1357
        %1696 = vmatmul.mubr.bf16.gmra.mrb[0].mxu0 %v1356
        %v1697 = vpop.f32.mrb[0].mxu0
        %v1698 = vadd.f32 %v1421, %v1697
        %v1699 = vpop.f32.mrb[0].mxu0
        %v1700 = vpop.f32.mrb[0].mxu0
        %v1701 = vadd.f32 %v1421, %v1700
        %v1702 = vpop.f32.mrb[0].mxu0
        %1703 = vmatprep.mubr.bf16.mxu0 %v1359
        %1704 = vmatmul.mubr.bf16.gmra.mrb[0].mxu0 %v1358
        %v1705 = vpop.f32.mrb[0].mxu0
        %v1706 = vadd.f32 %v1421, %v1705
        %v1707 = vpop.f32.mrb[0].mxu0
        %v1708 = vpop.f32.mrb[0].mxu0
        %v1709 = vadd.f32 %v1421, %v1708
        %v1710 = vpop.f32.mrb[0].mxu0
        %1711 = vmatprep.mubr.bf16.mxu0 %v1361
        %1712 = vmatmul.mubr.bf16.gmra.mrb[0].mxu0 %v1360
        %v1713 = vpop.f32.mrb[0].mxu0
        %v1714 = vadd.f32 %v1421, %v1713
        %v1715 = vpop.f32.mrb[0].mxu0
        %v1716 = vpop.f32.mrb[0].mxu0
        %v1717 = vadd.f32 %v1421, %v1716
        %v1718 = vpop.f32.mrb[0].mxu0
        %1719 = vmatprep.mubr.bf16.mxu0 %v1363
        %1720 = vmatmul.mubr.bf16.gmra.mrb[0].mxu0 %v1362
        %v1721 = vpop.f32.mrb[0].mxu0
        %v1722 = vadd.f32 %v1421, %v1721
        %v1723 = vpop.f32.mrb[0].mxu0
        %v1724 = vpop.f32.mrb[0].mxu0
        %v1725 = vadd.f32 %v1421, %v1724
        %v1726 = vpop.f32.mrb[0].mxu0
        %1727 = vmatprep.mubr.bf16.mxu0 %v1365
        %1728 = vmatmul.mubr.bf16.gmra.mrb[0].mxu0 %v1364
        %v1729 = vpop.f32.mrb[0].mxu0
        %v1730 = vadd.f32 %v1421, %v1729
        %v1731 = vpop.f32.mrb[0].mxu0
        %v1732 = vpop.f32.mrb[0].mxu0
        %v1733 = vadd.f32 %v1421, %v1732
        %v1734 = vpop.f32.mrb[0].mxu0
        %1735 = vmatprep.mubr.bf16.mxu0 %v1367
        %1736 = vmatmul.mubr.bf16.gmra.mrb[0].mxu0 %v1366
        %v1737 = vpop.f32.mrb[0].mxu0
        %v1738 = vadd.f32 %v1421, %v1737
        %v1739 = vpop.f32.mrb[0].mxu0
        %v1740 = vpop.f32.mrb[0].mxu0
        %v1741 = vadd.f32 %v1421, %v1740
        %v1742 = vpop.f32.mrb[0].mxu0
        %1743 = vmatprep.mubr.bf16.mxu0 %v1369
        %1744 = vmatmul.mubr.bf16.gmra.mrb[0].mxu0 %v1368
        %v1745 = vpop.f32.mrb[0].mxu0
        %v1746 = vadd.f32 %v1421, %v1745
        %v1747 = vpop.f32.mrb[0].mxu0
        %v1748 = vpop.f32.mrb[0].mxu0
        %v1749 = vadd.f32 %v1421, %v1748
        %v1750 = vpop.f32.mrb[0].mxu0
        %1751 = vmatprep.mubr.bf16.mxu0 %v1371
        %1752 = vmatmul.mubr.bf16.gmra.mrb[0].mxu0 %v1370
        %v1753 = vpop.f32.mrb[0].mxu0
        %v1754 = vadd.f32 %v1421, %v1753
        %v1755 = vpop.f32.mrb[0].mxu0
        %v1756 = vpop.f32.mrb[0].mxu0
        %v1757 = vadd.f32 %v1421, %v1756
        %v1758 = vpop.f32.mrb[0].mxu0
        %1759 = vmatprep.mubr.bf16.mxu0 %v1373
        %1760 = vmatmul.mubr.bf16.gmra.mrb[0].mxu0 %v1372
        %v1761 = vpop.f32.mrb[0].mxu0
        %v1762 = vadd.f32 %v1421, %v1761
        %v1763 = vpop.f32.mrb[0].mxu0
        %v1764 = vpop.f32.mrb[0].mxu0
        %v1765 = vadd.f32 %v1421, %v1764
        %v1766 = vpop.f32.mrb[0].mxu0
        %1767 = vmatprep.mubr.bf16.mxu0 %v1375
        %1768 = vmatmul.mubr.bf16.gmra.mrb[0].mxu0 %v1374
        %v1769 = vpop.f32.mrb[0].mxu0
        %v1770 = vadd.f32 %v1421, %v1769
        %v1771 = vpop.f32.mrb[0].mxu0
        %v1772 = vpop.f32.mrb[0].mxu0
        %v1773 = vadd.f32 %v1421, %v1772
        %v1774 = vpop.f32.mrb[0].mxu0
        %1775 = vmatprep.mubr.bf16.mxu0 %v1377
        %1776 = vmatmul.mubr.bf16.gmra.mrb[0].mxu0 %v1376
        %v1777 = vpop.f32.mrb[0].mxu0
        %v1778 = vadd.f32 %v1421, %v1777
        %v1779 = vpop.f32.mrb[0].mxu0
        %v1780 = vpop.f32.mrb[0].mxu0
        %v1781 = vadd.f32 %v1421, %v1780
        %v1782 = vpop.f32.mrb[0].mxu0
        %1783 = vmatprep.mubr.bf16.mxu0 %v1379
        %1784 = vmatmul.mubr.bf16.gmra.mrb[0].mxu0 %v1378
        %v1785 = vpop.f32.mrb[0].mxu0
        %v1786 = vadd.f32 %v1421, %v1785
        %v1787 = vpop.f32.mrb[0].mxu0
        %v1788 = vpop.f32.mrb[0].mxu0
        %v1789 = vadd.f32 %v1421, %v1788
        %v1790 = vpop.f32.mrb[0].mxu0
        %1791 = vmatprep.mubr.bf16.mxu0 %v1381
        %1792 = vmatmul.mubr.bf16.gmra.mrb[0].mxu0 %v1380
        %v1793 = vpop.f32.mrb[0].mxu0
        %v1794 = vadd.f32 %v1421, %v1793
        %v1795 = vpop.f32.mrb[0].mxu0
        %v1796 = vpop.f32.mrb[0].mxu0
        %v1797 = vadd.f32 %v1421, %v1796
        %v1798 = vpop.f32.mrb[0].mxu0
        %1799 = vmatprep.mubr.bf16.mxu0 %v1383
        %1800 = vmatmul.mubr.bf16.gmra.mrb[0].mxu0 %v1382
        %v1801 = vpop.f32.mrb[0].mxu0
        %v1802 = vadd.f32 %v1421, %v1801
        %v1803 = vpop.f32.mrb[0].mxu0
        %v1804 = vpop.f32.mrb[0].mxu0
        %v1805 = vadd.f32 %v1421, %v1804
        %v1806 = vpop.f32.mrb[0].mxu0
        %1807 = vdwg.mxu0
        %vm1808 = vcmp.gt.f32.partialorder %v1554, 0.0
        %vm1809 = vcmp.gt.f32.partialorder %v1557, 0.0
        %vm1810 = vcmp.gt.f32.partialorder %v1562, 0.0
        %vm1811 = vcmp.gt.f32.partialorder %v1565, 0.0
        %vm1812 = vcmp.gt.f32.partialorder %v1570, 0.0
        %vm1813 = vcmp.gt.f32.partialorder %v1573, 0.0
        %vm1814 = vcmp.gt.f32.partialorder %v1578, 0.0
        %vm1815 = vcmp.gt.f32.partialorder %v1581, 0.0
        %vm1816 = vcmp.gt.f32.partialorder %v1586, 0.0
        %vm1817 = vcmp.gt.f32.partialorder %v1589, 0.0
        %vm1818 = vcmp.gt.f32.partialorder %v1594, 0.0
        %vm1819 = vcmp.gt.f32.partialorder %v1597, 0.0
        %vm1820 = vcmp.gt.f32.partialorder %v1602, 0.0
        %vm1821 = vcmp.gt.f32.partialorder %v1605, 0.0
        %vm1822 = vcmp.gt.f32.partialorder %v1610, 0.0
        %vm1823 = vcmp.gt.f32.partialorder %v1613, 0.0
        %vm1824 = vcmp.gt.f32.partialorder %v1618, 0.0
        %vm1825 = vcmp.gt.f32.partialorder %v1621, 0.0
        %vm1826 = vcmp.gt.f32.partialorder %v1626, 0.0
        %vm1827 = vcmp.gt.f32.partialorder %v1629, 0.0
        %vm1828 = vcmp.gt.f32.partialorder %v1634, 0.0
        %vm1829 = vcmp.gt.f32.partialorder %v1637, 0.0
        %vm1830 = vcmp.gt.f32.partialorder %v1642, 0.0
        %vm1831 = vcmp.gt.f32.partialorder %v1645, 0.0
        %vm1832 = vcmp.gt.f32.partialorder %v1650, 0.0
        %vm1833 = vcmp.gt.f32.partialorder %v1653, 0.0
        %vm1834 = vcmp.gt.f32.partialorder %v1658, 0.0
        %vm1835 = vcmp.gt.f32.partialorder %v1661, 0.0
        %vm1836 = vcmp.gt.f32.partialorder %v1666, 0.0
        %vm1837 = vcmp.gt.f32.partialorder %v1669, 0.0
        %vm1838 = vcmp.gt.f32.partialorder %v1674, 0.0
        %vm1839 = vcmp.gt.f32.partialorder %v1677, 0.0
        %vm1840 = vcmp.gt.f32.partialorder %v1682, 0.0
        %vm1841 = vcmp.gt.f32.partialorder %v1685, 0.0
        %vm1842 = vcmp.gt.f32.partialorder %v1690, 0.0
        %vm1843 = vcmp.gt.f32.partialorder %v1693, 0.0
        %vm1844 = vcmp.gt.f32.partialorder %v1698, 0.0
        %vm1845 = vcmp.gt.f32.partialorder %v1701, 0.0
        %vm1846 = vcmp.gt.f32.partialorder %v1706, 0.0
        %vm1847 = vcmp.gt.f32.partialorder %v1709, 0.0
        %vm1848 = vcmp.gt.f32.partialorder %v1714, 0.0
        %vm1849 = vcmp.gt.f32.partialorder %v1717, 0.0
        %vm1850 = vcmp.gt.f32.partialorder %v1722, 0.0
        %vm1851 = vcmp.gt.f32.partialorder %v1725, 0.0
        %vm1852 = vcmp.gt.f32.partialorder %v1730, 0.0
        %vm1853 = vcmp.gt.f32.partialorder %v1733, 0.0
        %vm1854 = vcmp.gt.f32.partialorder %v1738, 0.0
        %vm1855 = vcmp.gt.f32.partialorder %v1741, 0.0
        %vm1856 = vcmp.gt.f32.partialorder %v1746, 0.0
        %vm1857 = vcmp.gt.f32.partialorder %v1749, 0.0
        %vm1858 = vcmp.gt.f32.partialorder %v1754, 0.0
        %vm1859 = vcmp.gt.f32.partialorder %v1757, 0.0
        %vm1860 = vcmp.gt.f32.partialorder %v1762, 0.0
        %vm1861 = vcmp.gt.f32.partialorder %v1765, 0.0
        %vm1862 = vcmp.gt.f32.partialorder %v1770, 0.0
        %vm1863 = vcmp.gt.f32.partialorder %v1773, 0.0
        %vm1864 = vcmp.gt.f32.partialorder %v1778, 0.0
        %vm1865 = vcmp.gt.f32.partialorder %v1781, 0.0
        %vm1866 = vcmp.gt.f32.partialorder %v1786, 0.0
        %vm1867 = vcmp.gt.f32.partialorder %v1789, 0.0
        %vm1868 = vcmp.gt.f32.partialorder %v1794, 0.0
        %vm1869 = vcmp.gt.f32.partialorder %v1797, 0.0
        %vm1870 = vcmp.gt.f32.partialorder %v1802, 0.0
        %vm1871 = vcmp.gt.f32.partialorder %v1805, 0.0
        %v1872 = vmul.f32 %v1554, 0.2
        %v1873 = vmul.f32 %v1557, 0.2
        %v1874 = vmul.f32 %v1562, 0.2
        %v1875 = vmul.f32 %v1565, 0.2
        %v1876 = vmul.f32 %v1570, 0.2
        %v1877 = vmul.f32 %v1573, 0.2
        %v1878 = vmul.f32 %v1578, 0.2
        %v1879 = vmul.f32 %v1581, 0.2
        %v1880 = vmul.f32 %v1586, 0.2
        %v1881 = vmul.f32 %v1589, 0.2
        %v1882 = vmul.f32 %v1594, 0.2
        %v1883 = vmul.f32 %v1597, 0.2
        %v1884 = vmul.f32 %v1602, 0.2
        %v1885 = vmul.f32 %v1605, 0.2
        %v1886 = vmul.f32 %v1610, 0.2
        %v1887 = vmul.f32 %v1613, 0.2
        %v1888 = vmul.f32 %v1618, 0.2
        %v1889 = vmul.f32 %v1621, 0.2
        %v1890 = vmul.f32 %v1626, 0.2
        %v1891 = vmul.f32 %v1629, 0.2
        %v1892 = vmul.f32 %v1634, 0.2
        %v1893 = vmul.f32 %v1637, 0.2
        %v1894 = vmul.f32 %v1642, 0.2
        %v1895 = vmul.f32 %v1645, 0.2
        %v1896 = vmul.f32 %v1650, 0.2
        %v1897 = vmul.f32 %v1653, 0.2
        %v1898 = vmul.f32 %v1658, 0.2
        %v1899 = vmul.f32 %v1661, 0.2
        %v1900 = vmul.f32 %v1666, 0.2
        %v1901 = vmul.f32 %v1669, 0.2
        %v1902 = vmul.f32 %v1674, 0.2
        %v1903 = vmul.f32 %v1677, 0.2
        %v1904 = vmul.f32 %v1682, 0.2
        %v1905 = vmul.f32 %v1685, 0.2
        %v1906 = vmul.f32 %v1690, 0.2
        %v1907 = vmul.f32 %v1693, 0.2
        %v1908 = vmul.f32 %v1698, 0.2
        %v1909 = vmul.f32 %v1701, 0.2
        %v1910 = vmul.f32 %v1706, 0.2
        %v1911 = vmul.f32 %v1709, 0.2
        %v1912 = vmul.f32 %v1714, 0.2
        %v1913 = vmul.f32 %v1717, 0.2
        %v1914 = vmul.f32 %v1722, 0.2
        %v1915 = vmul.f32 %v1725, 0.2
        %v1916 = vmul.f32 %v1730, 0.2
        %v1917 = vmul.f32 %v1733, 0.2
        %v1918 = vmul.f32 %v1738, 0.2
        %v1919 = vmul.f32 %v1741, 0.2
        %v1920 = vmul.f32 %v1746, 0.2
        %v1921 = vmul.f32 %v1749, 0.2
        %v1922 = vmul.f32 %v1754, 0.2
        %v1923 = vmul.f32 %v1757, 0.2
        %v1924 = vmul.f32 %v1762, 0.2
        %v1925 = vmul.f32 %v1765, 0.2
        %v1926 = vmul.f32 %v1770, 0.2
        %v1927 = vmul.f32 %v1773, 0.2
        %v1928 = vmul.f32 %v1778, 0.2
        %v1929 = vmul.f32 %v1781, 0.2
        %v1930 = vmul.f32 %v1786, 0.2
        %v1931 = vmul.f32 %v1789, 0.2
        %v1932 = vmul.f32 %v1794, 0.2
        %v1933 = vmul.f32 %v1797, 0.2
        %v1934 = vmul.f32 %v1802, 0.2
        %v1935 = vmul.f32 %v1805, 0.2
        %v1936 = vsel %vm1808, %v1554, %v1872
        %v1937 = vsel %vm1809, %v1557, %v1873
        %v1938 = vsel %vm1810, %v1562, %v1874
        %v1939 = vsel %vm1811, %v1565, %v1875
        %v1940 = vsel %vm1812, %v1570, %v1876
        %v1941 = vsel %vm1813, %v1573, %v1877
        %v1942 = vsel %vm1814, %v1578, %v1878
        %v1943 = vsel %vm1815, %v1581, %v1879
        %v1944 = vsel %vm1816, %v1586, %v1880
        %v1945 = vsel %vm1817, %v1589, %v1881
        %v1946 = vsel %vm1818, %v1594, %v1882
        %v1947 = vsel %vm1819, %v1597, %v1883
        %v1948 = vsel %vm1820, %v1602, %v1884
        %v1949 = vsel %vm1821, %v1605, %v1885
        %v1950 = vsel %vm1822, %v1610, %v1886
        %v1951 = vsel %vm1823, %v1613, %v1887
        %v1952 = vsel %vm1824, %v1618, %v1888
        %v1953 = vsel %vm1825, %v1621, %v1889
        %v1954 = vsel %vm1826, %v1626, %v1890
        %v1955 = vsel %vm1827, %v1629, %v1891
        %v1956 = vsel %vm1828, %v1634, %v1892
        %v1957 = vsel %vm1829, %v1637, %v1893
        %v1958 = vsel %vm1830, %v1642, %v1894
        %v1959 = vsel %vm1831, %v1645, %v1895
        %v1960 = vsel %vm1832, %v1650, %v1896
        %v1961 = vsel %vm1833, %v1653, %v1897
        %v1962 = vsel %vm1834, %v1658, %v1898
        %v1963 = vsel %vm1835, %v1661, %v1899
        %v1964 = vsel %vm1836, %v1666, %v1900
        %v1965 = vsel %vm1837, %v1669, %v1901
        %v1966 = vsel %vm1838, %v1674, %v1902
        %v1967 = vsel %vm1839, %v1677, %v1903
        %v1968 = vsel %vm1840, %v1682, %v1904
        %v1969 = vsel %vm1841, %v1685, %v1905
        %v1970 = vsel %vm1842, %v1690, %v1906
        %v1971 = vsel %vm1843, %v1693, %v1907
        %v1972 = vsel %vm1844, %v1698, %v1908
        %v1973 = vsel %vm1845, %v1701, %v1909
        %v1974 = vsel %vm1846, %v1706, %v1910
        %v1975 = vsel %vm1847, %v1709, %v1911
        %v1976 = vsel %vm1848, %v1714, %v1912
        %v1977 = vsel %vm1849, %v1717, %v1913
        %v1978 = vsel %vm1850, %v1722, %v1914
        %v1979 = vsel %vm1851, %v1725, %v1915
        %v1980 = vsel %vm1852, %v1730, %v1916
        %v1981 = vsel %vm1853, %v1733, %v1917
        %v1982 = vsel %vm1854, %v1738, %v1918
        %v1983 = vsel %vm1855, %v1741, %v1919
        %v1984 = vsel %vm1856, %v1746, %v1920
        %v1985 = vsel %vm1857, %v1749, %v1921
        %v1986 = vsel %vm1858, %v1754, %v1922
        %v1987 = vsel %vm1859, %v1757, %v1923
        %v1988 = vsel %vm1860, %v1762, %v1924
        %v1989 = vsel %vm1861, %v1765, %v1925
        %v1990 = vsel %vm1862, %v1770, %v1926
        %v1991 = vsel %vm1863, %v1773, %v1927
        %v1992 = vsel %vm1864, %v1778, %v1928
        %v1993 = vsel %vm1865, %v1781, %v1929
        %v1994 = vsel %vm1866, %v1786, %v1930
        %v1995 = vsel %vm1867, %v1789, %v1931
        %v1996 = vsel %vm1868, %v1794, %v1932
        %v1997 = vsel %vm1869, %v1797, %v1933
        %v1998 = vsel %vm1870, %v1802, %v1934
        %v1999 = vsel %vm1871, %v1805, %v1935
        %v2000 = vpack.c.bf16 %v1937, %v1936
        %v2001 = vpack.c.bf16 %v1939, %v1938
        %v2002 = vpack.c.bf16 %v1941, %v1940
        %v2003 = vpack.c.bf16 %v1943, %v1942
        %v2004 = vpack.c.bf16 %v1945, %v1944
        %v2005 = vpack.c.bf16 %v1947, %v1946
        %v2006 = vpack.c.bf16 %v1949, %v1948
        %v2007 = vpack.c.bf16 %v1951, %v1950
        %v2008 = vpack.c.bf16 %v1953, %v1952
        %v2009 = vpack.c.bf16 %v1955, %v1954
        %v2010 = vpack.c.bf16 %v1957, %v1956
        %v2011 = vpack.c.bf16 %v1959, %v1958
        %v2012 = vpack.c.bf16 %v1961, %v1960
        %v2013 = vpack.c.bf16 %v1963, %v1962
        %v2014 = vpack.c.bf16 %v1965, %v1964
        %v2015 = vpack.c.bf16 %v1967, %v1966
        %v2016 = vpack.c.bf16 %v1969, %v1968
        %v2017 = vpack.c.bf16 %v1971, %v1970
        %v2018 = vpack.c.bf16 %v1973, %v1972
        %v2019 = vpack.c.bf16 %v1975, %v1974
        %v2020 = vpack.c.bf16 %v1977, %v1976
        %v2021 = vpack.c.bf16 %v1979, %v1978
        %v2022 = vpack.c.bf16 %v1981, %v1980
        %v2023 = vpack.c.bf16 %v1983, %v1982
        %v2024 = vpack.c.bf16 %v1985, %v1984
        %v2025 = vpack.c.bf16 %v1987, %v1986
        %v2026 = vpack.c.bf16 %v1989, %v1988
        %v2027 = vpack.c.bf16 %v1991, %v1990
        %v2028 = vpack.c.bf16 %v1993, %v1992
        %v2029 = vpack.c.bf16 %v1995, %v1994
        %v2030 = vpack.c.bf16 %v1997, %v1996
        %v2031 = vpack.c.bf16 %v1999, %v1998
        %v2032 = vld [vmem:[%s5] sm:$0xf]
        %v2033 = vld [vmem:[%s5 + $0x4] sm:$0xf]
        %v2034 = vld [vmem:[%s5 + $0x8] sm:$0xf]
        %v2035 = vld [vmem:[%s5 + $0xc] sm:$0xf]
        %v2036 = vld [vmem:[%s5 + $0x10] sm:$0xf]
        %v2037 = vld [vmem:[%s5 + $0x14] sm:$0xf]
        %v2038 = vld [vmem:[%s5 + $0x18] sm:$0xf]
        %v2039 = vld [vmem:[%s5 + $0x1c] sm:$0xf]
        %v2040 = vld [vmem:[%s5 + $0x20] sm:$0xf]
        %v2041 = vld [vmem:[%s5 + $0x24] sm:$0xf]
        %v2042 = vld [vmem:[%s5 + $0x28] sm:$0xf]
        %v2043 = vld [vmem:[%s5 + $0x2c] sm:$0xf]
        %v2044 = vld [vmem:[%s5 + $0x30] sm:$0xf]
        %v2045 = vld [vmem:[%s5 + $0x34] sm:$0xf]
        %v2046 = vld [vmem:[%s5 + $0x38] sm:$0xf]
        %v2047 = vld [vmem:[%s5 + $0x3c] sm:$0xf]
        %v2048 = vld [vmem:[%s6] sm:$0x1]
        %v2050 = vlaneseq
        %v2051 = vshrl.u32 %v2050, 7
        %v2052 = vsub.s32 0, %v2051
        %v2053 = vrot.slane %v2048, %v2052
        %v2071 = vunpack.c.l.b16 %v2032
        %v2072 = vunpack.c.l.b16 %v2033
        %v2073 = vunpack.c.l.b16 %v2034
        %v2074 = vunpack.c.l.b16 %v2035
        %v2075 = vunpack.c.l.b16 %v2036
        %v2076 = vunpack.c.l.b16 %v2037
        %v2077 = vunpack.c.l.b16 %v2038
        %v2078 = vunpack.c.l.b16 %v2039
        %v2079 = vunpack.c.l.b16 %v2040
        %v2080 = vunpack.c.l.b16 %v2041
        %v2081 = vunpack.c.l.b16 %v2042
        %v2082 = vunpack.c.l.b16 %v2043
        %v2083 = vunpack.c.l.b16 %v2044
        %v2084 = vunpack.c.l.b16 %v2045
        %v2085 = vunpack.c.l.b16 %v2046
        %v2086 = vunpack.c.l.b16 %v2047
        %v2087 = vpack.c.b16 %v2072, %v2071
        %v2088 = vpack.c.b16 %v2074, %v2073
        %v2089 = vpack.c.b16 %v2076, %v2075
        %v2090 = vpack.c.b16 %v2078, %v2077
        %v2091 = vpack.c.b16 %v2080, %v2079
        %v2092 = vpack.c.b16 %v2082, %v2081
        %v2093 = vpack.c.b16 %v2084, %v2083
        %v2094 = vpack.c.b16 %v2086, %v2085
        %2103 = vmatprep.subr.bf16.mxu0 0
        %2104 = vmatpush1.bf16.msra.mxu0 %v2087
        %2105 = vmatprep.subr.bf16.mxu0 0
        %2106 = vmatpush1.bf16.msra.mxu0 %v2088
        %2107 = vmatprep.subr.bf16.mxu0 0
        %2108 = vmatpush1.bf16.msra.mxu0 %v2089
        %2109 = vmatprep.subr.bf16.mxu0 0
        %2110 = vmatpush1.bf16.msra.mxu0 %v2090
        %2111 = vmatprep.subr.bf16.mxu0 0
        %2112 = vmatpush1.bf16.msra.mxu0 %v2091
        %2113 = vmatprep.subr.bf16.mxu0 0
        %2114 = vmatpush1.bf16.msra.mxu0 %v2092
        %2115 = vmatprep.subr.bf16.mxu0 0
        %2116 = vmatpush1.bf16.msra.mxu0 %v2093
        %2117 = vmatprep.subr.bf16.mxu0 0
        %2118 = vmatpush1.bf16.msra.mxu0 %v2094
        %2119 = vmatprep.subr.bf16.mxu0 0
        %2120 = vmatpush1.bf16.msra.mxu0 0
        %2121 = vmatprep.subr.bf16.mxu0 0
        %2122 = vmatpush1.bf16.msra.mxu0 0
        %2123 = vmatprep.subr.bf16.mxu0 0
        %2124 = vmatpush1.bf16.msra.mxu0 0
        %2125 = vmatprep.subr.bf16.mxu0 0
        %2126 = vmatpush1.bf16.msra.mxu0 0
        %2127 = vmatprep.subr.bf16.mxu0 0
        %2128 = vmatpush1.bf16.msra.mxu0 0
        %2129 = vmatprep.subr.bf16.mxu0 0
        %2130 = vmatpush1.bf16.msra.mxu0 0
        %2131 = vmatprep.subr.bf16.mxu0 0
        %2132 = vmatpush1.bf16.msra.mxu0 0
        %2133 = vmatprep.subr.bf16.mxu0 0
        %2134 = vmatpush1.bf16.msra.mxu0 0
        %2135 = vmatprep.mubr.bf16.mxu0 0
        %2136 = vmatmul.mubr.bf16.gmra.mrb[0].mxu0 %v2000
        %v2137 = vpop.f32.mrb[0].mxu0
        %v2138 = vadd.f32 %v2053, %v2137
        %v2139 = vpop.f32.mrb[0].mxu0
        %v2140 = vpop.f32.mrb[0].mxu0
        %v2141 = vadd.f32 %v2053, %v2140
        %v2142 = vpop.f32.mrb[0].mxu0
        %2143 = vmatprep.mubr.bf16.mxu0 0
        %2144 = vmatmul.mubr.bf16.gmra.mrb[0].mxu0 %v2001
        %v2145 = vpop.f32.mrb[0].mxu0
        %v2146 = vadd.f32 %v2053, %v2145
        %v2147 = vpop.f32.mrb[0].mxu0
        %v2148 = vpop.f32.mrb[0].mxu0
        %v2149 = vadd.f32 %v2053, %v2148
        %v2150 = vpop.f32.mrb[0].mxu0
        %2151 = vmatprep.mubr.bf16.mxu0 0
        %2152 = vmatmul.mubr.bf16.gmra.mrb[0].mxu0 %v2002
        %v2153 = vpop.f32.mrb[0].mxu0
        %v2154 = vadd.f32 %v2053, %v2153
        %v2155 = vpop.f32.mrb[0].mxu0
        %v2156 = vpop.f32.mrb[0].mxu0
        %v2157 = vadd.f32 %v2053, %v2156
        %v2158 = vpop.f32.mrb[0].mxu0
        %2159 = vmatprep.mubr.bf16.mxu0 0
        %2160 = vmatmul.mubr.bf16.gmra.mrb[0].mxu0 %v2003
        %v2161 = vpop.f32.mrb[0].mxu0
        %v2162 = vadd.f32 %v2053, %v2161
        %v2163 = vpop.f32.mrb[0].mxu0
        %v2164 = vpop.f32.mrb[0].mxu0
        %v2165 = vadd.f32 %v2053, %v2164
        %v2166 = vpop.f32.mrb[0].mxu0
        %2167 = vmatprep.mubr.bf16.mxu0 0
        %2168 = vmatmul.mubr.bf16.gmra.mrb[0].mxu0 %v2004
        %v2169 = vpop.f32.mrb[0].mxu0
        %v2170 = vadd.f32 %v2053, %v2169
        %v2171 = vpop.f32.mrb[0].mxu0
        %v2172 = vpop.f32.mrb[0].mxu0
        %v2173 = vadd.f32 %v2053, %v2172
        %v2174 = vpop.f32.mrb[0].mxu0
        %2175 = vmatprep.mubr.bf16.mxu0 0
        %2176 = vmatmul.mubr.bf16.gmra.mrb[0].mxu0 %v2005
        %v2177 = vpop.f32.mrb[0].mxu0
        %v2178 = vadd.f32 %v2053, %v2177
        %v2179 = vpop.f32.mrb[0].mxu0
        %v2180 = vpop.f32.mrb[0].mxu0
        %v2181 = vadd.f32 %v2053, %v2180
        %v2182 = vpop.f32.mrb[0].mxu0
        %2183 = vmatprep.mubr.bf16.mxu0 0
        %2184 = vmatmul.mubr.bf16.gmra.mrb[0].mxu0 %v2006
        %v2185 = vpop.f32.mrb[0].mxu0
        %v2186 = vadd.f32 %v2053, %v2185
        %v2187 = vpop.f32.mrb[0].mxu0
        %v2188 = vpop.f32.mrb[0].mxu0
        %v2189 = vadd.f32 %v2053, %v2188
        %v2190 = vpop.f32.mrb[0].mxu0
        %2191 = vmatprep.mubr.bf16.mxu0 0
        %2192 = vmatmul.mubr.bf16.gmra.mrb[0].mxu0 %v2007
        %v2193 = vpop.f32.mrb[0].mxu0
        %v2194 = vadd.f32 %v2053, %v2193
        %v2195 = vpop.f32.mrb[0].mxu0
        %v2196 = vpop.f32.mrb[0].mxu0
        %v2197 = vadd.f32 %v2053, %v2196
        %v2198 = vpop.f32.mrb[0].mxu0
        %2199 = vmatprep.mubr.bf16.mxu0 0
        %2200 = vmatmul.mubr.bf16.gmra.mrb[0].mxu0 %v2008
        %v2201 = vpop.f32.mrb[0].mxu0
        %v2202 = vadd.f32 %v2053, %v2201
        %v2203 = vpop.f32.mrb[0].mxu0
        %v2204 = vpop.f32.mrb[0].mxu0
        %v2205 = vadd.f32 %v2053, %v2204
        %v2206 = vpop.f32.mrb[0].mxu0
        %2207 = vmatprep.mubr.bf16.mxu0 0
        %2208 = vmatmul.mubr.bf16.gmra.mrb[0].mxu0 %v2009
        %v2209 = vpop.f32.mrb[0].mxu0
        %v2210 = vadd.f32 %v2053, %v2209
        %v2211 = vpop.f32.mrb[0].mxu0
        %v2212 = vpop.f32.mrb[0].mxu0
        %v2213 = vadd.f32 %v2053, %v2212
        %v2214 = vpop.f32.mrb[0].mxu0
        %2215 = vmatprep.mubr.bf16.mxu0 0
        %2216 = vmatmul.mubr.bf16.gmra.mrb[0].mxu0 %v2010
        %v2217 = vpop.f32.mrb[0].mxu0
        %v2218 = vadd.f32 %v2053, %v2217
        %v2219 = vpop.f32.mrb[0].mxu0
        %v2220 = vpop.f32.mrb[0].mxu0
        %v2221 = vadd.f32 %v2053, %v2220
        %v2222 = vpop.f32.mrb[0].mxu0
        %2223 = vmatprep.mubr.bf16.mxu0 0
        %2224 = vmatmul.mubr.bf16.gmra.mrb[0].mxu0 %v2011
        %v2225 = vpop.f32.mrb[0].mxu0
        %v2226 = vadd.f32 %v2053, %v2225
        %v2227 = vpop.f32.mrb[0].mxu0
        %v2228 = vpop.f32.mrb[0].mxu0
        %v2229 = vadd.f32 %v2053, %v2228
        %v2230 = vpop.f32.mrb[0].mxu0
        %2231 = vmatprep.mubr.bf16.mxu0 0
        %2232 = vmatmul.mubr.bf16.gmra.mrb[0].mxu0 %v2012
        %v2233 = vpop.f32.mrb[0].mxu0
        %v2234 = vadd.f32 %v2053, %v2233
        %v2235 = vpop.f32.mrb[0].mxu0
        %v2236 = vpop.f32.mrb[0].mxu0
        %v2237 = vadd.f32 %v2053, %v2236
        %v2238 = vpop.f32.mrb[0].mxu0
        %2239 = vmatprep.mubr.bf16.mxu0 0
        %2240 = vmatmul.mubr.bf16.gmra.mrb[0].mxu0 %v2013
        %v2241 = vpop.f32.mrb[0].mxu0
        %v2242 = vadd.f32 %v2053, %v2241
        %v2243 = vpop.f32.mrb[0].mxu0
        %v2244 = vpop.f32.mrb[0].mxu0
        %v2245 = vadd.f32 %v2053, %v2244
        %v2246 = vpop.f32.mrb[0].mxu0
        %2247 = vmatprep.mubr.bf16.mxu0 0
        %2248 = vmatmul.mubr.bf16.gmra.mrb[0].mxu0 %v2014
        %v2249 = vpop.f32.mrb[0].mxu0
        %v2250 = vadd.f32 %v2053, %v2249
        %v2251 = vpop.f32.mrb[0].mxu0
        %v2252 = vpop.f32.mrb[0].mxu0
        %v2253 = vadd.f32 %v2053, %v2252
        %v2254 = vpop.f32.mrb[0].mxu0
        %2255 = vmatprep.mubr.bf16.mxu0 0
        %2256 = vmatmul.mubr.bf16.gmra.mrb[0].mxu0 %v2015
        %v2257 = vpop.f32.mrb[0].mxu0
        %v2258 = vadd.f32 %v2053, %v2257
        %v2259 = vpop.f32.mrb[0].mxu0
        %v2260 = vpop.f32.mrb[0].mxu0
        %v2261 = vadd.f32 %v2053, %v2260
        %v2262 = vpop.f32.mrb[0].mxu0
        %2263 = vmatprep.mubr.bf16.mxu0 0
        %2264 = vmatmul.mubr.bf16.gmra.mrb[0].mxu0 %v2016
        %v2265 = vpop.f32.mrb[0].mxu0
        %v2266 = vadd.f32 %v2053, %v2265
        %v2267 = vpop.f32.mrb[0].mxu0
        %v2268 = vpop.f32.mrb[0].mxu0
        %v2269 = vadd.f32 %v2053, %v2268
        %v2270 = vpop.f32.mrb[0].mxu0
        %2271 = vmatprep.mubr.bf16.mxu0 0
        %2272 = vmatmul.mubr.bf16.gmra.mrb[0].mxu0 %v2017
        %v2273 = vpop.f32.mrb[0].mxu0
        %v2274 = vadd.f32 %v2053, %v2273
        %v2275 = vpop.f32.mrb[0].mxu0
        %v2276 = vpop.f32.mrb[0].mxu0
        %v2277 = vadd.f32 %v2053, %v2276
        %v2278 = vpop.f32.mrb[0].mxu0
        %2279 = vmatprep.mubr.bf16.mxu0 0
        %2280 = vmatmul.mubr.bf16.gmra.mrb[0].mxu0 %v2018
        %v2281 = vpop.f32.mrb[0].mxu0
        %v2282 = vadd.f32 %v2053, %v2281
        %v2283 = vpop.f32.mrb[0].mxu0
        %v2284 = vpop.f32.mrb[0].mxu0
        %v2285 = vadd.f32 %v2053, %v2284
        %v2286 = vpop.f32.mrb[0].mxu0
        %2287 = vmatprep.mubr.bf16.mxu0 0
        %2288 = vmatmul.mubr.bf16.gmra.mrb[0].mxu0 %v2019
        %v2289 = vpop.f32.mrb[0].mxu0
        %v2290 = vadd.f32 %v2053, %v2289
        %v2291 = vpop.f32.mrb[0].mxu0
        %v2292 = vpop.f32.mrb[0].mxu0
        %v2293 = vadd.f32 %v2053, %v2292
        %v2294 = vpop.f32.mrb[0].mxu0
        %2295 = vmatprep.mubr.bf16.mxu0 0
        %2296 = vmatmul.mubr.bf16.gmra.mrb[0].mxu0 %v2020
        %v2297 = vpop.f32.mrb[0].mxu0
        %v2298 = vadd.f32 %v2053, %v2297
        %v2299 = vpop.f32.mrb[0].mxu0
        %v2300 = vpop.f32.mrb[0].mxu0
        %v2301 = vadd.f32 %v2053, %v2300
        %v2302 = vpop.f32.mrb[0].mxu0
        %2303 = vmatprep.mubr.bf16.mxu0 0
        %2304 = vmatmul.mubr.bf16.gmra.mrb[0].mxu0 %v2021
        %v2305 = vpop.f32.mrb[0].mxu0
        %v2306 = vadd.f32 %v2053, %v2305
        %v2307 = vpop.f32.mrb[0].mxu0
        %v2308 = vpop.f32.mrb[0].mxu0
        %v2309 = vadd.f32 %v2053, %v2308
        %v2310 = vpop.f32.mrb[0].mxu0
        %2311 = vmatprep.mubr.bf16.mxu0 0
        %2312 = vmatmul.mubr.bf16.gmra.mrb[0].mxu0 %v2022
        %v2313 = vpop.f32.mrb[0].mxu0
        %v2314 = vadd.f32 %v2053, %v2313
        %v2315 = vpop.f32.mrb[0].mxu0
        %v2316 = vpop.f32.mrb[0].mxu0
        %v2317 = vadd.f32 %v2053, %v2316
        %v2318 = vpop.f32.mrb[0].mxu0
        %2319 = vmatprep.mubr.bf16.mxu0 0
        %2320 = vmatmul.mubr.bf16.gmra.mrb[0].mxu0 %v2023
        %v2321 = vpop.f32.mrb[0].mxu0
        %v2322 = vadd.f32 %v2053, %v2321
        %v2323 = vpop.f32.mrb[0].mxu0
        %v2324 = vpop.f32.mrb[0].mxu0
        %v2325 = vadd.f32 %v2053, %v2324
        %v2326 = vpop.f32.mrb[0].mxu0
        %2327 = vmatprep.mubr.bf16.mxu0 0
        %2328 = vmatmul.mubr.bf16.gmra.mrb[0].mxu0 %v2024
        %v2329 = vpop.f32.mrb[0].mxu0
        %v2330 = vadd.f32 %v2053, %v2329
        %v2331 = vpop.f32.mrb[0].mxu0
        %v2332 = vpop.f32.mrb[0].mxu0
        %v2333 = vadd.f32 %v2053, %v2332
        %v2334 = vpop.f32.mrb[0].mxu0
        %2335 = vmatprep.mubr.bf16.mxu0 0
        %2336 = vmatmul.mubr.bf16.gmra.mrb[0].mxu0 %v2025
        %v2337 = vpop.f32.mrb[0].mxu0
        %v2338 = vadd.f32 %v2053, %v2337
        %v2339 = vpop.f32.mrb[0].mxu0
        %v2340 = vpop.f32.mrb[0].mxu0
        %v2341 = vadd.f32 %v2053, %v2340
        %v2342 = vpop.f32.mrb[0].mxu0
        %2343 = vmatprep.mubr.bf16.mxu0 0
        %2344 = vmatmul.mubr.bf16.gmra.mrb[0].mxu0 %v2026
        %v2345 = vpop.f32.mrb[0].mxu0
        %v2346 = vadd.f32 %v2053, %v2345
        %v2347 = vpop.f32.mrb[0].mxu0
        %v2348 = vpop.f32.mrb[0].mxu0
        %v2349 = vadd.f32 %v2053, %v2348
        %v2350 = vpop.f32.mrb[0].mxu0
        %2351 = vmatprep.mubr.bf16.mxu0 0
        %2352 = vmatmul.mubr.bf16.gmra.mrb[0].mxu0 %v2027
        %v2353 = vpop.f32.mrb[0].mxu0
        %v2354 = vadd.f32 %v2053, %v2353
        %v2355 = vpop.f32.mrb[0].mxu0
        %v2356 = vpop.f32.mrb[0].mxu0
        %v2357 = vadd.f32 %v2053, %v2356
        %v2358 = vpop.f32.mrb[0].mxu0
        %2359 = vmatprep.mubr.bf16.mxu0 0
        %2360 = vmatmul.mubr.bf16.gmra.mrb[0].mxu0 %v2028
        %v2361 = vpop.f32.mrb[0].mxu0
        %v2362 = vadd.f32 %v2053, %v2361
        %v2363 = vpop.f32.mrb[0].mxu0
        %v2364 = vpop.f32.mrb[0].mxu0
        %v2365 = vadd.f32 %v2053, %v2364
        %v2366 = vpop.f32.mrb[0].mxu0
        %2367 = vmatprep.mubr.bf16.mxu0 0
        %2368 = vmatmul.mubr.bf16.gmra.mrb[0].mxu0 %v2029
        %v2369 = vpop.f32.mrb[0].mxu0
        %v2370 = vadd.f32 %v2053, %v2369
        %v2371 = vpop.f32.mrb[0].mxu0
        %v2372 = vpop.f32.mrb[0].mxu0
        %v2373 = vadd.f32 %v2053, %v2372
        %v2374 = vpop.f32.mrb[0].mxu0
        %2375 = vmatprep.mubr.bf16.mxu0 0
        %2376 = vmatmul.mubr.bf16.gmra.mrb[0].mxu0 %v2030
        %v2377 = vpop.f32.mrb[0].mxu0
        %v2378 = vadd.f32 %v2053, %v2377
        %v2379 = vpop.f32.mrb[0].mxu0
        %v2380 = vpop.f32.mrb[0].mxu0
        %v2381 = vadd.f32 %v2053, %v2380
        %v2382 = vpop.f32.mrb[0].mxu0
        %2383 = vmatprep.mubr.bf16.mxu0 0
        %2384 = vmatmul.mubr.bf16.gmra.mrb[0].mxu0 %v2031
        %v2385 = vpop.f32.mrb[0].mxu0
        %v2386 = vadd.f32 %v2053, %v2385
        %v2387 = vpop.f32.mrb[0].mxu0
        %v2388 = vpop.f32.mrb[0].mxu0
        %v2389 = vadd.f32 %v2053, %v2388
        %v2390 = vpop.f32.mrb[0].mxu0
        %2391 = vdwg.mxu0
        %vm2392 = vcmp.gt.f32.partialorder %v2138, 0.0
        %vm2393 = vcmp.gt.f32.partialorder %v2141, 0.0
        %vm2394 = vcmp.gt.f32.partialorder %v2146, 0.0
        %vm2395 = vcmp.gt.f32.partialorder %v2149, 0.0
        %vm2396 = vcmp.gt.f32.partialorder %v2154, 0.0
        %vm2397 = vcmp.gt.f32.partialorder %v2157, 0.0
        %vm2398 = vcmp.gt.f32.partialorder %v2162, 0.0
        %vm2399 = vcmp.gt.f32.partialorder %v2165, 0.0
        %vm2400 = vcmp.gt.f32.partialorder %v2170, 0.0
        %vm2401 = vcmp.gt.f32.partialorder %v2173, 0.0
        %vm2402 = vcmp.gt.f32.partialorder %v2178, 0.0
        %vm2403 = vcmp.gt.f32.partialorder %v2181, 0.0
        %vm2404 = vcmp.gt.f32.partialorder %v2186, 0.0
        %vm2405 = vcmp.gt.f32.partialorder %v2189, 0.0
        %vm2406 = vcmp.gt.f32.partialorder %v2194, 0.0
        %vm2407 = vcmp.gt.f32.partialorder %v2197, 0.0
        %vm2408 = vcmp.gt.f32.partialorder %v2202, 0.0
        %vm2409 = vcmp.gt.f32.partialorder %v2205, 0.0
        %vm2410 = vcmp.gt.f32.partialorder %v2210, 0.0
        %vm2411 = vcmp.gt.f32.partialorder %v2213, 0.0
        %vm2412 = vcmp.gt.f32.partialorder %v2218, 0.0
        %vm2413 = vcmp.gt.f32.partialorder %v2221, 0.0
        %vm2414 = vcmp.gt.f32.partialorder %v2226, 0.0
        %vm2415 = vcmp.gt.f32.partialorder %v2229, 0.0
        %vm2416 = vcmp.gt.f32.partialorder %v2234, 0.0
        %vm2417 = vcmp.gt.f32.partialorder %v2237, 0.0
        %vm2418 = vcmp.gt.f32.partialorder %v2242, 0.0
        %vm2419 = vcmp.gt.f32.partialorder %v2245, 0.0
        %vm2420 = vcmp.gt.f32.partialorder %v2250, 0.0
        %vm2421 = vcmp.gt.f32.partialorder %v2253, 0.0
        %vm2422 = vcmp.gt.f32.partialorder %v2258, 0.0
        %vm2423 = vcmp.gt.f32.partialorder %v2261, 0.0
        %vm2424 = vcmp.gt.f32.partialorder %v2266, 0.0
        %vm2425 = vcmp.gt.f32.partialorder %v2269, 0.0
        %vm2426 = vcmp.gt.f32.partialorder %v2274, 0.0
        %vm2427 = vcmp.gt.f32.partialorder %v2277, 0.0
        %vm2428 = vcmp.gt.f32.partialorder %v2282, 0.0
        %vm2429 = vcmp.gt.f32.partialorder %v2285, 0.0
        %vm2430 = vcmp.gt.f32.partialorder %v2290, 0.0
        %vm2431 = vcmp.gt.f32.partialorder %v2293, 0.0
        %vm2432 = vcmp.gt.f32.partialorder %v2298, 0.0
        %vm2433 = vcmp.gt.f32.partialorder %v2301, 0.0
        %vm2434 = vcmp.gt.f32.partialorder %v2306, 0.0
        %vm2435 = vcmp.gt.f32.partialorder %v2309, 0.0
        %vm2436 = vcmp.gt.f32.partialorder %v2314, 0.0
        %vm2437 = vcmp.gt.f32.partialorder %v2317, 0.0
        %vm2438 = vcmp.gt.f32.partialorder %v2322, 0.0
        %vm2439 = vcmp.gt.f32.partialorder %v2325, 0.0
        %vm2440 = vcmp.gt.f32.partialorder %v2330, 0.0
        %vm2441 = vcmp.gt.f32.partialorder %v2333, 0.0
        %vm2442 = vcmp.gt.f32.partialorder %v2338, 0.0
        %vm2443 = vcmp.gt.f32.partialorder %v2341, 0.0
        %vm2444 = vcmp.gt.f32.partialorder %v2346, 0.0
        %vm2445 = vcmp.gt.f32.partialorder %v2349, 0.0
        %vm2446 = vcmp.gt.f32.partialorder %v2354, 0.0
        %vm2447 = vcmp.gt.f32.partialorder %v2357, 0.0
        %vm2448 = vcmp.gt.f32.partialorder %v2362, 0.0
        %vm2449 = vcmp.gt.f32.partialorder %v2365, 0.0
        %vm2450 = vcmp.gt.f32.partialorder %v2370, 0.0
        %vm2451 = vcmp.gt.f32.partialorder %v2373, 0.0
        %vm2452 = vcmp.gt.f32.partialorder %v2378, 0.0
        %vm2453 = vcmp.gt.f32.partialorder %v2381, 0.0
        %vm2454 = vcmp.gt.f32.partialorder %v2386, 0.0
        %vm2455 = vcmp.gt.f32.partialorder %v2389, 0.0
        %v2456 = vmul.f32 %v2138, 0.2
        %v2457 = vmul.f32 %v2141, 0.2
        %v2458 = vmul.f32 %v2146, 0.2
        %v2459 = vmul.f32 %v2149, 0.2
        %v2460 = vmul.f32 %v2154, 0.2
        %v2461 = vmul.f32 %v2157, 0.2
        %v2462 = vmul.f32 %v2162, 0.2
        %v2463 = vmul.f32 %v2165, 0.2
        %v2464 = vmul.f32 %v2170, 0.2
        %v2465 = vmul.f32 %v2173, 0.2
        %v2466 = vmul.f32 %v2178, 0.2
        %v2467 = vmul.f32 %v2181, 0.2
        %v2468 = vmul.f32 %v2186, 0.2
        %v2469 = vmul.f32 %v2189, 0.2
        %v2470 = vmul.f32 %v2194, 0.2
        %v2471 = vmul.f32 %v2197, 0.2
        %v2472 = vmul.f32 %v2202, 0.2
        %v2473 = vmul.f32 %v2205, 0.2
        %v2474 = vmul.f32 %v2210, 0.2
        %v2475 = vmul.f32 %v2213, 0.2
        %v2476 = vmul.f32 %v2218, 0.2
        %v2477 = vmul.f32 %v2221, 0.2
        %v2478 = vmul.f32 %v2226, 0.2
        %v2479 = vmul.f32 %v2229, 0.2
        %v2480 = vmul.f32 %v2234, 0.2
        %v2481 = vmul.f32 %v2237, 0.2
        %v2482 = vmul.f32 %v2242, 0.2
        %v2483 = vmul.f32 %v2245, 0.2
        %v2484 = vmul.f32 %v2250, 0.2
        %v2485 = vmul.f32 %v2253, 0.2
        %v2486 = vmul.f32 %v2258, 0.2
        %v2487 = vmul.f32 %v2261, 0.2
        %v2488 = vmul.f32 %v2266, 0.2
        %v2489 = vmul.f32 %v2269, 0.2
        %v2490 = vmul.f32 %v2274, 0.2
        %v2491 = vmul.f32 %v2277, 0.2
        %v2492 = vmul.f32 %v2282, 0.2
        %v2493 = vmul.f32 %v2285, 0.2
        %v2494 = vmul.f32 %v2290, 0.2
        %v2495 = vmul.f32 %v2293, 0.2
        %v2496 = vmul.f32 %v2298, 0.2
        %v2497 = vmul.f32 %v2301, 0.2
        %v2498 = vmul.f32 %v2306, 0.2
        %v2499 = vmul.f32 %v2309, 0.2
        %v2500 = vmul.f32 %v2314, 0.2
        %v2501 = vmul.f32 %v2317, 0.2
        %v2502 = vmul.f32 %v2322, 0.2
        %v2503 = vmul.f32 %v2325, 0.2
        %v2504 = vmul.f32 %v2330, 0.2
        %v2505 = vmul.f32 %v2333, 0.2
        %v2506 = vmul.f32 %v2338, 0.2
        %v2507 = vmul.f32 %v2341, 0.2
        %v2508 = vmul.f32 %v2346, 0.2
        %v2509 = vmul.f32 %v2349, 0.2
        %v2510 = vmul.f32 %v2354, 0.2
        %v2511 = vmul.f32 %v2357, 0.2
        %v2512 = vmul.f32 %v2362, 0.2
        %v2513 = vmul.f32 %v2365, 0.2
        %v2514 = vmul.f32 %v2370, 0.2
        %v2515 = vmul.f32 %v2373, 0.2
        %v2516 = vmul.f32 %v2378, 0.2
        %v2517 = vmul.f32 %v2381, 0.2
        %v2518 = vmul.f32 %v2386, 0.2
        %v2519 = vmul.f32 %v2389, 0.2
        %v2520 = vsel %vm2392, %v2138, %v2456
        %v2521 = vsel %vm2393, %v2141, %v2457
        %v2522 = vsel %vm2394, %v2146, %v2458
        %v2523 = vsel %vm2395, %v2149, %v2459
        %v2524 = vsel %vm2396, %v2154, %v2460
        %v2525 = vsel %vm2397, %v2157, %v2461
        %v2526 = vsel %vm2398, %v2162, %v2462
        %v2527 = vsel %vm2399, %v2165, %v2463
        %v2528 = vsel %vm2400, %v2170, %v2464
        %v2529 = vsel %vm2401, %v2173, %v2465
        %v2530 = vsel %vm2402, %v2178, %v2466
        %v2531 = vsel %vm2403, %v2181, %v2467
        %v2532 = vsel %vm2404, %v2186, %v2468
        %v2533 = vsel %vm2405, %v2189, %v2469
        %v2534 = vsel %vm2406, %v2194, %v2470
        %v2535 = vsel %vm2407, %v2197, %v2471
        %v2536 = vsel %vm2408, %v2202, %v2472
        %v2537 = vsel %vm2409, %v2205, %v2473
        %v2538 = vsel %vm2410, %v2210, %v2474
        %v2539 = vsel %vm2411, %v2213, %v2475
        %v2540 = vsel %vm2412, %v2218, %v2476
        %v2541 = vsel %vm2413, %v2221, %v2477
        %v2542 = vsel %vm2414, %v2226, %v2478
        %v2543 = vsel %vm2415, %v2229, %v2479
        %v2544 = vsel %vm2416, %v2234, %v2480
        %v2545 = vsel %vm2417, %v2237, %v2481
        %v2546 = vsel %vm2418, %v2242, %v2482
        %v2547 = vsel %vm2419, %v2245, %v2483
        %v2548 = vsel %vm2420, %v2250, %v2484
        %v2549 = vsel %vm2421, %v2253, %v2485
        %v2550 = vsel %vm2422, %v2258, %v2486
        %v2551 = vsel %vm2423, %v2261, %v2487
        %v2552 = vsel %vm2424, %v2266, %v2488
        %v2553 = vsel %vm2425, %v2269, %v2489
        %v2554 = vsel %vm2426, %v2274, %v2490
        %v2555 = vsel %vm2427, %v2277, %v2491
        %v2556 = vsel %vm2428, %v2282, %v2492
        %v2557 = vsel %vm2429, %v2285, %v2493
        %v2558 = vsel %vm2430, %v2290, %v2494
        %v2559 = vsel %vm2431, %v2293, %v2495
        %v2560 = vsel %vm2432, %v2298, %v2496
        %v2561 = vsel %vm2433, %v2301, %v2497
        %v2562 = vsel %vm2434, %v2306, %v2498
        %v2563 = vsel %vm2435, %v2309, %v2499
        %v2564 = vsel %vm2436, %v2314, %v2500
        %v2565 = vsel %vm2437, %v2317, %v2501
        %v2566 = vsel %vm2438, %v2322, %v2502
        %v2567 = vsel %vm2439, %v2325, %v2503
        %v2568 = vsel %vm2440, %v2330, %v2504
        %v2569 = vsel %vm2441, %v2333, %v2505
        %v2570 = vsel %vm2442, %v2338, %v2506
        %v2571 = vsel %vm2443, %v2341, %v2507
        %v2572 = vsel %vm2444, %v2346, %v2508
        %v2573 = vsel %vm2445, %v2349, %v2509
        %v2574 = vsel %vm2446, %v2354, %v2510
        %v2575 = vsel %vm2447, %v2357, %v2511
        %v2576 = vsel %vm2448, %v2362, %v2512
        %v2577 = vsel %vm2449, %v2365, %v2513
        %v2578 = vsel %vm2450, %v2370, %v2514
        %v2579 = vsel %vm2451, %v2373, %v2515
        %v2580 = vsel %vm2452, %v2378, %v2516
        %v2581 = vsel %vm2453, %v2381, %v2517
        %v2582 = vsel %vm2454, %v2386, %v2518
        %v2583 = vsel %vm2455, %v2389, %v2519
        %v2584 = vpack.c.bf16 %v2521, %v2520
        %v2585 = vpack.c.bf16 %v2523, %v2522
        %v2586 = vpack.c.bf16 %v2525, %v2524
        %v2587 = vpack.c.bf16 %v2527, %v2526
        %v2588 = vpack.c.bf16 %v2529, %v2528
        %v2589 = vpack.c.bf16 %v2531, %v2530
        %v2590 = vpack.c.bf16 %v2533, %v2532
        %v2591 = vpack.c.bf16 %v2535, %v2534
        %v2592 = vpack.c.bf16 %v2537, %v2536
        %v2593 = vpack.c.bf16 %v2539, %v2538
        %v2594 = vpack.c.bf16 %v2541, %v2540
        %v2595 = vpack.c.bf16 %v2543, %v2542
        %v2596 = vpack.c.bf16 %v2545, %v2544
        %v2597 = vpack.c.bf16 %v2547, %v2546
        %v2598 = vpack.c.bf16 %v2549, %v2548
        %v2599 = vpack.c.bf16 %v2551, %v2550
        %v2600 = vpack.c.bf16 %v2553, %v2552
        %v2601 = vpack.c.bf16 %v2555, %v2554
        %v2602 = vpack.c.bf16 %v2557, %v2556
        %v2603 = vpack.c.bf16 %v2559, %v2558
        %v2604 = vpack.c.bf16 %v2561, %v2560
        %v2605 = vpack.c.bf16 %v2563, %v2562
        %v2606 = vpack.c.bf16 %v2565, %v2564
        %v2607 = vpack.c.bf16 %v2567, %v2566
        %v2608 = vpack.c.bf16 %v2569, %v2568
        %v2609 = vpack.c.bf16 %v2571, %v2570
        %v2610 = vpack.c.bf16 %v2573, %v2572
        %v2611 = vpack.c.bf16 %v2575, %v2574
        %v2612 = vpack.c.bf16 %v2577, %v2576
        %v2613 = vpack.c.bf16 %v2579, %v2578
        %v2614 = vpack.c.bf16 %v2581, %v2580
        %v2615 = vpack.c.bf16 %v2583, %v2582
        %v2616 = vld [vmem:[%s7] sm:$0xf]
        %v2617 = vld [vmem:[%s7 + $0x4] sm:$0xf]
        %v2618 = vld [vmem:[%s7 + $0x8] sm:$0xf]
        %v2619 = vld [vmem:[%s7 + $0xc] sm:$0xf]
        %v2620 = vld [vmem:[%s7 + $0x10] sm:$0xf]
        %v2621 = vld [vmem:[%s7 + $0x14] sm:$0xf]
        %v2622 = vld [vmem:[%s7 + $0x18] sm:$0xf]
        %v2623 = vld [vmem:[%s7 + $0x1c] sm:$0xf]
        %v2624 = vld [vmem:[%s8] sm:$0x1]
        %v2626 = vlaneseq
        %v2627 = vshrl.u32 %v2626, 7
        %v2628 = vsub.s32 0, %v2627
        %v2629 = vrot.slane %v2624, %v2628
        %v2639 = vunpack.c.l.b16 %v2616
        %v2640 = vunpack.c.l.b16 %v2617
        %v2641 = vunpack.c.l.b16 %v2618
        %v2642 = vunpack.c.l.b16 %v2619
        %v2643 = vunpack.c.l.b16 %v2620
        %v2644 = vunpack.c.l.b16 %v2621
        %v2645 = vunpack.c.l.b16 %v2622
        %v2646 = vunpack.c.l.b16 %v2623
        %v2647 = vpack.c.b16 %v2640, %v2639
        %v2648 = vpack.c.b16 %v2642, %v2641
        %v2649 = vpack.c.b16 %v2644, %v2643
        %v2650 = vpack.c.b16 %v2646, %v2645
        %vm2655 = vcmask 523264
        %v2657 = vsel %vm2655, %v2584, 0
        %v2660 = vsel %vm2655, %v2585, 0
        %v2663 = vsel %vm2655, %v2586, 0
        %v2666 = vsel %vm2655, %v2587, 0
        %v2669 = vsel %vm2655, %v2588, 0
        %v2672 = vsel %vm2655, %v2589, 0
        %v2675 = vsel %vm2655, %v2590, 0
        %v2678 = vsel %vm2655, %v2591, 0
        %v2681 = vsel %vm2655, %v2592, 0
        %v2684 = vsel %vm2655, %v2593, 0
        %v2687 = vsel %vm2655, %v2594, 0
        %v2690 = vsel %vm2655, %v2595, 0
        %v2693 = vsel %vm2655, %v2596, 0
        %v2696 = vsel %vm2655, %v2597, 0
        %v2699 = vsel %vm2655, %v2598, 0
        %v2702 = vsel %vm2655, %v2599, 0
        %v2705 = vsel %vm2655, %v2600, 0
        %v2708 = vsel %vm2655, %v2601, 0
        %v2711 = vsel %vm2655, %v2602, 0
        %v2714 = vsel %vm2655, %v2603, 0
        %v2717 = vsel %vm2655, %v2604, 0
        %v2720 = vsel %vm2655, %v2605, 0
        %v2723 = vsel %vm2655, %v2606, 0
        %v2726 = vsel %vm2655, %v2607, 0
        %v2729 = vsel %vm2655, %v2608, 0
        %v2732 = vsel %vm2655, %v2609, 0
        %v2735 = vsel %vm2655, %v2610, 0
        %v2738 = vsel %vm2655, %v2611, 0
        %v2741 = vsel %vm2655, %v2612, 0
        %v2744 = vsel %vm2655, %v2613, 0
        %v2747 = vsel %vm2655, %v2614, 0
        %v2750 = vsel %vm2655, %v2615, 0
        %2752 = vmatprep.subr.bf16.mxu0 0
        %2753 = vmatpush1.bf16.msra.mxu0 %v2647
        %2754 = vmatprep.subr.bf16.mxu0 0
        %2755 = vmatpush1.bf16.msra.mxu0 %v2648
        %2756 = vmatprep.subr.bf16.mxu0 0
        %2757 = vmatpush1.bf16.msra.mxu0 %v2649
        %2758 = vmatprep.subr.bf16.mxu0 0
        %2759 = vmatpush1.bf16.msra.mxu0 %v2650
        %2760 = vmatprep.subr.bf16.mxu0 0
        %2761 = vmatpush1.bf16.msra.mxu0 0
        %2762 = vmatprep.subr.bf16.mxu0 0
        %2763 = vmatpush1.bf16.msra.mxu0 0
        %2764 = vmatprep.subr.bf16.mxu0 0
        %2765 = vmatpush1.bf16.msra.mxu0 0
        %2766 = vmatprep.subr.bf16.mxu0 0
        %2767 = vmatpush1.bf16.msra.mxu0 0
        %2768 = vmatprep.subr.bf16.mxu0 0
        %2769 = vmatpush1.bf16.msra.mxu0 0
        %2770 = vmatprep.subr.bf16.mxu0 0
        %2771 = vmatpush1.bf16.msra.mxu0 0
        %2772 = vmatprep.subr.bf16.mxu0 0
        %2773 = vmatpush1.bf16.msra.mxu0 0
        %2774 = vmatprep.subr.bf16.mxu0 0
        %2775 = vmatpush1.bf16.msra.mxu0 0
        %2776 = vmatprep.subr.bf16.mxu0 0
        %2777 = vmatpush1.bf16.msra.mxu0 0
        %2778 = vmatprep.subr.bf16.mxu0 0
        %2779 = vmatpush1.bf16.msra.mxu0 0
        %2780 = vmatprep.subr.bf16.mxu0 0
        %2781 = vmatpush1.bf16.msra.mxu0 0
        %2782 = vmatprep.subr.bf16.mxu0 0
        %2783 = vmatpush1.bf16.msra.mxu0 0
        %2784 = vmatprep.mubr.bf16.mxu0 0
        %2785 = vmatmul.mubr.bf16.gmra.mrb[0].mxu0 %v2657
        %v2786 = vpop.f32.mrb[0].mxu0
        %v2787 = vadd.f32 %v2629, %v2786
        %v2788 = vpop.f32.mrb[0].mxu0
        %v2789 = vpop.f32.mrb[0].mxu0
        %v2790 = vadd.f32 %v2629, %v2789
        %v2791 = vpop.f32.mrb[0].mxu0
        %2792 = vmatprep.mubr.bf16.mxu0 0
        %2793 = vmatmul.mubr.bf16.gmra.mrb[0].mxu0 %v2660
        %v2794 = vpop.f32.mrb[0].mxu0
        %v2795 = vadd.f32 %v2629, %v2794
        %v2796 = vpop.f32.mrb[0].mxu0
        %v2797 = vpop.f32.mrb[0].mxu0
        %v2798 = vadd.f32 %v2629, %v2797
        %v2799 = vpop.f32.mrb[0].mxu0
        %2800 = vmatprep.mubr.bf16.mxu0 0
        %2801 = vmatmul.mubr.bf16.gmra.mrb[0].mxu0 %v2663
        %v2802 = vpop.f32.mrb[0].mxu0
        %v2803 = vadd.f32 %v2629, %v2802
        %v2804 = vpop.f32.mrb[0].mxu0
        %v2805 = vpop.f32.mrb[0].mxu0
        %v2806 = vadd.f32 %v2629, %v2805
        %v2807 = vpop.f32.mrb[0].mxu0
        %2808 = vmatprep.mubr.bf16.mxu0 0
        %2809 = vmatmul.mubr.bf16.gmra.mrb[0].mxu0 %v2666
        %v2810 = vpop.f32.mrb[0].mxu0
        %v2811 = vadd.f32 %v2629, %v2810
        %v2812 = vpop.f32.mrb[0].mxu0
        %v2813 = vpop.f32.mrb[0].mxu0
        %v2814 = vadd.f32 %v2629, %v2813
        %v2815 = vpop.f32.mrb[0].mxu0
        %2816 = vmatprep.mubr.bf16.mxu0 0
        %2817 = vmatmul.mubr.bf16.gmra.mrb[0].mxu0 %v2669
        %v2818 = vpop.f32.mrb[0].mxu0
        %v2819 = vadd.f32 %v2629, %v2818
        %v2820 = vpop.f32.mrb[0].mxu0
        %v2821 = vpop.f32.mrb[0].mxu0
        %v2822 = vadd.f32 %v2629, %v2821
        %v2823 = vpop.f32.mrb[0].mxu0
        %2824 = vmatprep.mubr.bf16.mxu0 0
        %2825 = vmatmul.mubr.bf16.gmra.mrb[0].mxu0 %v2672
        %v2826 = vpop.f32.mrb[0].mxu0
        %v2827 = vadd.f32 %v2629, %v2826
        %v2828 = vpop.f32.mrb[0].mxu0
        %v2829 = vpop.f32.mrb[0].mxu0
        %v2830 = vadd.f32 %v2629, %v2829
        %v2831 = vpop.f32.mrb[0].mxu0
        %2832 = vmatprep.mubr.bf16.mxu0 0
        %2833 = vmatmul.mubr.bf16.gmra.mrb[0].mxu0 %v2675
        %v2834 = vpop.f32.mrb[0].mxu0
        %v2835 = vadd.f32 %v2629, %v2834
        %v2836 = vpop.f32.mrb[0].mxu0
        %v2837 = vpop.f32.mrb[0].mxu0
        %v2838 = vadd.f32 %v2629, %v2837
        %v2839 = vpop.f32.mrb[0].mxu0
        %2840 = vmatprep.mubr.bf16.mxu0 0
        %2841 = vmatmul.mubr.bf16.gmra.mrb[0].mxu0 %v2678
        %v2842 = vpop.f32.mrb[0].mxu0
        %v2843 = vadd.f32 %v2629, %v2842
        %v2844 = vpop.f32.mrb[0].mxu0
        %v2845 = vpop.f32.mrb[0].mxu0
        %v2846 = vadd.f32 %v2629, %v2845
        %v2847 = vpop.f32.mrb[0].mxu0
        %2848 = vmatprep.mubr.bf16.mxu0 0
        %2849 = vmatmul.mubr.bf16.gmra.mrb[0].mxu0 %v2681
        %v2850 = vpop.f32.mrb[0].mxu0
        %v2851 = vadd.f32 %v2629, %v2850
        %v2852 = vpop.f32.mrb[0].mxu0
        %v2853 = vpop.f32.mrb[0].mxu0
        %v2854 = vadd.f32 %v2629, %v2853
        %v2855 = vpop.f32.mrb[0].mxu0
        %2856 = vmatprep.mubr.bf16.mxu0 0
        %2857 = vmatmul.mubr.bf16.gmra.mrb[0].mxu0 %v2684
        %v2858 = vpop.f32.mrb[0].mxu0
        %v2859 = vadd.f32 %v2629, %v2858
        %v2860 = vpop.f32.mrb[0].mxu0
        %v2861 = vpop.f32.mrb[0].mxu0
        %v2862 = vadd.f32 %v2629, %v2861
        %v2863 = vpop.f32.mrb[0].mxu0
        %2864 = vmatprep.mubr.bf16.mxu0 0
        %2865 = vmatmul.mubr.bf16.gmra.mrb[0].mxu0 %v2687
        %v2866 = vpop.f32.mrb[0].mxu0
        %v2867 = vadd.f32 %v2629, %v2866
        %v2868 = vpop.f32.mrb[0].mxu0
        %v2869 = vpop.f32.mrb[0].mxu0
        %v2870 = vadd.f32 %v2629, %v2869
        %v2871 = vpop.f32.mrb[0].mxu0
        %2872 = vmatprep.mubr.bf16.mxu0 0
        %2873 = vmatmul.mubr.bf16.gmra.mrb[0].mxu0 %v2690
        %v2874 = vpop.f32.mrb[0].mxu0
        %v2875 = vadd.f32 %v2629, %v2874
        %v2876 = vpop.f32.mrb[0].mxu0
        %v2877 = vpop.f32.mrb[0].mxu0
        %v2878 = vadd.f32 %v2629, %v2877
        %v2879 = vpop.f32.mrb[0].mxu0
        %2880 = vmatprep.mubr.bf16.mxu0 0
        %2881 = vmatmul.mubr.bf16.gmra.mrb[0].mxu0 %v2693
        %v2882 = vpop.f32.mrb[0].mxu0
        %v2883 = vadd.f32 %v2629, %v2882
        %v2884 = vpop.f32.mrb[0].mxu0
        %v2885 = vpop.f32.mrb[0].mxu0
        %v2886 = vadd.f32 %v2629, %v2885
        %v2887 = vpop.f32.mrb[0].mxu0
        %2888 = vmatprep.mubr.bf16.mxu0 0
        %2889 = vmatmul.mubr.bf16.gmra.mrb[0].mxu0 %v2696
        %v2890 = vpop.f32.mrb[0].mxu0
        %v2891 = vadd.f32 %v2629, %v2890
        %v2892 = vpop.f32.mrb[0].mxu0
        %v2893 = vpop.f32.mrb[0].mxu0
        %v2894 = vadd.f32 %v2629, %v2893
        %v2895 = vpop.f32.mrb[0].mxu0
        %2896 = vmatprep.mubr.bf16.mxu0 0
        %2897 = vmatmul.mubr.bf16.gmra.mrb[0].mxu0 %v2699
        %v2898 = vpop.f32.mrb[0].mxu0
        %v2899 = vadd.f32 %v2629, %v2898
        %v2900 = vpop.f32.mrb[0].mxu0
        %v2901 = vpop.f32.mrb[0].mxu0
        %v2902 = vadd.f32 %v2629, %v2901
        %v2903 = vpop.f32.mrb[0].mxu0
        %2904 = vmatprep.mubr.bf16.mxu0 0
        %2905 = vmatmul.mubr.bf16.gmra.mrb[0].mxu0 %v2702
        %v2906 = vpop.f32.mrb[0].mxu0
        %v2907 = vadd.f32 %v2629, %v2906
        %v2908 = vpop.f32.mrb[0].mxu0
        %v2909 = vpop.f32.mrb[0].mxu0
        %v2910 = vadd.f32 %v2629, %v2909
        %v2911 = vpop.f32.mrb[0].mxu0
        %2912 = vmatprep.mubr.bf16.mxu0 0
        %2913 = vmatmul.mubr.bf16.gmra.mrb[0].mxu0 %v2705
        %v2914 = vpop.f32.mrb[0].mxu0
        %v2915 = vadd.f32 %v2629, %v2914
        %v2916 = vpop.f32.mrb[0].mxu0
        %v2917 = vpop.f32.mrb[0].mxu0
        %v2918 = vadd.f32 %v2629, %v2917
        %v2919 = vpop.f32.mrb[0].mxu0
        %2920 = vmatprep.mubr.bf16.mxu0 0
        %2921 = vmatmul.mubr.bf16.gmra.mrb[0].mxu0 %v2708
        %v2922 = vpop.f32.mrb[0].mxu0
        %v2923 = vadd.f32 %v2629, %v2922
        %v2924 = vpop.f32.mrb[0].mxu0
        %v2925 = vpop.f32.mrb[0].mxu0
        %v2926 = vadd.f32 %v2629, %v2925
        %v2927 = vpop.f32.mrb[0].mxu0
        %2928 = vmatprep.mubr.bf16.mxu0 0
        %2929 = vmatmul.mubr.bf16.gmra.mrb[0].mxu0 %v2711
        %v2930 = vpop.f32.mrb[0].mxu0
        %v2931 = vadd.f32 %v2629, %v2930
        %v2932 = vpop.f32.mrb[0].mxu0
        %v2933 = vpop.f32.mrb[0].mxu0
        %v2934 = vadd.f32 %v2629, %v2933
        %v2935 = vpop.f32.mrb[0].mxu0
        %2936 = vmatprep.mubr.bf16.mxu0 0
        %2937 = vmatmul.mubr.bf16.gmra.mrb[0].mxu0 %v2714
        %v2938 = vpop.f32.mrb[0].mxu0
        %v2939 = vadd.f32 %v2629, %v2938
        %v2940 = vpop.f32.mrb[0].mxu0
        %v2941 = vpop.f32.mrb[0].mxu0
        %v2942 = vadd.f32 %v2629, %v2941
        %v2943 = vpop.f32.mrb[0].mxu0
        %2944 = vmatprep.mubr.bf16.mxu0 0
        %2945 = vmatmul.mubr.bf16.gmra.mrb[0].mxu0 %v2717
        %v2946 = vpop.f32.mrb[0].mxu0
        %v2947 = vadd.f32 %v2629, %v2946
        %v2948 = vpop.f32.mrb[0].mxu0
        %v2949 = vpop.f32.mrb[0].mxu0
        %v2950 = vadd.f32 %v2629, %v2949
        %v2951 = vpop.f32.mrb[0].mxu0
        %2952 = vmatprep.mubr.bf16.mxu0 0
        %2953 = vmatmul.mubr.bf16.gmra.mrb[0].mxu0 %v2720
        %v2954 = vpop.f32.mrb[0].mxu0
        %v2955 = vadd.f32 %v2629, %v2954
        %v2956 = vpop.f32.mrb[0].mxu0
        %v2957 = vpop.f32.mrb[0].mxu0
        %v2958 = vadd.f32 %v2629, %v2957
        %v2959 = vpop.f32.mrb[0].mxu0
        %2960 = vmatprep.mubr.bf16.mxu0 0
        %2961 = vmatmul.mubr.bf16.gmra.mrb[0].mxu0 %v2723
        %v2962 = vpop.f32.mrb[0].mxu0
        %v2963 = vadd.f32 %v2629, %v2962
        %v2964 = vpop.f32.mrb[0].mxu0
        %v2965 = vpop.f32.mrb[0].mxu0
        %v2966 = vadd.f32 %v2629, %v2965
        %v2967 = vpop.f32.mrb[0].mxu0
        %2968 = vmatprep.mubr.bf16.mxu0 0
        %2969 = vmatmul.mubr.bf16.gmra.mrb[0].mxu0 %v2726
        %v2970 = vpop.f32.mrb[0].mxu0
        %v2971 = vadd.f32 %v2629, %v2970
        %v2972 = vpop.f32.mrb[0].mxu0
        %v2973 = vpop.f32.mrb[0].mxu0
        %v2974 = vadd.f32 %v2629, %v2973
        %v2975 = vpop.f32.mrb[0].mxu0
        %2976 = vmatprep.mubr.bf16.mxu0 0
        %2977 = vmatmul.mubr.bf16.gmra.mrb[0].mxu0 %v2729
        %v2978 = vpop.f32.mrb[0].mxu0
        %v2979 = vadd.f32 %v2629, %v2978
        %v2980 = vpop.f32.mrb[0].mxu0
        %v2981 = vpop.f32.mrb[0].mxu0
        %v2982 = vadd.f32 %v2629, %v2981
        %v2983 = vpop.f32.mrb[0].mxu0
        %2984 = vmatprep.mubr.bf16.mxu0 0
        %2985 = vmatmul.mubr.bf16.gmra.mrb[0].mxu0 %v2732
        %v2986 = vpop.f32.mrb[0].mxu0
        %v2987 = vadd.f32 %v2629, %v2986
        %v2988 = vpop.f32.mrb[0].mxu0
        %v2989 = vpop.f32.mrb[0].mxu0
        %v2990 = vadd.f32 %v2629, %v2989
        %v2991 = vpop.f32.mrb[0].mxu0
        %2992 = vmatprep.mubr.bf16.mxu0 0
        %2993 = vmatmul.mubr.bf16.gmra.mrb[0].mxu0 %v2735
        %v2994 = vpop.f32.mrb[0].mxu0
        %v2995 = vadd.f32 %v2629, %v2994
        %v2996 = vpop.f32.mrb[0].mxu0
        %v2997 = vpop.f32.mrb[0].mxu0
        %v2998 = vadd.f32 %v2629, %v2997
        %v2999 = vpop.f32.mrb[0].mxu0
        %3000 = vmatprep.mubr.bf16.mxu0 0
        %3001 = vmatmul.mubr.bf16.gmra.mrb[0].mxu0 %v2738
        %v3002 = vpop.f32.mrb[0].mxu0
        %v3003 = vadd.f32 %v2629, %v3002
        %v3004 = vpop.f32.mrb[0].mxu0
        %v3005 = vpop.f32.mrb[0].mxu0
        %v3006 = vadd.f32 %v2629, %v3005
        %v3007 = vpop.f32.mrb[0].mxu0
        %3008 = vmatprep.mubr.bf16.mxu0 0
        %3009 = vmatmul.mubr.bf16.gmra.mrb[0].mxu0 %v2741
        %v3010 = vpop.f32.mrb[0].mxu0
        %v3011 = vadd.f32 %v2629, %v3010
        %v3012 = vpop.f32.mrb[0].mxu0
        %v3013 = vpop.f32.mrb[0].mxu0
        %v3014 = vadd.f32 %v2629, %v3013
        %v3015 = vpop.f32.mrb[0].mxu0
        %3016 = vmatprep.mubr.bf16.mxu0 0
        %3017 = vmatmul.mubr.bf16.gmra.mrb[0].mxu0 %v2744
        %v3018 = vpop.f32.mrb[0].mxu0
        %v3019 = vadd.f32 %v2629, %v3018
        %v3020 = vpop.f32.mrb[0].mxu0
        %v3021 = vpop.f32.mrb[0].mxu0
        %v3022 = vadd.f32 %v2629, %v3021
        %v3023 = vpop.f32.mrb[0].mxu0
        %3024 = vmatprep.mubr.bf16.mxu0 0
        %3025 = vmatmul.mubr.bf16.gmra.mrb[0].mxu0 %v2747
        %v3026 = vpop.f32.mrb[0].mxu0
        %v3027 = vadd.f32 %v2629, %v3026
        %v3028 = vpop.f32.mrb[0].mxu0
        %v3029 = vpop.f32.mrb[0].mxu0
        %v3030 = vadd.f32 %v2629, %v3029
        %v3031 = vpop.f32.mrb[0].mxu0
        %3032 = vmatprep.mubr.bf16.mxu0 0
        %3033 = vmatmul.mubr.bf16.gmra.mrb[0].mxu0 %v2750
        %v3034 = vpop.f32.mrb[0].mxu0
        %v3035 = vadd.f32 %v2629, %v3034
        %v3036 = vpop.f32.mrb[0].mxu0
        %v3037 = vpop.f32.mrb[0].mxu0
        %v3038 = vadd.f32 %v2629, %v3037
        %v3039 = vpop.f32.mrb[0].mxu0
        %3040 = vdwg.mxu0
        %3041 = vxpose.xlu0.b32.start [1/16] %v2787, 128
        %3042 = vxpose.xlu0.b32.cont [2/16] %v2790, 128
        %3043 = vxpose.xlu0.b32.cont [3/16] %v2795, 128
        %3044 = vxpose.xlu0.b32.cont [4/16] %v2798, 128
        %3045 = vxpose.xlu0.b32.cont [5/16] %v2803, 128
        %3046 = vxpose.xlu0.b32.cont [6/16] %v2806, 128
        %3047 = vxpose.xlu0.b32.cont [7/16] %v2811, 128
        %3048 = vxpose.xlu0.b32.cont [8/16] %v2814, 128
        %3049 = vxpose.xlu0.b32.cont [9/16] %v2819, 128
        %3050 = vxpose.xlu0.b32.cont [10/16] %v2822, 128
        %3051 = vxpose.xlu0.b32.cont [11/16] %v2827, 128
        %3052 = vxpose.xlu0.b32.cont [12/16] %v2830, 128
        %3053 = vxpose.xlu0.b32.cont [13/16] %v2835, 128
        %3054 = vxpose.xlu0.b32.cont [14/16] %v2838, 128
        %3055 = vxpose.xlu0.b32.cont [15/16] %v2843, 128
        %3056 = vxpose.xlu0.b32.end [16/16] %v2846, 128
        %v3057 = vpop.trf.xlu0
        %v3058 = vpop.trf.xlu0
        %v3059 = vpop.trf.xlu0
        %v3060 = vpop.trf.xlu0
        %v3061 = vpop.trf.xlu0
        %v3062 = vpop.trf.xlu0
        %v3063 = vpop.trf.xlu0
        %v3064 = vpop.trf.xlu0
        %v3065 = vpop.trf.xlu0
        %v3066 = vpop.trf.xlu0
        %v3067 = vpop.trf.xlu0
        %v3068 = vpop.trf.xlu0
        %v3069 = vpop.trf.xlu0
        %v3070 = vpop.trf.xlu0
        %v3071 = vpop.trf.xlu0
        %v3072 = vpop.trf.xlu0
        %3073 = vxpose.xlu0.b32.start [1/16] %v2851, 128
        %3074 = vxpose.xlu0.b32.cont [2/16] %v2854, 128
        %3075 = vxpose.xlu0.b32.cont [3/16] %v2859, 128
        %3076 = vxpose.xlu0.b32.cont [4/16] %v2862, 128
        %3077 = vxpose.xlu0.b32.cont [5/16] %v2867, 128
        %3078 = vxpose.xlu0.b32.cont [6/16] %v2870, 128
        %3079 = vxpose.xlu0.b32.cont [7/16] %v2875, 128
        %3080 = vxpose.xlu0.b32.cont [8/16] %v2878, 128
        %3081 = vxpose.xlu0.b32.cont [9/16] %v2883, 128
        %3082 = vxpose.xlu0.b32.cont [10/16] %v2886, 128
        %3083 = vxpose.xlu0.b32.cont [11/16] %v2891, 128
        %3084 = vxpose.xlu0.b32.cont [12/16] %v2894, 128
        %3085 = vxpose.xlu0.b32.cont [13/16] %v2899, 128
        %3086 = vxpose.xlu0.b32.cont [14/16] %v2902, 128
        %3087 = vxpose.xlu0.b32.cont [15/16] %v2907, 128
        %3088 = vxpose.xlu0.b32.end [16/16] %v2910, 128
        %v3089 = vpop.trf.xlu0
        %v3090 = vpop.trf.xlu0
        %v3091 = vpop.trf.xlu0
        %v3092 = vpop.trf.xlu0
        %v3093 = vpop.trf.xlu0
        %v3094 = vpop.trf.xlu0
        %v3095 = vpop.trf.xlu0
        %v3096 = vpop.trf.xlu0
        %v3097 = vpop.trf.xlu0
        %v3098 = vpop.trf.xlu0
        %v3099 = vpop.trf.xlu0
        %v3100 = vpop.trf.xlu0
        %v3101 = vpop.trf.xlu0
        %v3102 = vpop.trf.xlu0
        %v3103 = vpop.trf.xlu0
        %v3104 = vpop.trf.xlu0
        %3105 = vxpose.xlu0.b32.start [1/16] %v2915, 128
        %3106 = vxpose.xlu0.b32.cont [2/16] %v2918, 128
        %3107 = vxpose.xlu0.b32.cont [3/16] %v2923, 128
        %3108 = vxpose.xlu0.b32.cont [4/16] %v2926, 128
        %3109 = vxpose.xlu0.b32.cont [5/16] %v2931, 128
        %3110 = vxpose.xlu0.b32.cont [6/16] %v2934, 128
        %3111 = vxpose.xlu0.b32.cont [7/16] %v2939, 128
        %3112 = vxpose.xlu0.b32.cont [8/16] %v2942, 128
        %3113 = vxpose.xlu0.b32.cont [9/16] %v2947, 128
        %3114 = vxpose.xlu0.b32.cont [10/16] %v2950, 128
        %3115 = vxpose.xlu0.b32.cont [11/16] %v2955, 128
        %3116 = vxpose.xlu0.b32.cont [12/16] %v2958, 128
        %3117 = vxpose.xlu0.b32.cont [13/16] %v2963, 128
        %3118 = vxpose.xlu0.b32.cont [14/16] %v2966, 128
        %3119 = vxpose.xlu0.b32.cont [15/16] %v2971, 128
        %3120 = vxpose.xlu0.b32.end [16/16] %v2974, 128
        %v3121 = vpop.trf.xlu0
        %v3122 = vpop.trf.xlu0
        %v3123 = vpop.trf.xlu0
        %v3124 = vpop.trf.xlu0
        %v3125 = vpop.trf.xlu0
        %v3126 = vpop.trf.xlu0
        %v3127 = vpop.trf.xlu0
        %v3128 = vpop.trf.xlu0
        %v3129 = vpop.trf.xlu0
        %v3130 = vpop.trf.xlu0
        %v3131 = vpop.trf.xlu0
        %v3132 = vpop.trf.xlu0
        %v3133 = vpop.trf.xlu0
        %v3134 = vpop.trf.xlu0
        %v3135 = vpop.trf.xlu0
        %v3136 = vpop.trf.xlu0
        %3137 = vxpose.xlu0.b32.start [1/16] %v2979, 128
        %3138 = vxpose.xlu0.b32.cont [2/16] %v2982, 128
        %3139 = vxpose.xlu0.b32.cont [3/16] %v2987, 128
        %3140 = vxpose.xlu0.b32.cont [4/16] %v2990, 128
        %3141 = vxpose.xlu0.b32.cont [5/16] %v2995, 128
        %3142 = vxpose.xlu0.b32.cont [6/16] %v2998, 128
        %3143 = vxpose.xlu0.b32.cont [7/16] %v3003, 128
        %3144 = vxpose.xlu0.b32.cont [8/16] %v3006, 128
        %3145 = vxpose.xlu0.b32.cont [9/16] %v3011, 128
        %3146 = vxpose.xlu0.b32.cont [10/16] %v3014, 128
        %3147 = vxpose.xlu0.b32.cont [11/16] %v3019, 128
        %3148 = vxpose.xlu0.b32.cont [12/16] %v3022, 128
        %3149 = vxpose.xlu0.b32.cont [13/16] %v3027, 128
        %3150 = vxpose.xlu0.b32.cont [14/16] %v3030, 128
        %3151 = vxpose.xlu0.b32.cont [15/16] %v3035, 128
        %3152 = vxpose.xlu0.b32.end [16/16] %v3038, 128
        %v3153 = vpop.trf.xlu0
        %v3154 = vpop.trf.xlu0
        %v3155 = vpop.trf.xlu0
        %v3156 = vpop.trf.xlu0
        %v3157 = vpop.trf.xlu0
        %v3158 = vpop.trf.xlu0
        %v3159 = vpop.trf.xlu0
        %v3160 = vpop.trf.xlu0
        %v3161 = vpop.trf.xlu0
        %v3162 = vpop.trf.xlu0
        %v3163 = vpop.trf.xlu0
        %v3164 = vpop.trf.xlu0
        %v3165 = vpop.trf.xlu0
        %v3166 = vpop.trf.xlu0
        %v3167 = vpop.trf.xlu0
        %v3168 = vpop.trf.xlu0
        %v3173 = vcombine.low %v3057, %v3089
        %v3174 = vcombine.low %v3121, %v3153
        %v3176 = vunpack.c.l.s4 1966171168
        %v3177 = vunpack.c.0.s8 %v3176
        %v3178 = vlaneseq
        %v3179 = vshrl.u32 %v3178, 7
        %v3180 = vsub.s32 %v3177, %v3179
        %v3181 = vrot.slane %v3173, %v3180
        %v3183 = vunpack.c.l.s4 1966171168
        %v3184 = vunpack.c.0.s8 %v3183
        %v3185 = vlaneseq
        %v3186 = vshrl.u32 %v3185, 7
        %v3187 = vsub.s32 %v3184, %v3186
        %v3188 = vrot.slane %v3174, %v3187
        %v3189 = vcombine.low %v3181, %v3188
        %v3191 = vunpack.c.l.s4 1966171168
        %v3192 = vunpack.c.0.s8 %v3191
        %v3193 = vlaneseq
        %v3194 = vshrl.u32 %v3193, 7
        %v3195 = vsub.s32 %v3192, %v3194
        %v3196 = vrot.slane %v3189, %v3195
        %v3198 = vlaneseq
        %vm3199 = vcmp.ge.s32.totalorder %v3198, 0
        %vm3200 = vcmp.lt.s32.totalorder %v3198, 512
        %vm3201 = vmand %vm3199, %vm3200
        %3202 = vst.msk [vmem:[%s338] sm:$0xf] %vm3201, %v3196
        %s3203 = sand.u32 %s225, 1
        %s3204 = scalar_lea.sflag [#allocation3], %s3203
        %s3205 = sand.u32 %s225, 1
        %s3206 = smul.addr %s3205, 4
        %s3207 = scalar_lea.vmem [#allocation2], %s3206
        // Predicated region
        $region57: #{tpu_custom_call.1} parent=55 // pred_check
          %p3208 = pneg %p235
        $region58: #{tpu_custom_call.1} parent=55 // pred_check_branch
          %3210 = sbr.rel (%p3208) target = $region60
        $region59: #{tpu_custom_call.1} parent=55 // pred_region
          %s3212 = ssub.s32 64, 64
          %3213 = vsyncadd %s3204, %s3212
          %s3214 = smul.addr %s23, 4
          %s3215 = smul.addr %s3214, 16
          %s3216 = scalar_lea.hbm %s9, %s3215
          %s3218 = sshll.u32 %s3207, 4
          %s3219 = int_to_ptr.vmem [resolvable:$true] %s3218
          %3221 = dma.vmem_to_hbm [thread:$0]  %s3219, 64, %s3216, %s3204
        $region60: #{tpu_custom_call.1} parent=55 // pred_fallthru
          _
      $region56: #{tpu_custom_call.1} parent=5 // pred_fallthru
        _
      %p3222 = scmp.le.s32.totalorder 2, %s18
      // Predicated region
      $region61: #{tpu_custom_call.1} parent=5 // pred_check
        %p3223 = pneg %p3222
      $region62: #{tpu_custom_call.1} parent=5 // pred_check_branch
        %3225 = sbr.rel (%p3223) target = $region64
      $region63: #{tpu_custom_call.1} parent=5 // pred_region
        %s3226 = ssub.s32 %s18, 2
        // Predicated region
        $region65: #{tpu_custom_call.1} parent=63 // pred_check
          %p3227 = pneg %p241
        $region66: #{tpu_custom_call.1} parent=63 // pred_check_branch
          %3229 = sbr.rel (%p3227) target = $region68
        $region67: #{tpu_custom_call.1} parent=63 // pred_region
          %s3230 = sand.u32 %s226, 1
          %s3231 = scalar_lea.sflag [#allocation3], %s3230
          %s3232 = sand.u32 %s226, 1
          %s3233 = smul.addr %s3232, 4
          %s3234 = scalar_lea.vmem [#allocation2], %s3233
          %3235 = dma.done %s3231, 64
        $region68: #{tpu_custom_call.1} parent=63 // pred_fallthru
          _
      $region64: #{tpu_custom_call.1} parent=5 // pred_fallthru
        _
    $region6: #{tpu_custom_call.1} parent=1 // loop_footer
      %s22 = sadd.s32 1, %s18
    $region7: #{tpu_custom_call.1} parent=1 // loop_footer_branch
      %17 = sbr.rel target = $region3
    $region8: #{tpu_custom_call.1} parent=1 // loop_exit
      _
    %3236 = vsyncpa [#allocation3], 1
    %s3237 = scalar_lea.sflag [#allocation3], 1
    %3238 = vsyncpa %s3237, 1

</llo_original>
